<compile_context>
chip_gen: v7x
topology: tpu7x:2x2x1
jax: 0.10.0
libtpu: 0.0.40
codegen_flags: <defaults>
</compile_context>

<pallas_src>
import functools
import math

import jax
import jax.numpy as jnp
import numpy as np
from jax.experimental import pallas as pl
from jax.experimental.pallas import tpu as pltpu

LANE = 128

# ----------------------------------------------------------------------------
# Static layout of the two packed parameter slabs
# ----------------------------------------------------------------------------
W_ORDER = (
    "enc_emb", "dec_emb", "pe",
    "e_wq", "e_wk", "e_wv", "e_w0", "e_w1", "e_w2",
    "d_wq1", "d_wk1", "d_wv1", "d_w0",
    "d_wq2", "d_wk2", "d_wv2", "d_w1",
    "d_w2", "d_w3",
    "g_wg",
)
W_IDX = {n: i for i, n in enumerate(W_ORDER)}

V_ORDER = (
    "e_bq", "e_bk", "e_bv", "e_b0", "e_g1", "e_be1", "e_b1", "e_b2", "e_g2", "e_be2",
    "d_bq1", "d_bk1", "d_bv1", "d_b0", "d_g1", "d_be1",
    "d_bq2", "d_bk2", "d_bv2", "d_b1", "d_g2", "d_be2",
    "d_b2", "d_b3", "d_g3", "d_be3",
    "g_bg",
)
V_IDX = {n: i for i, n in enumerate(V_ORDER)}
V_ROWS = ((len(V_ORDER) + 7) // 8) * 8


# ----------------------------------------------------------------------------
# Fused encoder + decoder + generator kernel (one grid step = one batch element)
# ----------------------------------------------------------------------------
def fused_transformer_kernel(xid_ref, yid_ref, w_ref, v_ref, out_ref, *, P):
    f32 = jnp.float32
    Ss = xid_ref.shape[1]
    St = yid_ref.shape[1]

    def W(name):                                  # (128, 128) zero-padded weight block
        return w_ref[W_IDX[name]]

    def Vrow(name):                               # (1, 128) zero-padded bias / LN row
        return v_ref[pl.ds(V_IDX[name], 1), :]

    lane = jax.lax.broadcasted_iota(jnp.int32, (1, LANE), 1)
    lane_valid = (lane < P).astype(f32)           # LayerNorm statistics mask (first P lanes)
    inv_p = 1.0 / P
    inv_sqrt_dk = 1.0 / math.sqrt(P)

    def linear(x, wn, bn):
        return jnp.dot(x, W(wn), preferred_element_type=f32) + Vrow(bn)

    def layer_norm(x, gn, bn, eps=1e-5):
        # Padding lanes of x are exactly zero, so sum over 128 lanes == sum over P lanes.
        mu = jnp.sum(x, axis=-1, keepdims=True) * inv_p
        xc = (x - mu) * lane_valid
        var = jnp.sum(xc * xc, axis=-1, keepdims=True) * inv_p
        return xc * jax.lax.rsqrt(var + eps) * Vrow(gn) + Vrow(bn)

    def attend(q, k, v, mask=None):
        # Scores via dot_general contracting the last dims (no k relayout);
        # 1/sqrt(d_k) folded into q; softmax denominator on the EUP approx reciprocal.
        s = jax.lax.dot_general(q * inv_sqrt_dk, k,
                                dimension_numbers=(((1,), (1,)), ((), ())),
                                preferred_element_type=f32)
        if mask is not None:
            s = jnp.where(mask, s, -1e30)
        m = jnp.max(s, axis=-1, keepdims=True)
        e = jnp.exp(s - m)
        a = e * pl.reciprocal(jnp.sum(e, axis=-1, keepdims=True), approx=True)
        return jnp.dot(a, v, preferred_element_type=f32)

    def embed(id_ref, emb_name, S):
        # one-hot(ids) @ padded embedding block == row gather, done on the MXU,
        # then add the positional-encoding rows.  Result is (S, 128), zero beyond lane P.
        lanes = jax.lax.broadcasted_iota(jnp.int32, (S, LANE), 1)
        onehot = (id_ref[0] == lanes).astype(f32)
        return (jnp.dot(onehot, W(emb_name), preferred_element_type=f32)
                + W("pe")[:S, :])

    # ---------------- Encoder ----------------
    x = embed(xid_ref, "enc_emb", Ss)                                  # (Ss, 128)
    q = linear(x, "e_wq", "e_bq")
    k = linear(x, "e_wk", "e_bk")
    v = linear(x, "e_wv", "e_bv")
    t = attend(q, k, v)
    u = layer_norm(x + linear(t, "e_w0", "e_b0"), "e_g1", "e_be1")
    z = linear(jnp.maximum(linear(u, "e_w1", "e_b1"), 0.0), "e_w2", "e_b2")   # FFN (ReLU)
    xp = layer_norm(u + z, "e_g2", "e_be2")                            # encoder memory, stays in VMEM

    # ---------------- Decoder ----------------
    y = embed(yid_ref, "dec_emb", St)                                  # (St, 128)
    row = jax.lax.broadcasted_iota(jnp.int32, (St, St), 0)
    col = jax.lax.broadcasted_iota(jnp.int32, (St, St), 1)
    causal = col <= row

    q1 = linear(y, "d_wq1", "d_bq1")
    k1 = linear(y, "d_wk1", "d_bk1")
    v1 = linear(y, "d_wv1", "d_bv1")
    t1 = attend(q1, k1, v1, causal)                                    # masked self-attention
    u1 = layer_norm(y + linear(t1, "d_w0", "d_b0"), "d_g1", "d_be1")

    q2 = linear(u1, "d_wq2", "d_bq2")                                  # cross-attention on xp
    k2 = linear(xp, "d_wk2", "d_bk2")
    v2 = linear(xp, "d_wv2", "d_bv2")
    t2 = attend(q2, k2, v2)
    u2 = layer_norm(u1 + linear(t2, "d_w1", "d_b1"), "d_g2", "d_be2")

    z2 = linear(jnp.maximum(linear(u2, "d_w2", "d_b2"), 0.0), "d_w3", "d_b3")  # FFN (ReLU)
    u3 = layer_norm(u2 + z2, "d_g3", "d_be3")

    # ---------------- Generator (vocab in lanes [0, V) of a lane-dense 128 block) ----------------
    out_ref[0] = linear(u3, "g_wg", "g_bg").astype(out_ref.dtype)


# ----------------------------------------------------------------------------
# pallas_call wrapper
# ----------------------------------------------------------------------------
def run_transformer(enc_ids, dec_ids, wslab, vslab, P):
    B, Ss, _ = enc_ids.shape
    _, St, _ = dec_ids.shape
    kernel = functools.partial(fused_transformer_kernel, P=P)
    return pl.pallas_call(
        kernel,
        out_shape=jax.ShapeDtypeStruct((B, St, LANE), jnp.float32),
        grid_spec=pltpu.PrefetchScalarGridSpec(
            num_scalar_prefetch=0,
            grid=(B,),
            in_specs=[
                pl.BlockSpec((1, Ss, 1), lambda b: (b, 0, 0)),     # encoder token ids
                pl.BlockSpec((1, St, 1), lambda b: (b, 0, 0)),     # decoder token ids
                pl.BlockSpec(wslab.shape, lambda b: (0, 0, 0)),    # packed matrices (constant index)
                pl.BlockSpec(vslab.shape, lambda b: (0, 0)),       # packed vectors  (constant index)
            ],
            out_specs=pl.BlockSpec((1, St, LANE), lambda b: (b, 0, 0)),
        ),
        compiler_params=pltpu.CompilerParams(
            dimension_semantics=("parallel",),      # batch -> both TensorCores on v7x
            vmem_limit_bytes=32 * 1024 * 1024,
        ),
    )(enc_ids, dec_ids, wslab, vslab)


# ----------------------------------------------------------------------------
# Parameters / packing / glue
# ----------------------------------------------------------------------------
def positional_encoding_table(p, maxlen):
    inv = 1.0 / (10000.0 ** (jnp.arange(0, p, 2, dtype=jnp.float32) / p))
    t = jnp.arange(maxlen, dtype=jnp.float32)
    outer = jnp.outer(t, inv)
    pe = jnp.zeros((maxlen, p), jnp.float32)
    pe = pe.at[:, 0::2].set(jnp.sin(outer))
    pe = pe.at[:, 1::2].set(jnp.cos(outer))
    return pe  # (maxlen, p)


def make_linear(key, fan_in, fan_out):
    k1, k2 = jax.random.split(key)
    w = jax.random.normal(k1, (fan_in, fan_out), jnp.float32) / jnp.sqrt(fan_in)
    b = jax.random.normal(k2, (1, fan_out), jnp.float32) * 0.01
    return w, b


def make_ln(p):
    return jnp.ones((1, p), jnp.float32), jnp.zeros((1, p), jnp.float32)


def make_params(key, p, d_ff, vocab, maxlen):
    keys = jax.random.split(key, 32)
    ki = iter(keys)
    params = {}
    params["pe"] = positional_encoding_table(p, maxlen)
    params["enc_emb"] = jax.random.normal(next(ki), (vocab, p), jnp.float32)
    params["dec_emb"] = jax.random.normal(next(ki), (vocab, p), jnp.float32)

    enc = {}
    enc["wq"], enc["bq"] = make_linear(next(ki), p, p)
    enc["wk"], enc["bk"] = make_linear(next(ki), p, p)
    enc["wv"], enc["bv"] = make_linear(next(ki), p, p)
    enc["w0"], enc["b0"] = make_linear(next(ki), p, p)
    enc["g1"], enc["be1"] = make_ln(p)
    enc["w1"], enc["b1"] = make_linear(next(ki), p, d_ff)
    enc["w2"], enc["b2"] = make_linear(next(ki), d_ff, p)
    enc["g2"], enc["be2"] = make_ln(p)
    params["enc"] = enc

    dec = {}
    dec["wq1"], dec["bq1"] = make_linear(next(ki), p, p)
    dec["wk1"], dec["bk1"] = make_linear(next(ki), p, p)
    dec["wv1"], dec["bv1"] = make_linear(next(ki), p, p)
    dec["w0"], dec["b0"] = make_linear(next(ki), p, p)
    dec["g1"], dec["be1"] = make_ln(p)
    dec["wq2"], dec["bq2"] = make_linear(next(ki), p, p)
    dec["wk2"], dec["bk2"] = make_linear(next(ki), p, p)
    dec["wv2"], dec["bv2"] = make_linear(next(ki), p, p)
    dec["w1"], dec["b1"] = make_linear(next(ki), p, p)
    dec["g2"], dec["be2"] = make_ln(p)
    dec["w2"], dec["b2"] = make_linear(next(ki), p, d_ff)
    dec["w3"], dec["b3"] = make_linear(next(ki), d_ff, p)
    dec["g3"], dec["be3"] = make_ln(p)
    params["dec"] = dec

    gen = {}
    gen["wg"], gen["bg"] = make_linear(next(ki), p, vocab)
    params["gen"] = gen
    return params


def _flat_params(params):
    flat = {"enc_emb": params["enc_emb"], "dec_emb": params["dec_emb"],
            "pe": params["pe"][:LANE]}
    for k_, v_ in params["enc"].items():
        flat["e_" + k_] = v_
    for k_, v_ in params["dec"].items():
        flat["d_" + k_] = v_
    flat["g_wg"] = params["gen"]["wg"]
    flat["g_bg"] = params["gen"]["bg"]
    return flat


def pack_params(params):
    """Pack every matrix into a 128x128 zero-padded block and every bias/LN vector into a
    lane-padded row -> two VMEM slabs (4 kernel operands total)."""
    flat = _flat_params(params)

    def pad_block(w):
        r, c = w.shape
        assert r <= LANE and c <= LANE, (r, c)
        return jnp.zeros((LANE, LANE), jnp.float32).at[:r, :c].set(w.astype(jnp.float32))

    wslab = jnp.stack([pad_block(flat[n]) for n in W_ORDER])           # (n_blocks, 128, 128)

    def pad_row(v):
        v = v.reshape(1, -1).astype(jnp.float32)
        assert v.shape[1] <= LANE
        return jnp.zeros((1, LANE), jnp.float32).at[:, : v.shape[1]].set(v)

    vrows = jnp.concatenate([pad_row(flat[n]) for n in V_ORDER], axis=0)
    vslab = jnp.zeros((V_ROWS, LANE), jnp.float32).at[: len(V_ORDER)].set(vrows)
    return wslab, vslab


@jax.jit
def transformer_forward(params, X_ids, Y_ids):
    P = params["enc"]["wq"].shape[0]
    V = params["gen"]["wg"].shape[1]
    assert P <= LANE and V <= LANE
    assert X_ids.shape[0] <= params["pe"].shape[0] and X_ids.shape[0] <= LANE
    assert Y_ids.shape[0] <= params["pe"].shape[0] and Y_ids.shape[0] <= LANE

    wslab, vslab = pack_params(params)
    # (seq, batch) token ids -> (batch, seq, 1) int32.  This tiny transpose is the only
    # pre-processing left outside the kernel; the embedding gather, PE add and activation
    # transposes all happen in-kernel.
    enc_ids = jnp.transpose(X_ids, (1, 0))[:, :, None].astype(jnp.int32)
    dec_ids = jnp.transpose(Y_ids, (1, 0))[:, :, None].astype(jnp.int32)

    logits = run_transformer(enc_ids, dec_ids, wslab, vslab, P)        # (B, St, 128) f32
    return jnp.transpose(logits[:, :, :V], (1, 0, 2))                  # (St, B, V), torch layout


# ----------------------------------------------------------------------------
# Pure-JAX reference (mirrors the PyTorch forward) for verification
# ----------------------------------------------------------------------------
def _ref_ln(x, g, b, eps=1e-5):
    mu = jnp.mean(x, axis=-1, keepdims=True)
    var = jnp.mean((x - mu) ** 2, axis=-1, keepdims=True)
    return (x - mu) / jnp.sqrt(var + eps) * g + b


def _ref_attend(q, k, v, mask=None):
    d = q.shape[-1]
    s = jnp.einsum("bqd,bkd->bqk", q, k) / jnp.sqrt(jnp.float32(d))
    if mask is not None:
        s = jnp.where(mask, s, -1e30)
    a = jax.nn.softmax(s, axis=-1)
    return jnp.einsum("bqk,bkd->bqd", a, v)


def ref_transformer(params, X_ids, Y_ids):
    pe = params["pe"]
    lin = lambda x, w, b: x @ w + b

    x = params["enc_emb"][X_ids] + pe[: X_ids.shape[0]][:, None, :]
    x = jnp.transpose(x, (1, 0, 2))
    e = params["enc"]
    t = _ref_attend(lin(x, e["wq"], e["bq"]), lin(x, e["wk"], e["bk"]),
                    lin(x, e["wv"], e["bv"]))
    u = _ref_ln(x + lin(t, e["w0"], e["b0"]), e["g1"], e["be1"])
    z = lin(jnp.maximum(lin(u, e["w1"], e["b1"]), 0.0), e["w2"], e["b2"])
    xp = _ref_ln(u + z, e["g2"], e["be2"])

    y = params["dec_emb"][Y_ids] + pe[: Y_ids.shape[0]][:, None, :]
    y = jnp.transpose(y, (1, 0, 2))
    d = params["dec"]
    m = y.shape[1]
    mask = jnp.tril(jnp.ones((m, m), bool))[None]
    t1 = _ref_attend(lin(y, d["wq1"], d["bq1"]), lin(y, d["wk1"], d["bk1"]),
                     lin(y, d["wv1"], d["bv1"]), mask)
    u1 = _ref_ln(y + lin(t1, d["w0"], d["b0"]), d["g1"], d["be1"])
    t2 = _ref_attend(lin(u1, d["wq2"], d["bq2"]), lin(xp, d["wk2"], d["bk2"]),
                     lin(xp, d["wv2"], d["bv2"]))
    u2 = _ref_ln(u1 + lin(t2, d["w1"], d["b1"]), d["g2"], d["be2"])
    z = lin(jnp.maximum(lin(u2, d["w2"], d["b2"]), 0.0), d["w3"], d["b3"])
    u3 = _ref_ln(u2 + z, d["g3"], d["be3"])

    logits = lin(u3, params["gen"]["wg"], params["gen"]["bg"])
    return jnp.transpose(logits, (1, 0, 2))


# ----------------------------------------------------------------------------
if __name__ == "__main__":
    P, D_FF, VOCAB = 32, 64, 16
    S_SRC, S_TGT, B = 10, 8, 2
    MAXLEN = 64

    key = jax.random.PRNGKey(0)
    kp, kx, ky = jax.random.split(key, 3)
    params = make_params(kp, P, D_FF, VOCAB, MAXLEN)

    X_ids = jax.random.randint(kx, (S_SRC, B), 0, VOCAB)  # (src_seq, batch) token ids
    Y_ids = jax.random.randint(ky, (S_TGT, B), 0, VOCAB)  # (tgt_seq, batch) token ids

    ref = np.asarray(ref_transformer(params, X_ids, Y_ids))

    logits = jax.block_until_ready(transformer_forward(params, X_ids, Y_ids))
    np.testing.assert_allclose(np.asarray(logits), ref, atol=2e-2, rtol=2e-2)

    print("KERNEL_OK")
</pallas_src>

<mosaic_0001>
module attributes {stable_mosaic.version = 11 : i64} {
  func.func @fused_transformer_kernel(%arg0: i32, %arg1: memref<1x10x1xi32, #tpu.memory_space<vmem>>, %arg2: memref<1x8x1xi32, #tpu.memory_space<vmem>>, %arg3: memref<20x128x128xf32, #tpu.memory_space<vmem>>, %arg4: memref<32x128xf32, #tpu.memory_space<vmem>>, %arg5: memref<1x8x128xf32, #tpu.memory_space<vmem>>) attributes {dimension_semantics = [#tpu.dimension_semantics<parallel>], iteration_bounds = array<i64: 2>, scalar_prefetch = 0 : i64, scratch_operands = 0 : i64, tpu.core_type = #tpu.core_type<tc>, window_params = [{transform_indices = @transform_0, window_bounds = array<i64: 1, 10, 1>}, {transform_indices = @transform_1, window_bounds = array<i64: 1, 8, 1>}, {pipeline_mode = #tpu.pipeline_mode<synchronous>, transform_indices = @transform_2, window_bounds = array<i64: 20, 128, 128>}, {pipeline_mode = #tpu.pipeline_mode<synchronous>, transform_indices = @transform_3, window_bounds = array<i64: 32, 128>}, {transform_indices = @transform_4, window_bounds = array<i64: 1, 8, 128>}]} {
    %0 = tpu.iota {dimensions = array<i32: 1>} : vector<1x128xi32>
    %c32_i32 = arith.constant 32 : i32
    %1 = vector.broadcast %c32_i32 : i32 to vector<1x128xi32>
    %2 = arith.cmpi slt, %0, %1 : vector<1x128xi32>
    %3 = arith.extui %2 : vector<1x128xi1> to vector<1x128xi32>
    %4 = arith.sitofp %3 : vector<1x128xi32> to vector<1x128xf32>
    %5 = tpu.iota {dimensions = array<i32: 1>} : vector<10x128xi32>
    %c0 = arith.constant 0 : index
    %c0_0 = arith.constant 0 : index
    %c0_1 = arith.constant 0 : index
    %6 = vector.load %arg1[%c0, %c0_0, %c0_1] : memref<1x10x1xi32, #tpu.memory_space<vmem>>, vector<1x10x1xi32>
    %7 = vector.shape_cast %6 : vector<1x10x1xi32> to vector<10x1xi32>
    %8 = vector.broadcast %7 : vector<10x1xi32> to vector<10x128xi32>
    %9 = arith.cmpi eq, %8, %5 : vector<10x128xi32>
    %10 = arith.extui %9 : vector<10x128xi1> to vector<10x128xi32>
    %11 = arith.sitofp %10 : vector<10x128xi32> to vector<10x128xf32>
    %c0_2 = arith.constant 0 : index
    %c0_3 = arith.constant 0 : index
    %c0_4 = arith.constant 0 : index
    %12 = vector.load %arg3[%c0_2, %c0_3, %c0_4] : memref<20x128x128xf32, #tpu.memory_space<vmem>>, vector<1x128x128xf32>
    %13 = vector.shape_cast %12 : vector<1x128x128xf32> to vector<128x128xf32>
    %cst = arith.constant dense<0.000000e+00> : vector<10x128xf32>
    %14 = tpu.matmul %11, %13, %cst {dimension_numbers = #tpu.dot_dimension_numbers<[1], [0], [0], [1], [0, 0, 1, 1], [], []>} : vector<10x128xf32>, vector<128x128xf32>, vector<10x128xf32> -> vector<10x128xf32>
    %c2 = arith.constant 2 : index
    %c0_5 = arith.constant 0 : index
    %c0_6 = arith.constant 0 : index
    %15 = vector.load %arg3[%c2, %c0_5, %c0_6] : memref<20x128x128xf32, #tpu.memory_space<vmem>>, vector<1x128x128xf32>
    %16 = vector.shape_cast %15 : vector<1x128x128xf32> to vector<128x128xf32>
    %17 = vector.extract_strided_slice %16 {offsets = [0, 0], sizes = [10, 128], strides = [1, 1]} : vector<128x128xf32> to vector<10x128xf32>
    %18 = arith.addf %14, %17 : vector<10x128xf32>
    %c3 = arith.constant 3 : index
    %c0_7 = arith.constant 0 : index
    %c0_8 = arith.constant 0 : index
    %19 = vector.load %arg3[%c3, %c0_7, %c0_8] : memref<20x128x128xf32, #tpu.memory_space<vmem>>, vector<1x128x128xf32>
    %20 = vector.shape_cast %19 : vector<1x128x128xf32> to vector<128x128xf32>
    %cst_9 = arith.constant dense<0.000000e+00> : vector<10x128xf32>
    %21 = tpu.matmul %18, %20, %cst_9 {dimension_numbers = #tpu.dot_dimension_numbers<[1], [0], [0], [1], [0, 0, 1, 1], [], []>} : vector<10x128xf32>, vector<128x128xf32>, vector<10x128xf32> -> vector<10x128xf32>
    %c0_10 = arith.constant 0 : index
    %c0_11 = arith.constant 0 : index
    %22 = vector.load %arg4[%c0_10, %c0_11] : memref<32x128xf32, #tpu.memory_space<vmem>>, vector<1x128xf32>
    %23 = vector.broadcast %22 : vector<1x128xf32> to vector<10x128xf32>
    %24 = arith.addf %21, %23 : vector<10x128xf32>
    %c4 = arith.constant 4 : index
    %c0_12 = arith.constant 0 : index
    %c0_13 = arith.constant 0 : index
    %25 = vector.load %arg3[%c4, %c0_12, %c0_13] : memref<20x128x128xf32, #tpu.memory_space<vmem>>, vector<1x128x128xf32>
    %26 = vector.shape_cast %25 : vector<1x128x128xf32> to vector<128x128xf32>
    %cst_14 = arith.constant dense<0.000000e+00> : vector<10x128xf32>
    %27 = tpu.matmul %18, %26, %cst_14 {dimension_numbers = #tpu.dot_dimension_numbers<[1], [0], [0], [1], [0, 0, 1, 1], [], []>} : vector<10x128xf32>, vector<128x128xf32>, vector<10x128xf32> -> vector<10x128xf32>
    %c1 = arith.constant 1 : index
    %c0_15 = arith.constant 0 : index
    %28 = vector.load %arg4[%c1, %c0_15] : memref<32x128xf32, #tpu.memory_space<vmem>>, vector<1x128xf32>
    %29 = vector.broadcast %28 : vector<1x128xf32> to vector<10x128xf32>
    %30 = arith.addf %27, %29 : vector<10x128xf32>
    %c5 = arith.constant 5 : index
    %c0_16 = arith.constant 0 : index
    %c0_17 = arith.constant 0 : index
    %31 = vector.load %arg3[%c5, %c0_16, %c0_17] : memref<20x128x128xf32, #tpu.memory_space<vmem>>, vector<1x128x128xf32>
    %32 = vector.shape_cast %31 : vector<1x128x128xf32> to vector<128x128xf32>
    %cst_18 = arith.constant dense<0.000000e+00> : vector<10x128xf32>
    %33 = tpu.matmul %18, %32, %cst_18 {dimension_numbers = #tpu.dot_dimension_numbers<[1], [0], [0], [1], [0, 0, 1, 1], [], []>} : vector<10x128xf32>, vector<128x128xf32>, vector<10x128xf32> -> vector<10x128xf32>
    %c2_19 = arith.constant 2 : index
    %c0_20 = arith.constant 0 : index
    %34 = vector.load %arg4[%c2_19, %c0_20] : memref<32x128xf32, #tpu.memory_space<vmem>>, vector<1x128xf32>
    %35 = vector.broadcast %34 : vector<1x128xf32> to vector<10x128xf32>
    %36 = arith.addf %33, %35 : vector<10x128xf32>
    %cst_21 = arith.constant 0.176776692 : f32
    %37 = vector.broadcast %cst_21 : f32 to vector<10x128xf32>
    %38 = arith.mulf %24, %37 : vector<10x128xf32>
    %cst_22 = arith.constant dense<0.000000e+00> : vector<10x10xf32>
    %39 = tpu.matmul %38, %30, %cst_22 {dimension_numbers = #tpu.dot_dimension_numbers<[1], [1], [0], [0], [0, 0, 1, 0], [], []>} : vector<10x128xf32>, vector<10x128xf32>, vector<10x10xf32> -> vector<10x10xf32>
    %cst_23 = arith.constant dense<0xFF800000> : vector<10xf32>
    %40 = vector.multi_reduction <maximumf>, %39, %cst_23 [1] : vector<10x10xf32> to vector<10xf32>
    %41 = vector.shape_cast %40 : vector<10xf32> to vector<10x1xf32>
    %42 = vector.broadcast %41 : vector<10x1xf32> to vector<10x10xf32>
    %43 = arith.subf %39, %42 : vector<10x10xf32>
    %44 = math.exp %43 : vector<10x10xf32>
    %cst_24 = arith.constant dense<0.000000e+00> : vector<10xf32>
    %45 = vector.multi_reduction <add>, %44, %cst_24 [1] : vector<10x10xf32> to vector<10xf32>
    %46 = vector.shape_cast %45 : vector<10xf32> to vector<10x1xf32>
    %47 = tpu.reciprocal %46 {approx = true} : vector<10x1xf32> -> vector<10x1xf32>
    %48 = vector.broadcast %47 : vector<10x1xf32> to vector<10x10xf32>
    %49 = arith.mulf %44, %48 : vector<10x10xf32>
    %cst_25 = arith.constant dense<0.000000e+00> : vector<10x128xf32>
    %50 = tpu.matmul %49, %36, %cst_25 {dimension_numbers = #tpu.dot_dimension_numbers<[1], [0], [0], [1], [0, 0, 1, 1], [], []>} : vector<10x10xf32>, vector<10x128xf32>, vector<10x128xf32> -> vector<10x128xf32>
    %c6 = arith.constant 6 : index
    %c0_26 = arith.constant 0 : index
    %c0_27 = arith.constant 0 : index
    %51 = vector.load %arg3[%c6, %c0_26, %c0_27] : memref<20x128x128xf32, #tpu.memory_space<vmem>>, vector<1x128x128xf32>
    %52 = vector.shape_cast %51 : vector<1x128x128xf32> to vector<128x128xf32>
    %cst_28 = arith.constant dense<0.000000e+00> : vector<10x128xf32>
    %53 = tpu.matmul %50, %52, %cst_28 {dimension_numbers = #tpu.dot_dimension_numbers<[1], [0], [0], [1], [0, 0, 1, 1], [], []>} : vector<10x128xf32>, vector<128x128xf32>, vector<10x128xf32> -> vector<10x128xf32>
    %c3_29 = arith.constant 3 : index
    %c0_30 = arith.constant 0 : index
    %54 = vector.load %arg4[%c3_29, %c0_30] : memref<32x128xf32, #tpu.memory_space<vmem>>, vector<1x128xf32>
    %55 = vector.broadcast %54 : vector<1x128xf32> to vector<10x128xf32>
    %56 = arith.addf %53, %55 : vector<10x128xf32>
    %57 = arith.addf %18, %56 : vector<10x128xf32>
    %cst_31 = arith.constant dense<0.000000e+00> : vector<10xf32>
    %58 = vector.multi_reduction <add>, %57, %cst_31 [1] : vector<10x128xf32> to vector<10xf32>
    %59 = vector.shape_cast %58 : vector<10xf32> to vector<10x1xf32>
    %cst_32 = arith.constant 3.125000e-02 : f32
    %60 = vector.broadcast %cst_32 : f32 to vector<10x1xf32>
    %61 = arith.mulf %59, %60 : vector<10x1xf32>
    %62 = vector.broadcast %61 : vector<10x1xf32> to vector<10x128xf32>
    %63 = arith.subf %57, %62 : vector<10x128xf32>
    %64 = vector.broadcast %4 : vector<1x128xf32> to vector<10x128xf32>
    %65 = arith.mulf %63, %64 : vector<10x128xf32>
    %66 = arith.mulf %65, %65 : vector<10x128xf32>
    %cst_33 = arith.constant dense<0.000000e+00> : vector<10xf32>
    %67 = vector.multi_reduction <add>, %66, %cst_33 [1] : vector<10x128xf32> to vector<10xf32>
    %68 = vector.shape_cast %67 : vector<10xf32> to vector<10x1xf32>
    %cst_34 = arith.constant 3.125000e-02 : f32
    %69 = vector.broadcast %cst_34 : f32 to vector<10x1xf32>
    %70 = arith.mulf %68, %69 : vector<10x1xf32>
    %cst_35 = arith.constant 9.99999974E-6 : f32
    %71 = vector.broadcast %cst_35 : f32 to vector<10x1xf32>
    %72 = arith.addf %70, %71 : vector<10x1xf32>
    %73 = math.rsqrt %72 : vector<10x1xf32>
    %74 = vector.broadcast %73 : vector<10x1xf32> to vector<10x128xf32>
    %75 = arith.mulf %65, %74 : vector<10x128xf32>
    %c4_36 = arith.constant 4 : index
    %c0_37 = arith.constant 0 : index
    %76 = vector.load %arg4[%c4_36, %c0_37] : memref<32x128xf32, #tpu.memory_space<vmem>>, vector<1x128xf32>
    %77 = vector.broadcast %76 : vector<1x128xf32> to vector<10x128xf32>
    %78 = arith.mulf %75, %77 : vector<10x128xf32>
    %c5_38 = arith.constant 5 : index
    %c0_39 = arith.constant 0 : index
    %79 = vector.load %arg4[%c5_38, %c0_39] : memref<32x128xf32, #tpu.memory_space<vmem>>, vector<1x128xf32>
    %80 = vector.broadcast %79 : vector<1x128xf32> to vector<10x128xf32>
    %81 = arith.addf %78, %80 : vector<10x128xf32>
    %c7 = arith.constant 7 : index
    %c0_40 = arith.constant 0 : index
    %c0_41 = arith.constant 0 : index
    %82 = vector.load %arg3[%c7, %c0_40, %c0_41] : memref<20x128x128xf32, #tpu.memory_space<vmem>>, vector<1x128x128xf32>
    %83 = vector.shape_cast %82 : vector<1x128x128xf32> to vector<128x128xf32>
    %cst_42 = arith.constant dense<0.000000e+00> : vector<10x128xf32>
    %84 = tpu.matmul %81, %83, %cst_42 {dimension_numbers = #tpu.dot_dimension_numbers<[1], [0], [0], [1], [0, 0, 1, 1], [], []>} : vector<10x128xf32>, vector<128x128xf32>, vector<10x128xf32> -> vector<10x128xf32>
    %c6_43 = arith.constant 6 : index
    %c0_44 = arith.constant 0 : index
    %85 = vector.load %arg4[%c6_43, %c0_44] : memref<32x128xf32, #tpu.memory_space<vmem>>, vector<1x128xf32>
    %86 = vector.broadcast %85 : vector<1x128xf32> to vector<10x128xf32>
    %87 = arith.addf %84, %86 : vector<10x128xf32>
    %cst_45 = arith.constant 0.000000e+00 : f32
    %88 = vector.broadcast %cst_45 : f32 to vector<10x128xf32>
    %89 = arith.maximumf %87, %88 : vector<10x128xf32>
    %c8 = arith.constant 8 : index
    %c0_46 = arith.constant 0 : index
    %c0_47 = arith.constant 0 : index
    %90 = vector.load %arg3[%c8, %c0_46, %c0_47] : memref<20x128x128xf32, #tpu.memory_space<vmem>>, vector<1x128x128xf32>
    %91 = vector.shape_cast %90 : vector<1x128x128xf32> to vector<128x128xf32>
    %cst_48 = arith.constant dense<0.000000e+00> : vector<10x128xf32>
    %92 = tpu.matmul %89, %91, %cst_48 {dimension_numbers = #tpu.dot_dimension_numbers<[1], [0], [0], [1], [0, 0, 1, 1], [], []>} : vector<10x128xf32>, vector<128x128xf32>, vector<10x128xf32> -> vector<10x128xf32>
    %c7_49 = arith.constant 7 : index
    %c0_50 = arith.constant 0 : index
    %93 = vector.load %arg4[%c7_49, %c0_50] : memref<32x128xf32, #tpu.memory_space<vmem>>, vector<1x128xf32>
    %94 = vector.broadcast %93 : vector<1x128xf32> to vector<10x128xf32>
    %95 = arith.addf %92, %94 : vector<10x128xf32>
    %96 = arith.addf %81, %95 : vector<10x128xf32>
    %cst_51 = arith.constant dense<0.000000e+00> : vector<10xf32>
    %97 = vector.multi_reduction <add>, %96, %cst_51 [1] : vector<10x128xf32> to vector<10xf32>
    %98 = vector.shape_cast %97 : vector<10xf32> to vector<10x1xf32>
    %cst_52 = arith.constant 3.125000e-02 : f32
    %99 = vector.broadcast %cst_52 : f32 to vector<10x1xf32>
    %100 = arith.mulf %98, %99 : vector<10x1xf32>
    %101 = vector.broadcast %100 : vector<10x1xf32> to vector<10x128xf32>
    %102 = arith.subf %96, %101 : vector<10x128xf32>
    %103 = vector.broadcast %4 : vector<1x128xf32> to vector<10x128xf32>
    %104 = arith.mulf %102, %103 : vector<10x128xf32>
    %105 = arith.mulf %104, %104 : vector<10x128xf32>
    %cst_53 = arith.constant dense<0.000000e+00> : vector<10xf32>
    %106 = vector.multi_reduction <add>, %105, %cst_53 [1] : vector<10x128xf32> to vector<10xf32>
    %107 = vector.shape_cast %106 : vector<10xf32> to vector<10x1xf32>
    %cst_54 = arith.constant 3.125000e-02 : f32
    %108 = vector.broadcast %cst_54 : f32 to vector<10x1xf32>
    %109 = arith.mulf %107, %108 : vector<10x1xf32>
    %cst_55 = arith.constant 9.99999974E-6 : f32
    %110 = vector.broadcast %cst_55 : f32 to vector<10x1xf32>
    %111 = arith.addf %109, %110 : vector<10x1xf32>
    %112 = math.rsqrt %111 : vector<10x1xf32>
    %113 = vector.broadcast %112 : vector<10x1xf32> to vector<10x128xf32>
    %114 = arith.mulf %104, %113 : vector<10x128xf32>
    %c8_56 = arith.constant 8 : index
    %c0_57 = arith.constant 0 : index
    %115 = vector.load %arg4[%c8_56, %c0_57] : memref<32x128xf32, #tpu.memory_space<vmem>>, vector<1x128xf32>
    %116 = vector.broadcast %115 : vector<1x128xf32> to vector<10x128xf32>
    %117 = arith.mulf %114, %116 : vector<10x128xf32>
    %c9 = arith.constant 9 : index
    %c0_58 = arith.constant 0 : index
    %118 = vector.load %arg4[%c9, %c0_58] : memref<32x128xf32, #tpu.memory_space<vmem>>, vector<1x128xf32>
    %119 = vector.broadcast %118 : vector<1x128xf32> to vector<10x128xf32>
    %120 = arith.addf %117, %119 : vector<10x128xf32>
    %121 = tpu.iota {dimensions = array<i32: 1>} : vector<8x128xi32>
    %c0_59 = arith.constant 0 : index
    %c0_60 = arith.constant 0 : index
    %c0_61 = arith.constant 0 : index
    %122 = vector.load %arg2[%c0_59, %c0_60, %c0_61] : memref<1x8x1xi32, #tpu.memory_space<vmem>>, vector<1x8x1xi32>
    %123 = vector.shape_cast %122 : vector<1x8x1xi32> to vector<8x1xi32>
    %124 = vector.broadcast %123 : vector<8x1xi32> to vector<8x128xi32>
    %125 = arith.cmpi eq, %124, %121 : vector<8x128xi32>
    %126 = arith.extui %125 : vector<8x128xi1> to vector<8x128xi32>
    %127 = arith.sitofp %126 : vector<8x128xi32> to vector<8x128xf32>
    %c1_62 = arith.constant 1 : index
    %c0_63 = arith.constant 0 : index
    %c0_64 = arith.constant 0 : index
    %128 = vector.load %arg3[%c1_62, %c0_63, %c0_64] : memref<20x128x128xf32, #tpu.memory_space<vmem>>, vector<1x128x128xf32>
    %129 = vector.shape_cast %128 : vector<1x128x128xf32> to vector<128x128xf32>
    %cst_65 = arith.constant dense<0.000000e+00> : vector<8x128xf32>
    %130 = tpu.matmul %127, %129, %cst_65 {dimension_numbers = #tpu.dot_dimension_numbers<[1], [0], [0], [1], [0, 0, 1, 1], [], []>} : vector<8x128xf32>, vector<128x128xf32>, vector<8x128xf32> -> vector<8x128xf32>
    %c2_66 = arith.constant 2 : index
    %c0_67 = arith.constant 0 : index
    %c0_68 = arith.constant 0 : index
    %131 = vector.load %arg3[%c2_66, %c0_67, %c0_68] : memref<20x128x128xf32, #tpu.memory_space<vmem>>, vector<1x128x128xf32>
    %132 = vector.shape_cast %131 : vector<1x128x128xf32> to vector<128x128xf32>
    %133 = vector.extract_strided_slice %132 {offsets = [0, 0], sizes = [8, 128], strides = [1, 1]} : vector<128x128xf32> to vector<8x128xf32>
    %134 = arith.addf %130, %133 : vector<8x128xf32>
    %135 = tpu.iota {dimensions = array<i32: 0>} : vector<8x8xi32>
    %136 = tpu.iota {dimensions = array<i32: 1>} : vector<8x8xi32>
    %137 = arith.cmpi sle, %136, %135 : vector<8x8xi32>
    %c9_69 = arith.constant 9 : index
    %c0_70 = arith.constant 0 : index
    %c0_71 = arith.constant 0 : index
    %138 = vector.load %arg3[%c9_69, %c0_70, %c0_71] : memref<20x128x128xf32, #tpu.memory_space<vmem>>, vector<1x128x128xf32>
    %139 = vector.shape_cast %138 : vector<1x128x128xf32> to vector<128x128xf32>
    %cst_72 = arith.constant dense<0.000000e+00> : vector<8x128xf32>
    %140 = tpu.matmul %134, %139, %cst_72 {dimension_numbers = #tpu.dot_dimension_numbers<[1], [0], [0], [1], [0, 0, 1, 1], [], []>} : vector<8x128xf32>, vector<128x128xf32>, vector<8x128xf32> -> vector<8x128xf32>
    %c10 = arith.constant 10 : index
    %c0_73 = arith.constant 0 : index
    %141 = vector.load %arg4[%c10, %c0_73] : memref<32x128xf32, #tpu.memory_space<vmem>>, vector<1x128xf32>
    %142 = vector.broadcast %141 : vector<1x128xf32> to vector<8x128xf32>
    %143 = arith.addf %140, %142 : vector<8x128xf32>
    %c10_74 = arith.constant 10 : index
    %c0_75 = arith.constant 0 : index
    %c0_76 = arith.constant 0 : index
    %144 = vector.load %arg3[%c10_74, %c0_75, %c0_76] : memref<20x128x128xf32, #tpu.memory_space<vmem>>, vector<1x128x128xf32>
    %145 = vector.shape_cast %144 : vector<1x128x128xf32> to vector<128x128xf32>
    %cst_77 = arith.constant dense<0.000000e+00> : vector<8x128xf32>
    %146 = tpu.matmul %134, %145, %cst_77 {dimension_numbers = #tpu.dot_dimension_numbers<[1], [0], [0], [1], [0, 0, 1, 1], [], []>} : vector<8x128xf32>, vector<128x128xf32>, vector<8x128xf32> -> vector<8x128xf32>
    %c11 = arith.constant 11 : index
    %c0_78 = arith.constant 0 : index
    %147 = vector.load %arg4[%c11, %c0_78] : memref<32x128xf32, #tpu.memory_space<vmem>>, vector<1x128xf32>
    %148 = vector.broadcast %147 : vector<1x128xf32> to vector<8x128xf32>
    %149 = arith.addf %146, %148 : vector<8x128xf32>
    %c11_79 = arith.constant 11 : index
    %c0_80 = arith.constant 0 : index
    %c0_81 = arith.constant 0 : index
    %150 = vector.load %arg3[%c11_79, %c0_80, %c0_81] : memref<20x128x128xf32, #tpu.memory_space<vmem>>, vector<1x128x128xf32>
    %151 = vector.shape_cast %150 : vector<1x128x128xf32> to vector<128x128xf32>
    %cst_82 = arith.constant dense<0.000000e+00> : vector<8x128xf32>
    %152 = tpu.matmul %134, %151, %cst_82 {dimension_numbers = #tpu.dot_dimension_numbers<[1], [0], [0], [1], [0, 0, 1, 1], [], []>} : vector<8x128xf32>, vector<128x128xf32>, vector<8x128xf32> -> vector<8x128xf32>
    %c12 = arith.constant 12 : index
    %c0_83 = arith.constant 0 : index
    %153 = vector.load %arg4[%c12, %c0_83] : memref<32x128xf32, #tpu.memory_space<vmem>>, vector<1x128xf32>
    %154 = vector.broadcast %153 : vector<1x128xf32> to vector<8x128xf32>
    %155 = arith.addf %152, %154 : vector<8x128xf32>
    %cst_84 = arith.constant 0.176776692 : f32
    %156 = vector.broadcast %cst_84 : f32 to vector<8x128xf32>
    %157 = arith.mulf %143, %156 : vector<8x128xf32>
    %cst_85 = arith.constant dense<0.000000e+00> : vector<8x8xf32>
    %158 = tpu.matmul %157, %149, %cst_85 {dimension_numbers = #tpu.dot_dimension_numbers<[1], [1], [0], [0], [0, 0, 1, 0], [], []>} : vector<8x128xf32>, vector<8x128xf32>, vector<8x8xf32> -> vector<8x8xf32>
    %cst_86 = arith.constant -1.000000e+30 : f32
    %159 = vector.broadcast %cst_86 : f32 to vector<8x8xf32>
    %160 = arith.select %137, %158, %159 : vector<8x8xi1>, vector<8x8xf32>
    %cst_87 = arith.constant dense<0xFF800000> : vector<8xf32>
    %161 = vector.multi_reduction <maximumf>, %160, %cst_87 [1] : vector<8x8xf32> to vector<8xf32>
    %162 = vector.shape_cast %161 : vector<8xf32> to vector<8x1xf32>
    %163 = vector.broadcast %162 : vector<8x1xf32> to vector<8x8xf32>
    %164 = arith.subf %160, %163 : vector<8x8xf32>
    %165 = math.exp %164 : vector<8x8xf32>
    %cst_88 = arith.constant dense<0.000000e+00> : vector<8xf32>
    %166 = vector.multi_reduction <add>, %165, %cst_88 [1] : vector<8x8xf32> to vector<8xf32>
    %167 = vector.shape_cast %166 : vector<8xf32> to vector<8x1xf32>
    %168 = tpu.reciprocal %167 {approx = true} : vector<8x1xf32> -> vector<8x1xf32>
    %169 = vector.broadcast %168 : vector<8x1xf32> to vector<8x8xf32>
    %170 = arith.mulf %165, %169 : vector<8x8xf32>
    %cst_89 = arith.constant dense<0.000000e+00> : vector<8x128xf32>
    %171 = tpu.matmul %170, %155, %cst_89 {dimension_numbers = #tpu.dot_dimension_numbers<[1], [0], [0], [1], [0, 0, 1, 1], [], []>} : vector<8x8xf32>, vector<8x128xf32>, vector<8x128xf32> -> vector<8x128xf32>
    %c12_90 = arith.constant 12 : index
    %c0_91 = arith.constant 0 : index
    %c0_92 = arith.constant 0 : index
    %172 = vector.load %arg3[%c12_90, %c0_91, %c0_92] : memref<20x128x128xf32, #tpu.memory_space<vmem>>, vector<1x128x128xf32>
    %173 = vector.shape_cast %172 : vector<1x128x128xf32> to vector<128x128xf32>
    %cst_93 = arith.constant dense<0.000000e+00> : vector<8x128xf32>
    %174 = tpu.matmul %171, %173, %cst_93 {dimension_numbers = #tpu.dot_dimension_numbers<[1], [0], [0], [1], [0, 0, 1, 1], [], []>} : vector<8x128xf32>, vector<128x128xf32>, vector<8x128xf32> -> vector<8x128xf32>
    %c13 = arith.constant 13 : index
    %c0_94 = arith.constant 0 : index
    %175 = vector.load %arg4[%c13, %c0_94] : memref<32x128xf32, #tpu.memory_space<vmem>>, vector<1x128xf32>
    %176 = vector.broadcast %175 : vector<1x128xf32> to vector<8x128xf32>
    %177 = arith.addf %174, %176 : vector<8x128xf32>
    %178 = arith.addf %134, %177 : vector<8x128xf32>
    %cst_95 = arith.constant dense<0.000000e+00> : vector<8xf32>
    %179 = vector.multi_reduction <add>, %178, %cst_95 [1] : vector<8x128xf32> to vector<8xf32>
    %180 = vector.shape_cast %179 : vector<8xf32> to vector<8x1xf32>
    %cst_96 = arith.constant 3.125000e-02 : f32
    %181 = vector.broadcast %cst_96 : f32 to vector<8x1xf32>
    %182 = arith.mulf %180, %181 : vector<8x1xf32>
    %183 = vector.broadcast %182 : vector<8x1xf32> to vector<8x128xf32>
    %184 = arith.subf %178, %183 : vector<8x128xf32>
    %185 = vector.broadcast %4 : vector<1x128xf32> to vector<8x128xf32>
    %186 = arith.mulf %184, %185 : vector<8x128xf32>
    %187 = arith.mulf %186, %186 : vector<8x128xf32>
    %cst_97 = arith.constant dense<0.000000e+00> : vector<8xf32>
    %188 = vector.multi_reduction <add>, %187, %cst_97 [1] : vector<8x128xf32> to vector<8xf32>
    %189 = vector.shape_cast %188 : vector<8xf32> to vector<8x1xf32>
    %cst_98 = arith.constant 3.125000e-02 : f32
    %190 = vector.broadcast %cst_98 : f32 to vector<8x1xf32>
    %191 = arith.mulf %189, %190 : vector<8x1xf32>
    %cst_99 = arith.constant 9.99999974E-6 : f32
    %192 = vector.broadcast %cst_99 : f32 to vector<8x1xf32>
    %193 = arith.addf %191, %192 : vector<8x1xf32>
    %194 = math.rsqrt %193 : vector<8x1xf32>
    %195 = vector.broadcast %194 : vector<8x1xf32> to vector<8x128xf32>
    %196 = arith.mulf %186, %195 : vector<8x128xf32>
    %c14 = arith.constant 14 : index
    %c0_100 = arith.constant 0 : index
    %197 = vector.load %arg4[%c14, %c0_100] : memref<32x128xf32, #tpu.memory_space<vmem>>, vector<1x128xf32>
    %198 = vector.broadcast %197 : vector<1x128xf32> to vector<8x128xf32>
    %199 = arith.mulf %196, %198 : vector<8x128xf32>
    %c15 = arith.constant 15 : index
    %c0_101 = arith.constant 0 : index
    %200 = vector.load %arg4[%c15, %c0_101] : memref<32x128xf32, #tpu.memory_space<vmem>>, vector<1x128xf32>
    %201 = vector.broadcast %200 : vector<1x128xf32> to vector<8x128xf32>
    %202 = arith.addf %199, %201 : vector<8x128xf32>
    %c13_102 = arith.constant 13 : index
    %c0_103 = arith.constant 0 : index
    %c0_104 = arith.constant 0 : index
    %203 = vector.load %arg3[%c13_102, %c0_103, %c0_104] : memref<20x128x128xf32, #tpu.memory_space<vmem>>, vector<1x128x128xf32>
    %204 = vector.shape_cast %203 : vector<1x128x128xf32> to vector<128x128xf32>
    %cst_105 = arith.constant dense<0.000000e+00> : vector<8x128xf32>
    %205 = tpu.matmul %202, %204, %cst_105 {dimension_numbers = #tpu.dot_dimension_numbers<[1], [0], [0], [1], [0, 0, 1, 1], [], []>} : vector<8x128xf32>, vector<128x128xf32>, vector<8x128xf32> -> vector<8x128xf32>
    %c16 = arith.constant 16 : index
    %c0_106 = arith.constant 0 : index
    %206 = vector.load %arg4[%c16, %c0_106] : memref<32x128xf32, #tpu.memory_space<vmem>>, vector<1x128xf32>
    %207 = vector.broadcast %206 : vector<1x128xf32> to vector<8x128xf32>
    %208 = arith.addf %205, %207 : vector<8x128xf32>
    %c14_107 = arith.constant 14 : index
    %c0_108 = arith.constant 0 : index
    %c0_109 = arith.constant 0 : index
    %209 = vector.load %arg3[%c14_107, %c0_108, %c0_109] : memref<20x128x128xf32, #tpu.memory_space<vmem>>, vector<1x128x128xf32>
    %210 = vector.shape_cast %209 : vector<1x128x128xf32> to vector<128x128xf32>
    %cst_110 = arith.constant dense<0.000000e+00> : vector<10x128xf32>
    %211 = tpu.matmul %120, %210, %cst_110 {dimension_numbers = #tpu.dot_dimension_numbers<[1], [0], [0], [1], [0, 0, 1, 1], [], []>} : vector<10x128xf32>, vector<128x128xf32>, vector<10x128xf32> -> vector<10x128xf32>
    %c17 = arith.constant 17 : index
    %c0_111 = arith.constant 0 : index
    %212 = vector.load %arg4[%c17, %c0_111] : memref<32x128xf32, #tpu.memory_space<vmem>>, vector<1x128xf32>
    %213 = vector.broadcast %212 : vector<1x128xf32> to vector<10x128xf32>
    %214 = arith.addf %211, %213 : vector<10x128xf32>
    %c15_112 = arith.constant 15 : index
    %c0_113 = arith.constant 0 : index
    %c0_114 = arith.constant 0 : index
    %215 = vector.load %arg3[%c15_112, %c0_113, %c0_114] : memref<20x128x128xf32, #tpu.memory_space<vmem>>, vector<1x128x128xf32>
    %216 = vector.shape_cast %215 : vector<1x128x128xf32> to vector<128x128xf32>
    %cst_115 = arith.constant dense<0.000000e+00> : vector<10x128xf32>
    %217 = tpu.matmul %120, %216, %cst_115 {dimension_numbers = #tpu.dot_dimension_numbers<[1], [0], [0], [1], [0, 0, 1, 1], [], []>} : vector<10x128xf32>, vector<128x128xf32>, vector<10x128xf32> -> vector<10x128xf32>
    %c18 = arith.constant 18 : index
    %c0_116 = arith.constant 0 : index
    %218 = vector.load %arg4[%c18, %c0_116] : memref<32x128xf32, #tpu.memory_space<vmem>>, vector<1x128xf32>
    %219 = vector.broadcast %218 : vector<1x128xf32> to vector<10x128xf32>
    %220 = arith.addf %217, %219 : vector<10x128xf32>
    %cst_117 = arith.constant 0.176776692 : f32
    %221 = vector.broadcast %cst_117 : f32 to vector<8x128xf32>
    %222 = arith.mulf %208, %221 : vector<8x128xf32>
    %cst_118 = arith.constant dense<0.000000e+00> : vector<8x10xf32>
    %223 = tpu.matmul %222, %214, %cst_118 {dimension_numbers = #tpu.dot_dimension_numbers<[1], [1], [0], [0], [0, 0, 1, 0], [], []>} : vector<8x128xf32>, vector<10x128xf32>, vector<8x10xf32> -> vector<8x10xf32>
    %cst_119 = arith.constant dense<0xFF800000> : vector<8xf32>
    %224 = vector.multi_reduction <maximumf>, %223, %cst_119 [1] : vector<8x10xf32> to vector<8xf32>
    %225 = vector.shape_cast %224 : vector<8xf32> to vector<8x1xf32>
    %226 = vector.broadcast %225 : vector<8x1xf32> to vector<8x10xf32>
    %227 = arith.subf %223, %226 : vector<8x10xf32>
    %228 = math.exp %227 : vector<8x10xf32>
    %cst_120 = arith.constant dense<0.000000e+00> : vector<8xf32>
    %229 = vector.multi_reduction <add>, %228, %cst_120 [1] : vector<8x10xf32> to vector<8xf32>
    %230 = vector.shape_cast %229 : vector<8xf32> to vector<8x1xf32>
    %231 = tpu.reciprocal %230 {approx = true} : vector<8x1xf32> -> vector<8x1xf32>
    %232 = vector.broadcast %231 : vector<8x1xf32> to vector<8x10xf32>
    %233 = arith.mulf %228, %232 : vector<8x10xf32>
    %cst_121 = arith.constant dense<0.000000e+00> : vector<8x128xf32>
    %234 = tpu.matmul %233, %220, %cst_121 {dimension_numbers = #tpu.dot_dimension_numbers<[1], [0], [0], [1], [0, 0, 1, 1], [], []>} : vector<8x10xf32>, vector<10x128xf32>, vector<8x128xf32> -> vector<8x128xf32>
    %c16_122 = arith.constant 16 : index
    %c0_123 = arith.constant 0 : index
    %c0_124 = arith.constant 0 : index
    %235 = vector.load %arg3[%c16_122, %c0_123, %c0_124] : memref<20x128x128xf32, #tpu.memory_space<vmem>>, vector<1x128x128xf32>
    %236 = vector.shape_cast %235 : vector<1x128x128xf32> to vector<128x128xf32>
    %cst_125 = arith.constant dense<0.000000e+00> : vector<8x128xf32>
    %237 = tpu.matmul %234, %236, %cst_125 {dimension_numbers = #tpu.dot_dimension_numbers<[1], [0], [0], [1], [0, 0, 1, 1], [], []>} : vector<8x128xf32>, vector<128x128xf32>, vector<8x128xf32> -> vector<8x128xf32>
    %c19 = arith.constant 19 : index
    %c0_126 = arith.constant 0 : index
    %238 = vector.load %arg4[%c19, %c0_126] : memref<32x128xf32, #tpu.memory_space<vmem>>, vector<1x128xf32>
    %239 = vector.broadcast %238 : vector<1x128xf32> to vector<8x128xf32>
    %240 = arith.addf %237, %239 : vector<8x128xf32>
    %241 = arith.addf %202, %240 : vector<8x128xf32>
    %cst_127 = arith.constant dense<0.000000e+00> : vector<8xf32>
    %242 = vector.multi_reduction <add>, %241, %cst_127 [1] : vector<8x128xf32> to vector<8xf32>
    %243 = vector.shape_cast %242 : vector<8xf32> to vector<8x1xf32>
    %cst_128 = arith.constant 3.125000e-02 : f32
    %244 = vector.broadcast %cst_128 : f32 to vector<8x1xf32>
    %245 = arith.mulf %243, %244 : vector<8x1xf32>
    %246 = vector.broadcast %245 : vector<8x1xf32> to vector<8x128xf32>
    %247 = arith.subf %241, %246 : vector<8x128xf32>
    %248 = vector.broadcast %4 : vector<1x128xf32> to vector<8x128xf32>
    %249 = arith.mulf %247, %248 : vector<8x128xf32>
    %250 = arith.mulf %249, %249 : vector<8x128xf32>
    %cst_129 = arith.constant dense<0.000000e+00> : vector<8xf32>
    %251 = vector.multi_reduction <add>, %250, %cst_129 [1] : vector<8x128xf32> to vector<8xf32>
    %252 = vector.shape_cast %251 : vector<8xf32> to vector<8x1xf32>
    %cst_130 = arith.constant 3.125000e-02 : f32
    %253 = vector.broadcast %cst_130 : f32 to vector<8x1xf32>
    %254 = arith.mulf %252, %253 : vector<8x1xf32>
    %cst_131 = arith.constant 9.99999974E-6 : f32
    %255 = vector.broadcast %cst_131 : f32 to vector<8x1xf32>
    %256 = arith.addf %254, %255 : vector<8x1xf32>
    %257 = math.rsqrt %256 : vector<8x1xf32>
    %258 = vector.broadcast %257 : vector<8x1xf32> to vector<8x128xf32>
    %259 = arith.mulf %249, %258 : vector<8x128xf32>
    %c20 = arith.constant 20 : index
    %c0_132 = arith.constant 0 : index
    %260 = vector.load %arg4[%c20, %c0_132] : memref<32x128xf32, #tpu.memory_space<vmem>>, vector<1x128xf32>
    %261 = vector.broadcast %260 : vector<1x128xf32> to vector<8x128xf32>
    %262 = arith.mulf %259, %261 : vector<8x128xf32>
    %c21 = arith.constant 21 : index
    %c0_133 = arith.constant 0 : index
    %263 = vector.load %arg4[%c21, %c0_133] : memref<32x128xf32, #tpu.memory_space<vmem>>, vector<1x128xf32>
    %264 = vector.broadcast %263 : vector<1x128xf32> to vector<8x128xf32>
    %265 = arith.addf %262, %264 : vector<8x128xf32>
    %c17_134 = arith.constant 17 : index
    %c0_135 = arith.constant 0 : index
    %c0_136 = arith.constant 0 : index
    %266 = vector.load %arg3[%c17_134, %c0_135, %c0_136] : memref<20x128x128xf32, #tpu.memory_space<vmem>>, vector<1x128x128xf32>
    %267 = vector.shape_cast %266 : vector<1x128x128xf32> to vector<128x128xf32>
    %cst_137 = arith.constant dense<0.000000e+00> : vector<8x128xf32>
    %268 = tpu.matmul %265, %267, %cst_137 {dimension_numbers = #tpu.dot_dimension_numbers<[1], [0], [0], [1], [0, 0, 1, 1], [], []>} : vector<8x128xf32>, vector<128x128xf32>, vector<8x128xf32> -> vector<8x128xf32>
    %c22 = arith.constant 22 : index
    %c0_138 = arith.constant 0 : index
    %269 = vector.load %arg4[%c22, %c0_138] : memref<32x128xf32, #tpu.memory_space<vmem>>, vector<1x128xf32>
    %270 = vector.broadcast %269 : vector<1x128xf32> to vector<8x128xf32>
    %271 = arith.addf %268, %270 : vector<8x128xf32>
    %cst_139 = arith.constant 0.000000e+00 : f32
    %272 = vector.broadcast %cst_139 : f32 to vector<8x128xf32>
    %273 = arith.maximumf %271, %272 : vector<8x128xf32>
    %c18_140 = arith.constant 18 : index
    %c0_141 = arith.constant 0 : index
    %c0_142 = arith.constant 0 : index
    %274 = vector.load %arg3[%c18_140, %c0_141, %c0_142] : memref<20x128x128xf32, #tpu.memory_space<vmem>>, vector<1x128x128xf32>
    %275 = vector.shape_cast %274 : vector<1x128x128xf32> to vector<128x128xf32>
    %cst_143 = arith.constant dense<0.000000e+00> : vector<8x128xf32>
    %276 = tpu.matmul %273, %275, %cst_143 {dimension_numbers = #tpu.dot_dimension_numbers<[1], [0], [0], [1], [0, 0, 1, 1], [], []>} : vector<8x128xf32>, vector<128x128xf32>, vector<8x128xf32> -> vector<8x128xf32>
    %c23 = arith.constant 23 : index
    %c0_144 = arith.constant 0 : index
    %277 = vector.load %arg4[%c23, %c0_144] : memref<32x128xf32, #tpu.memory_space<vmem>>, vector<1x128xf32>
    %278 = vector.broadcast %277 : vector<1x128xf32> to vector<8x128xf32>
    %279 = arith.addf %276, %278 : vector<8x128xf32>
    %280 = arith.addf %265, %279 : vector<8x128xf32>
    %cst_145 = arith.constant dense<0.000000e+00> : vector<8xf32>
    %281 = vector.multi_reduction <add>, %280, %cst_145 [1] : vector<8x128xf32> to vector<8xf32>
    %282 = vector.shape_cast %281 : vector<8xf32> to vector<8x1xf32>
    %cst_146 = arith.constant 3.125000e-02 : f32
    %283 = vector.broadcast %cst_146 : f32 to vector<8x1xf32>
    %284 = arith.mulf %282, %283 : vector<8x1xf32>
    %285 = vector.broadcast %284 : vector<8x1xf32> to vector<8x128xf32>
    %286 = arith.subf %280, %285 : vector<8x128xf32>
    %287 = vector.broadcast %4 : vector<1x128xf32> to vector<8x128xf32>
    %288 = arith.mulf %286, %287 : vector<8x128xf32>
    %289 = arith.mulf %288, %288 : vector<8x128xf32>
    %cst_147 = arith.constant dense<0.000000e+00> : vector<8xf32>
    %290 = vector.multi_reduction <add>, %289, %cst_147 [1] : vector<8x128xf32> to vector<8xf32>
    %291 = vector.shape_cast %290 : vector<8xf32> to vector<8x1xf32>
    %cst_148 = arith.constant 3.125000e-02 : f32
    %292 = vector.broadcast %cst_148 : f32 to vector<8x1xf32>
    %293 = arith.mulf %291, %292 : vector<8x1xf32>
    %cst_149 = arith.constant 9.99999974E-6 : f32
    %294 = vector.broadcast %cst_149 : f32 to vector<8x1xf32>
    %295 = arith.addf %293, %294 : vector<8x1xf32>
    %296 = math.rsqrt %295 : vector<8x1xf32>
    %297 = vector.broadcast %296 : vector<8x1xf32> to vector<8x128xf32>
    %298 = arith.mulf %288, %297 : vector<8x128xf32>
    %c24 = arith.constant 24 : index
    %c0_150 = arith.constant 0 : index
    %299 = vector.load %arg4[%c24, %c0_150] : memref<32x128xf32, #tpu.memory_space<vmem>>, vector<1x128xf32>
    %300 = vector.broadcast %299 : vector<1x128xf32> to vector<8x128xf32>
    %301 = arith.mulf %298, %300 : vector<8x128xf32>
    %c25 = arith.constant 25 : index
    %c0_151 = arith.constant 0 : index
    %302 = vector.load %arg4[%c25, %c0_151] : memref<32x128xf32, #tpu.memory_space<vmem>>, vector<1x128xf32>
    %303 = vector.broadcast %302 : vector<1x128xf32> to vector<8x128xf32>
    %304 = arith.addf %301, %303 : vector<8x128xf32>
    %c19_152 = arith.constant 19 : index
    %c0_153 = arith.constant 0 : index
    %c0_154 = arith.constant 0 : index
    %305 = vector.load %arg3[%c19_152, %c0_153, %c0_154] : memref<20x128x128xf32, #tpu.memory_space<vmem>>, vector<1x128x128xf32>
    %306 = vector.shape_cast %305 : vector<1x128x128xf32> to vector<128x128xf32>
    %cst_155 = arith.constant dense<0.000000e+00> : vector<8x128xf32>
    %307 = tpu.matmul %304, %306, %cst_155 {dimension_numbers = #tpu.dot_dimension_numbers<[1], [0], [0], [1], [0, 0, 1, 1], [], []>} : vector<8x128xf32>, vector<128x128xf32>, vector<8x128xf32> -> vector<8x128xf32>
    %c26 = arith.constant 26 : index
    %c0_156 = arith.constant 0 : index
    %308 = vector.load %arg4[%c26, %c0_156] : memref<32x128xf32, #tpu.memory_space<vmem>>, vector<1x128xf32>
    %309 = vector.broadcast %308 : vector<1x128xf32> to vector<8x128xf32>
    %310 = arith.addf %307, %309 : vector<8x128xf32>
    %c0_157 = arith.constant 0 : index
    %c0_158 = arith.constant 0 : index
    %c0_159 = arith.constant 0 : index
    %311 = vector.load %arg5[%c0_157, %c0_158, %c0_159] : memref<1x8x128xf32, #tpu.memory_space<vmem>>, vector<1x8x128xf32>
    %312 = vector.shape_cast %311 : vector<1x8x128xf32> to vector<8x128xf32>
    %313 = vector.shape_cast %310 : vector<8x128xf32> to vector<1x8x128xf32>
    tpu.vector_store %arg5[%c0_157, %c0_158, %c0_159], %313 {strides = array<i32>} : memref<1x8x128xf32, #tpu.memory_space<vmem>>, vector<1x8x128xf32>,
    return
  }
  func.func @transform_0(%arg0: i32) -> (i32, i32, i32) {
    %c0_i32 = arith.constant 0 : i32
    %c0_i32_0 = arith.constant 0 : i32
    %c0_i32_1 = arith.constant 0 : i32
    return %arg0, %c0_i32, %c0_i32_0 : i32, i32, i32
  }
  func.func @transform_1(%arg0: i32) -> (i32, i32, i32) {
    %c0_i32 = arith.constant 0 : i32
    %c0_i32_0 = arith.constant 0 : i32
    %c0_i32_1 = arith.constant 0 : i32
    return %arg0, %c0_i32, %c0_i32_0 : i32, i32, i32
  }
  func.func @transform_2(%arg0: i32) -> (i32, i32, i32) {
    %c0_i32 = arith.constant 0 : i32
    %c0_i32_0 = arith.constant 0 : i32
    %c0_i32_1 = arith.constant 0 : i32
    %c0_i32_2 = arith.constant 0 : i32
    return %c0_i32, %c0_i32_0, %c0_i32_1 : i32, i32, i32
  }
  func.func @transform_3(%arg0: i32) -> (i32, i32) {
    %c0_i32 = arith.constant 0 : i32
    %c0_i32_0 = arith.constant 0 : i32
    %c0_i32_1 = arith.constant 0 : i32
    return %c0_i32, %c0_i32_0 : i32, i32
  }
  func.func @transform_4(%arg0: i32) -> (i32, i32, i32) {
    %c0_i32 = arith.constant 0 : i32
    %c0_i32_0 = arith.constant 0 : i32
    %c0_i32_1 = arith.constant 0 : i32
    return %arg0, %c0_i32, %c0_i32_0 : i32, i32, i32
  }
}

</mosaic_0001>

<llo_original>
// kernel: transformer_forward.1
$region0: #{transformer_forward.1}
  #allocation0 [shape = 'u32[]', space=smem, size = 0x4, offset = 0x4, fixed_abs, tag = 'smem constant byte address 0x4 - core index']
  #allocation1 [shape = 'u32[144,128]{1,0:T(1,128)}', space=vmem, size = 0x12000, scoped, tag = 'internal scratch']
  %s0 = inlined_call_operand.vmem [shape: s32[2,10,1], index: 0, kind: input, shape index: {}]
  %s1 = inlined_call_operand.vmem [shape: s32[2,8,1], index: 1, kind: input, shape index: {}]
  %s2 = inlined_call_operand.vmem [shape: f32[20,128,128], index: 2, kind: input, shape index: {}]
  %s3 = inlined_call_operand.vmem [shape: f32[32,128], index: 3, kind: input, shape index: {}]
  %s4 = inlined_call_operand.vmem [shape: f32[2,8,128], index: 4, kind: output, shape index: {}]
  %s5 = sld [smem:[#allocation0]]
  $region49: #{transformer_forward.1} parent=0
    _
  %s7 = ssub.s32 1, %s5
  %s8 = scalar_select 0, %s7, %s5
  loop: start=0, step=1, limit=4
  $region2: #{transformer_forward.1} parent=0 // loop_pre_header
    _
  $region3: #{transformer_forward.1} parent=0 // loop_header
    %s10 = sphi 0, %s14
    %p11 = scmp.ge.s32.totalorder %s10, 4
    %s20 = sphi 0, %s22
    %s23 = sphi 0, %s20
    %s24 = sphi 0, %s23
    %s40 = sphi 0, %s24
    %s46 = sphi 0, %s48
    %s49 = sphi 0, %s46
    %s50 = sphi 0, %s49
    %s66 = sphi 0, %s50
    %s70 = sphi 0, %s70
    %s72 = sphi 0, %s70
    %s73 = sphi 0, %s72
    %s87 = sphi 0, %s73
    %s91 = sphi 0, %s91
    %s93 = sphi 0, %s91
    %s94 = sphi 0, %s93
    %s108 = sphi 0, %s94
    %s114 = sphi 0, %s116
    %s117 = sphi 0, %s114
    %s118 = sphi 0, %s117
    %s134 = sphi 0, %s118
  $region4: #{transformer_forward.1} parent=0 // loop_header_branch
    %13 = sbr.rel (%p11) target = $region8
  $region5: #{transformer_forward.1} parent=0 // loop_body
    %s15 = ssub.s32 %s10, 1
    %s16 = ssub.s32 %s10, 2
    %s17 = sadd.s32 %s10, 1
    %s18 = ssub.s32 %s10, %s17
    %p19 = scmp.eq.s32.totalorder %s18, 0
    %s21 = sadd.s32 %s20, 1
    %s22 = scalar_select %p19, %s20, %s21
    %p25 = pneg %p19
    %p26 = scmp.eq.s32.totalorder %s10, 1
    %p27 = por %p25, %p26
    %p28 = scmp.ne.s32.totalorder %s20, %s23
    %p29 = scmp.eq.s32.totalorder %s10, 0
    %p30 = por %p28, %p29
    %p31 = scmp.ne.s32.totalorder %s20, %s23
    %p32 = scmp.eq.s32.totalorder %s15, 1
    %p33 = por %p31, %p32
    %p34 = scmp.ne.s32.totalorder %s23, %s24
    %p35 = scmp.eq.s32.totalorder %s15, 0
    %p36 = por %p34, %p35
    %p37 = scmp.ne.s32.totalorder %s23, %s24
    %p38 = scmp.eq.s32.totalorder %s16, 1
    %p39 = por %p37, %p38
    %p41 = scmp.ne.s32.totalorder %s24, %s40
    %p42 = scmp.eq.s32.totalorder %s16, 0
    %p43 = por %p41, %p42
    %s44 = ssub.s32 %s10, %s17
    %p45 = scmp.eq.s32.totalorder %s44, 0
    %s47 = sadd.s32 %s46, 1
    %s48 = scalar_select %p45, %s46, %s47
    %p51 = pneg %p45
    %p52 = scmp.eq.s32.totalorder %s10, 1
    %p53 = por %p51, %p52
    %p54 = scmp.ne.s32.totalorder %s46, %s49
    %p55 = scmp.eq.s32.totalorder %s10, 0
    %p56 = por %p54, %p55
    %p57 = scmp.ne.s32.totalorder %s46, %s49
    %p58 = scmp.eq.s32.totalorder %s15, 1
    %p59 = por %p57, %p58
    %p60 = scmp.ne.s32.totalorder %s49, %s50
    %p61 = scmp.eq.s32.totalorder %s15, 0
    %p62 = por %p60, %p61
    %p63 = scmp.ne.s32.totalorder %s49, %s50
    %p64 = scmp.eq.s32.totalorder %s16, 1
    %p65 = por %p63, %p64
    %p67 = scmp.ne.s32.totalorder %s50, %s66
    %p68 = scmp.eq.s32.totalorder %s16, 0
    %p69 = por %p67, %p68
    %s71 = sadd.s32 %s70, 1
    %p74 = scmp.eq.s32.totalorder %s10, 1
    %p75 = scmp.ne.s32.totalorder %s70, %s72
    %p76 = scmp.eq.s32.totalorder %s10, 0
    %p77 = por %p75, %p76
    %p78 = scmp.ne.s32.totalorder %s70, %s72
    %p79 = scmp.eq.s32.totalorder %s15, 1
    %p80 = por %p78, %p79
    %p81 = scmp.ne.s32.totalorder %s72, %s73
    %p82 = scmp.eq.s32.totalorder %s15, 0
    %p83 = por %p81, %p82
    %p84 = scmp.ne.s32.totalorder %s72, %s73
    %p85 = scmp.eq.s32.totalorder %s16, 1
    %p86 = por %p84, %p85
    %p88 = scmp.ne.s32.totalorder %s73, %s87
    %p89 = scmp.eq.s32.totalorder %s16, 0
    %p90 = por %p88, %p89
    %s92 = sadd.s32 %s91, 1
    %p95 = scmp.eq.s32.totalorder %s10, 1
    %p96 = scmp.ne.s32.totalorder %s91, %s93
    %p97 = scmp.eq.s32.totalorder %s10, 0
    %p98 = por %p96, %p97
    %p99 = scmp.ne.s32.totalorder %s91, %s93
    %p100 = scmp.eq.s32.totalorder %s15, 1
    %p101 = por %p99, %p100
    %p102 = scmp.ne.s32.totalorder %s93, %s94
    %p103 = scmp.eq.s32.totalorder %s15, 0
    %p104 = por %p102, %p103
    %p105 = scmp.ne.s32.totalorder %s93, %s94
    %p106 = scmp.eq.s32.totalorder %s16, 1
    %p107 = por %p105, %p106
    %p109 = scmp.ne.s32.totalorder %s94, %s108
    %p110 = scmp.eq.s32.totalorder %s16, 0
    %p111 = por %p109, %p110
    %s112 = ssub.s32 %s10, %s17
    %p113 = scmp.eq.s32.totalorder %s112, 0
    %s115 = sadd.s32 %s114, 1
    %s116 = scalar_select %p113, %s114, %s115
    %p119 = pneg %p113
    %p120 = scmp.eq.s32.totalorder %s10, 1
    %p121 = por %p119, %p120
    %p122 = scmp.ne.s32.totalorder %s114, %s117
    %p123 = scmp.eq.s32.totalorder %s10, 0
    %p124 = por %p122, %p123
    %p125 = scmp.ne.s32.totalorder %s114, %s117
    %p126 = scmp.eq.s32.totalorder %s15, 1
    %p127 = por %p125, %p126
    %p128 = scmp.ne.s32.totalorder %s117, %s118
    %p129 = scmp.eq.s32.totalorder %s15, 0
    %p130 = por %p128, %p129
    %p131 = scmp.ne.s32.totalorder %s117, %s118
    %p132 = scmp.eq.s32.totalorder %s16, 1
    %p133 = por %p131, %p132
    %p135 = scmp.ne.s32.totalorder %s118, %s134
    %p136 = scmp.eq.s32.totalorder %s16, 0
    %p137 = por %p135, %p136
    %p138 = scmp.le.s32.totalorder 1, %s10
    %p139 = scmp.lt.s32.totalorder %s10, 3
    %p140 = pnand %p138, %p139
    %p141 = pneg %p140
    // Predicated region
    $region9: #{transformer_forward.1} parent=5 // pred_check
      _
    $region10: #{transformer_forward.1} parent=5 // pred_check_branch
      %143 = sbr.rel (%p140) target = $region12
    $region11: #{transformer_forward.1} parent=5 // pred_region
      %s144 = ssub.s32 %s10, 1
      // Predicated region
      $region13: #{transformer_forward.1} parent=11 // pred_check
        %p145 = pneg %p83
      $region14: #{transformer_forward.1} parent=11 // pred_check_branch
        %147 = sbr.rel (%p145) target = $region16
      $region15: #{transformer_forward.1} parent=11 // pred_region
        _
      $region16: #{transformer_forward.1} parent=11 // pred_fallthru
        _
      // Predicated region
      $region17: #{transformer_forward.1} parent=11 // pred_check
        %p148 = pneg %p104
      $region18: #{transformer_forward.1} parent=11 // pred_check_branch
        %150 = sbr.rel (%p148) target = $region20
      $region19: #{transformer_forward.1} parent=11 // pred_region
        _
      $region20: #{transformer_forward.1} parent=11 // pred_fallthru
        _
    $region12: #{transformer_forward.1} parent=5 // pred_fallthru
      _
    %p151 = scmp.lt.s32.totalorder %s10, 2
    // Predicated region
    $region21: #{transformer_forward.1} parent=5 // pred_check
      %p152 = pneg %p151
    $region22: #{transformer_forward.1} parent=5 // pred_check_branch
      %154 = sbr.rel (%p152) target = $region24
    $region23: #{transformer_forward.1} parent=5 // pred_region
      // Predicated region
      $region25: #{transformer_forward.1} parent=23 // pred_check
        %p155 = pneg %p30
      $region26: #{transformer_forward.1} parent=23 // pred_check_branch
        %157 = sbr.rel (%p155) target = $region28
      $region27: #{transformer_forward.1} parent=23 // pred_region
        %p158 = scmp.lt.s32.totalorder %s10, 1
        %s159 = scalar_select %p158, %s10, 1
        %s160 = smul.addr %s159, 2
        %s161 = smul.addr %s160, 8
        %s162 = scalar_lea.vmem %s0, %s161
      $region28: #{transformer_forward.1} parent=23 // pred_fallthru
        _
      // Predicated region
      $region29: #{transformer_forward.1} parent=23 // pred_check
        %p163 = pneg %p56
      $region30: #{transformer_forward.1} parent=23 // pred_check_branch
        %165 = sbr.rel (%p163) target = $region32
      $region31: #{transformer_forward.1} parent=23 // pred_region
        %p166 = scmp.lt.s32.totalorder %s10, 1
        %s167 = scalar_select %p166, %s10, 1
        %s168 = smul.addr %s167, 8
        %s169 = scalar_lea.vmem %s1, %s168
      $region32: #{transformer_forward.1} parent=23 // pred_fallthru
        _
    $region24: #{transformer_forward.1} parent=5 // pred_fallthru
      _
    %p170 = scmp.le.s32.totalorder 1, %s10
    %p171 = scmp.lt.s32.totalorder %s10, 3
    %p172 = pnand %p170, %p171
    %p173 = pneg %p172
    // Predicated region
    $region33: #{transformer_forward.1} parent=5 // pred_check
      _
    $region34: #{transformer_forward.1} parent=5 // pred_check_branch
      %175 = sbr.rel (%p172) target = $region36
    $region35: #{transformer_forward.1} parent=5 // pred_region
      %s176 = ssub.s32 %s10, 1
      %p177 = scmp.lt.s32.totalorder %s15, 1
      %s178 = scalar_select %p177, %s15, 1
      %s179 = smul.addr %s178, 2
      %s180 = smul.addr %s179, 8
      %s181 = scalar_lea.vmem %s0, %s180
      %p182 = pneg %p36
      %p183 = pneg %p33
      %p184 = scmp.lt.s32.totalorder %s15, 1
      %s185 = scalar_select %p184, %s15, 1
      %s186 = smul.addr %s185, 8
      %s187 = scalar_lea.vmem %s1, %s186
      %p188 = pneg %p62
      %p189 = pneg %p59
      %p190 = pneg %p83
      %p191 = pneg %p80
      %p192 = pneg %p104
      %p193 = pneg %p101
      %p194 = pneg %p130
      %p195 = pneg %p127
      %p196 = scmp.lt.s32.totalorder %s15, 1
      %s197 = scalar_select %p196, %s15, 1
      %s198 = smul.addr %s197, 8
      %s199 = scalar_lea.vmem %s4, %s198
      %p200 = scmp.lt.s32.totalorder %s15, 1
      %s201 = scalar_select %p200, %s15, 1
      %s202 = smul.addr %s201, 2
      %s203 = smul.addr %s202, 8
      %s204 = scalar_lea.vmem %s0, %s203
      %p205 = scmp.lt.s32.totalorder %s15, 1
      %s206 = scalar_select %p205, %s15, 1
      %s207 = smul.addr %s206, 8
      %s208 = scalar_lea.vmem %s1, %s207
      %p209 = scmp.lt.s32.totalorder %s15, 1
      %s210 = scalar_select %p209, %s15, 1
      %s211 = smul.addr %s210, 8
      %s212 = scalar_lea.vmem %s4, %s211
      %v213 = vlaneseq
      %v214 = vand.u32 %v213, 127
      %vm215 = vcmp.lt.s32.totalorder %v214, 32
      %v216 = vsel %vm215, 1, 0
      %v217 = vcvt.s32.f32 %v216
      %v218 = vld [vmem:[%s204] sm:$0xff]
      %v219 = vld [vmem:[%s204 + $0x8] sm:$0x3]
      %220 = vset.pattern.permute.xlu0 0
      %221 = vperm.xlu0 %220, %v218
      %v222 = vpop.permute.xlu0 %221
      %223 = vset.pattern.permute.xlu0 0
      %224 = vperm.xlu0 %223, %v219
      %v225 = vpop.permute.xlu0 %224
      %vm226 = vcmp.eq.s32.totalorder %v222, %v214
      %vm227 = vcmp.eq.s32.totalorder %v225, %v214
      %v228 = vsel %vm226, 1, 0
      %v229 = vsel %vm227, 1, 0
      %v230 = vcvt.s32.f32 %v228
      %v231 = vcvt.s32.f32 %v229
      %v232 = vld [vmem:[%s2] sm:$0xff]
      %v233 = vld [vmem:[%s2 + $0x8] sm:$0xff]
      %v234 = vld [vmem:[%s2 + $0x10] sm:$0xff]
      %v235 = vld [vmem:[%s2 + $0x18] sm:$0xff]
      %v236 = vld [vmem:[%s2 + $0x20] sm:$0xff]
      %v237 = vld [vmem:[%s2 + $0x28] sm:$0xff]
      %v238 = vld [vmem:[%s2 + $0x30] sm:$0xff]
      %v239 = vld [vmem:[%s2 + $0x38] sm:$0xff]
      %v240 = vld [vmem:[%s2 + $0x40] sm:$0xff]
      %v241 = vld [vmem:[%s2 + $0x48] sm:$0xff]
      %v242 = vld [vmem:[%s2 + $0x50] sm:$0xff]
      %v243 = vld [vmem:[%s2 + $0x58] sm:$0xff]
      %v244 = vld [vmem:[%s2 + $0x60] sm:$0xff]
      %v245 = vld [vmem:[%s2 + $0x68] sm:$0xff]
      %v246 = vld [vmem:[%s2 + $0x70] sm:$0xff]
      %v247 = vld [vmem:[%s2 + $0x78] sm:$0xff]
      %s248 = scalar_lea.vmem %s2, 256
      %v249 = vld [vmem:[%s248] sm:$0xff]
      %v250 = vld [vmem:[%s248 + $0x8] sm:$0xff]
      %251 = vmatprep.subr.mxu0 0.0
      %252 = vmatpush1.msra.mxu0 %v232
      %253 = vmatprep.subr.mxu0 0.0
      %254 = vmatpush1.msra.mxu0 %v233
      %255 = vmatprep.subr.mxu0 0.0
      %256 = vmatpush1.msra.mxu0 %v234
      %257 = vmatprep.subr.mxu0 0.0
      %258 = vmatpush1.msra.mxu0 %v235
      %259 = vmatprep.subr.mxu0 0.0
      %260 = vmatpush1.msra.mxu0 %v236
      %261 = vmatprep.subr.mxu0 0.0
      %262 = vmatpush1.msra.mxu0 %v237
      %263 = vmatprep.subr.mxu0 0.0
      %264 = vmatpush1.msra.mxu0 %v238
      %265 = vmatprep.subr.mxu0 0.0
      %266 = vmatpush1.msra.mxu0 %v239
      %267 = vmatprep.subr.mxu0 0.0
      %268 = vmatpush1.msra.mxu0 %v240
      %269 = vmatprep.subr.mxu0 0.0
      %270 = vmatpush1.msra.mxu0 %v241
      %271 = vmatprep.subr.mxu0 0.0
      %272 = vmatpush1.msra.mxu0 %v242
      %273 = vmatprep.subr.mxu0 0.0
      %274 = vmatpush1.msra.mxu0 %v243
      %275 = vmatprep.subr.mxu0 0.0
      %276 = vmatpush1.msra.mxu0 %v244
      %277 = vmatprep.subr.mxu0 0.0
      %278 = vmatpush1.msra.mxu0 %v245
      %279 = vmatprep.subr.mxu0 0.0
      %280 = vmatpush1.msra.mxu0 %v246
      %281 = vmatprep.subr.mxu0 0.0
      %282 = vmatpush1.msra.mxu0 %v247
      %283 = vmatprep.subr.mxu0 0.0
      %284 = vmatpush1.msra.mxu0 0.0
      %285 = vmatprep.subr.mxu0 0.0
      %286 = vmatpush1.msra.mxu0 0.0
      %287 = vmatprep.subr.mxu0 0.0
      %288 = vmatpush1.msra.mxu0 0.0
      %289 = vmatprep.subr.mxu0 0.0
      %290 = vmatpush1.msra.mxu0 0.0
      %291 = vmatprep.subr.mxu0 0.0
      %292 = vmatpush1.msra.mxu0 0.0
      %293 = vmatprep.subr.mxu0 0.0
      %294 = vmatpush1.msra.mxu0 0.0
      %295 = vmatprep.subr.mxu0 0.0
      %296 = vmatpush1.msra.mxu0 0.0
      %297 = vmatprep.subr.mxu0 0.0
      %298 = vmatpush1.msra.mxu0 0.0
      %299 = vmatprep.subr.mxu0 0.0
      %300 = vmatpush1.msra.mxu0 0.0
      %301 = vmatprep.subr.mxu0 0.0
      %302 = vmatpush1.msra.mxu0 0.0
      %303 = vmatprep.subr.mxu0 0.0
      %304 = vmatpush1.msra.mxu0 0.0
      %305 = vmatprep.subr.mxu0 0.0
      %306 = vmatpush1.msra.mxu0 0.0
      %307 = vmatprep.subr.mxu0 0.0
      %308 = vmatpush1.msra.mxu0 0.0
      %309 = vmatprep.subr.mxu0 0.0
      %310 = vmatpush1.msra.mxu0 0.0
      %311 = vmatprep.subr.mxu0 0.0
      %312 = vmatpush1.msra.mxu0 0.0
      %313 = vmatprep.subr.mxu0 0.0
      %314 = vmatpush1.msra.mxu0 0.0
      %315 = vmatprep.mubr.f32.mxu0 0.0
      %316 = vmatmul.mubr.f32.gmra.mrb[0].mxu0 %v230
      %v317 = vpop.f32.mrb[0].mxu0
      %v318 = vadd.f32 %v249, %v317
      %v319 = vpop.f32.mrb[0].mxu0
      %320 = vmatprep.mubr.f32.mxu0 0.0
      %321 = vmatmul.mubr.f32.gmra.mrb[0].mxu0 %v231
      %v322 = vpop.f32.mrb[0].mxu0
      %v323 = vadd.f32 %v250, %v322
      %v324 = vpop.f32.mrb[0].mxu0
      %325 = vdwg.mxu0
      %s326 = scalar_lea.vmem %s2, 384
      %v327 = vld [vmem:[%s326] sm:$0xff]
      %v328 = vld [vmem:[%s326 + $0x8] sm:$0xff]
      %v329 = vld [vmem:[%s326 + $0x10] sm:$0xff]
      %v330 = vld [vmem:[%s326 + $0x18] sm:$0xff]
      %v331 = vld [vmem:[%s326 + $0x20] sm:$0xff]
      %v332 = vld [vmem:[%s326 + $0x28] sm:$0xff]
      %v333 = vld [vmem:[%s326 + $0x30] sm:$0xff]
      %v334 = vld [vmem:[%s326 + $0x38] sm:$0xff]
      %v335 = vld [vmem:[%s326 + $0x40] sm:$0xff]
      %v336 = vld [vmem:[%s326 + $0x48] sm:$0xff]
      %v337 = vld [vmem:[%s326 + $0x50] sm:$0xff]
      %v338 = vld [vmem:[%s326 + $0x58] sm:$0xff]
      %v339 = vld [vmem:[%s326 + $0x60] sm:$0xff]
      %v340 = vld [vmem:[%s326 + $0x68] sm:$0xff]
      %v341 = vld [vmem:[%s326 + $0x70] sm:$0xff]
      %v342 = vld [vmem:[%s326 + $0x78] sm:$0xff]
      %v343 = vld [vmem:[%s3] sm:$0x1]
      %v344 = vlaneseq
      %v345 = vshrl.u32 %v344, 7
      %v346 = vsub.s32 0, %v345
      %v347 = vrot.slane %v343, %v346
      %348 = vmatprep.subr.mxu0 0.0
      %349 = vmatpush1.msra.mxu0 %v327
      %350 = vmatprep.subr.mxu0 0.0
      %351 = vmatpush1.msra.mxu0 %v328
      %352 = vmatprep.subr.mxu0 0.0
      %353 = vmatpush1.msra.mxu0 %v329
      %354 = vmatprep.subr.mxu0 0.0
      %355 = vmatpush1.msra.mxu0 %v330
      %356 = vmatprep.subr.mxu0 0.0
      %357 = vmatpush1.msra.mxu0 %v331
      %358 = vmatprep.subr.mxu0 0.0
      %359 = vmatpush1.msra.mxu0 %v332
      %360 = vmatprep.subr.mxu0 0.0
      %361 = vmatpush1.msra.mxu0 %v333
      %362 = vmatprep.subr.mxu0 0.0
      %363 = vmatpush1.msra.mxu0 %v334
      %364 = vmatprep.subr.mxu0 0.0
      %365 = vmatpush1.msra.mxu0 %v335
      %366 = vmatprep.subr.mxu0 0.0
      %367 = vmatpush1.msra.mxu0 %v336
      %368 = vmatprep.subr.mxu0 0.0
      %369 = vmatpush1.msra.mxu0 %v337
      %370 = vmatprep.subr.mxu0 0.0
      %371 = vmatpush1.msra.mxu0 %v338
      %372 = vmatprep.subr.mxu0 0.0
      %373 = vmatpush1.msra.mxu0 %v339
      %374 = vmatprep.subr.mxu0 0.0
      %375 = vmatpush1.msra.mxu0 %v340
      %376 = vmatprep.subr.mxu0 0.0
      %377 = vmatpush1.msra.mxu0 %v341
      %378 = vmatprep.subr.mxu0 0.0
      %379 = vmatpush1.msra.mxu0 %v342
      %380 = vmatprep.subr.mxu0 0.0
      %381 = vmatpush1.msra.mxu0 0.0
      %382 = vmatprep.subr.mxu0 0.0
      %383 = vmatpush1.msra.mxu0 0.0
      %384 = vmatprep.subr.mxu0 0.0
      %385 = vmatpush1.msra.mxu0 0.0
      %386 = vmatprep.subr.mxu0 0.0
      %387 = vmatpush1.msra.mxu0 0.0
      %388 = vmatprep.subr.mxu0 0.0
      %389 = vmatpush1.msra.mxu0 0.0
      %390 = vmatprep.subr.mxu0 0.0
      %391 = vmatpush1.msra.mxu0 0.0
      %392 = vmatprep.subr.mxu0 0.0
      %393 = vmatpush1.msra.mxu0 0.0
      %394 = vmatprep.subr.mxu0 0.0
      %395 = vmatpush1.msra.mxu0 0.0
      %396 = vmatprep.subr.mxu0 0.0
      %397 = vmatpush1.msra.mxu0 0.0
      %398 = vmatprep.subr.mxu0 0.0
      %399 = vmatpush1.msra.mxu0 0.0
      %400 = vmatprep.subr.mxu0 0.0
      %401 = vmatpush1.msra.mxu0 0.0
      %402 = vmatprep.subr.mxu0 0.0
      %403 = vmatpush1.msra.mxu0 0.0
      %404 = vmatprep.subr.mxu0 0.0
      %405 = vmatpush1.msra.mxu0 0.0
      %406 = vmatprep.subr.mxu0 0.0
      %407 = vmatpush1.msra.mxu0 0.0
      %408 = vmatprep.subr.mxu0 0.0
      %409 = vmatpush1.msra.mxu0 0.0
      %410 = vmatprep.subr.mxu0 0.0
      %411 = vmatpush1.msra.mxu0 0.0
      %412 = vmatprep.mubr.f32.mxu0 0.0
      %413 = vmatmul.mubr.f32.gmra.mrb[0].mxu0 %v318
      %v414 = vpop.f32.mrb[0].mxu0
      %v415 = vadd.f32 %v347, %v414
      %v416 = vpop.f32.mrb[0].mxu0
      %417 = vmatprep.mubr.f32.mxu0 0.0
      %418 = vmatmul.mubr.f32.gmra.mrb[0].mxu0 %v323
      %v419 = vpop.f32.mrb[0].mxu0
      %v420 = vadd.f32 %v347, %v419
      %v421 = vpop.f32.mrb[0].mxu0
      %422 = vdwg.mxu0
      %s423 = scalar_lea.vmem %s2, 512
      %v424 = vld [vmem:[%s423] sm:$0xff]
      %v425 = vld [vmem:[%s423 + $0x8] sm:$0xff]
      %v426 = vld [vmem:[%s423 + $0x10] sm:$0xff]
      %v427 = vld [vmem:[%s423 + $0x18] sm:$0xff]
      %v428 = vld [vmem:[%s423 + $0x20] sm:$0xff]
      %v429 = vld [vmem:[%s423 + $0x28] sm:$0xff]
      %v430 = vld [vmem:[%s423 + $0x30] sm:$0xff]
      %v431 = vld [vmem:[%s423 + $0x38] sm:$0xff]
      %v432 = vld [vmem:[%s423 + $0x40] sm:$0xff]
      %v433 = vld [vmem:[%s423 + $0x48] sm:$0xff]
      %v434 = vld [vmem:[%s423 + $0x50] sm:$0xff]
      %v435 = vld [vmem:[%s423 + $0x58] sm:$0xff]
      %v436 = vld [vmem:[%s423 + $0x60] sm:$0xff]
      %v437 = vld [vmem:[%s423 + $0x68] sm:$0xff]
      %v438 = vld [vmem:[%s423 + $0x70] sm:$0xff]
      %v439 = vld [vmem:[%s423 + $0x78] sm:$0xff]
      %v440 = vld [vmem:[%s3 + $0x1] sm:$0x1]
      %v441 = vlaneseq
      %v442 = vshrl.u32 %v441, 7
      %v443 = vsub.s32 0, %v442
      %v444 = vrot.slane %v440, %v443
      %445 = vmatprep.subr.mxu0 0.0
      %446 = vmatpush1.msra.mxu0 %v424
      %447 = vmatprep.subr.mxu0 0.0
      %448 = vmatpush1.msra.mxu0 %v425
      %449 = vmatprep.subr.mxu0 0.0
      %450 = vmatpush1.msra.mxu0 %v426
      %451 = vmatprep.subr.mxu0 0.0
      %452 = vmatpush1.msra.mxu0 %v427
      %453 = vmatprep.subr.mxu0 0.0
      %454 = vmatpush1.msra.mxu0 %v428
      %455 = vmatprep.subr.mxu0 0.0
      %456 = vmatpush1.msra.mxu0 %v429
      %457 = vmatprep.subr.mxu0 0.0
      %458 = vmatpush1.msra.mxu0 %v430
      %459 = vmatprep.subr.mxu0 0.0
      %460 = vmatpush1.msra.mxu0 %v431
      %461 = vmatprep.subr.mxu0 0.0
      %462 = vmatpush1.msra.mxu0 %v432
      %463 = vmatprep.subr.mxu0 0.0
      %464 = vmatpush1.msra.mxu0 %v433
      %465 = vmatprep.subr.mxu0 0.0
      %466 = vmatpush1.msra.mxu0 %v434
      %467 = vmatprep.subr.mxu0 0.0
      %468 = vmatpush1.msra.mxu0 %v435
      %469 = vmatprep.subr.mxu0 0.0
      %470 = vmatpush1.msra.mxu0 %v436
      %471 = vmatprep.subr.mxu0 0.0
      %472 = vmatpush1.msra.mxu0 %v437
      %473 = vmatprep.subr.mxu0 0.0
      %474 = vmatpush1.msra.mxu0 %v438
      %475 = vmatprep.subr.mxu0 0.0
      %476 = vmatpush1.msra.mxu0 %v439
      %477 = vmatprep.subr.mxu0 0.0
      %478 = vmatpush1.msra.mxu0 0.0
      %479 = vmatprep.subr.mxu0 0.0
      %480 = vmatpush1.msra.mxu0 0.0
      %481 = vmatprep.subr.mxu0 0.0
      %482 = vmatpush1.msra.mxu0 0.0
      %483 = vmatprep.subr.mxu0 0.0
      %484 = vmatpush1.msra.mxu0 0.0
      %485 = vmatprep.subr.mxu0 0.0
      %486 = vmatpush1.msra.mxu0 0.0
      %487 = vmatprep.subr.mxu0 0.0
      %488 = vmatpush1.msra.mxu0 0.0
      %489 = vmatprep.subr.mxu0 0.0
      %490 = vmatpush1.msra.mxu0 0.0
      %491 = vmatprep.subr.mxu0 0.0
      %492 = vmatpush1.msra.mxu0 0.0
      %493 = vmatprep.subr.mxu0 0.0
      %494 = vmatpush1.msra.mxu0 0.0
      %495 = vmatprep.subr.mxu0 0.0
      %496 = vmatpush1.msra.mxu0 0.0
      %497 = vmatprep.subr.mxu0 0.0
      %498 = vmatpush1.msra.mxu0 0.0
      %499 = vmatprep.subr.mxu0 0.0
      %500 = vmatpush1.msra.mxu0 0.0
      %501 = vmatprep.subr.mxu0 0.0
      %502 = vmatpush1.msra.mxu0 0.0
      %503 = vmatprep.subr.mxu0 0.0
      %504 = vmatpush1.msra.mxu0 0.0
      %505 = vmatprep.subr.mxu0 0.0
      %506 = vmatpush1.msra.mxu0 0.0
      %507 = vmatprep.subr.mxu0 0.0
      %508 = vmatpush1.msra.mxu0 0.0
      %509 = vmatprep.mubr.f32.mxu0 0.0
      %510 = vmatmul.mubr.f32.gmra.mrb[0].mxu0 %v318
      %v511 = vpop.f32.mrb[0].mxu0
      %v512 = vadd.f32 %v444, %v511
      %v513 = vpop.f32.mrb[0].mxu0
      %514 = vmatprep.mubr.f32.mxu0 0.0
      %515 = vmatmul.mubr.f32.gmra.mrb[0].mxu0 %v323
      %v516 = vpop.f32.mrb[0].mxu0
      %v517 = vadd.f32 %v444, %v516
      %v518 = vpop.f32.mrb[0].mxu0
      %519 = vdwg.mxu0
      %s520 = scalar_lea.vmem %s2, 640
      %v521 = vld [vmem:[%s520] sm:$0xff]
      %v522 = vld [vmem:[%s520 + $0x8] sm:$0xff]
      %v523 = vld [vmem:[%s520 + $0x10] sm:$0xff]
      %v524 = vld [vmem:[%s520 + $0x18] sm:$0xff]
      %v525 = vld [vmem:[%s520 + $0x20] sm:$0xff]
      %v526 = vld [vmem:[%s520 + $0x28] sm:$0xff]
      %v527 = vld [vmem:[%s520 + $0x30] sm:$0xff]
      %v528 = vld [vmem:[%s520 + $0x38] sm:$0xff]
      %v529 = vld [vmem:[%s520 + $0x40] sm:$0xff]
      %v530 = vld [vmem:[%s520 + $0x48] sm:$0xff]
      %v531 = vld [vmem:[%s520 + $0x50] sm:$0xff]
      %v532 = vld [vmem:[%s520 + $0x58] sm:$0xff]
      %v533 = vld [vmem:[%s520 + $0x60] sm:$0xff]
      %v534 = vld [vmem:[%s520 + $0x68] sm:$0xff]
      %v535 = vld [vmem:[%s520 + $0x70] sm:$0xff]
      %v536 = vld [vmem:[%s520 + $0x78] sm:$0xff]
      %v537 = vld [vmem:[%s3 + $0x2] sm:$0x1]
      %v538 = vlaneseq
      %v539 = vshrl.u32 %v538, 7
      %v540 = vsub.s32 0, %v539
      %v541 = vrot.slane %v537, %v540
      %542 = vmatprep.subr.mxu0 0.0
      %543 = vmatpush1.msra.mxu0 %v521
      %544 = vmatprep.subr.mxu0 0.0
      %545 = vmatpush1.msra.mxu0 %v522
      %546 = vmatprep.subr.mxu0 0.0
      %547 = vmatpush1.msra.mxu0 %v523
      %548 = vmatprep.subr.mxu0 0.0
      %549 = vmatpush1.msra.mxu0 %v524
      %550 = vmatprep.subr.mxu0 0.0
      %551 = vmatpush1.msra.mxu0 %v525
      %552 = vmatprep.subr.mxu0 0.0
      %553 = vmatpush1.msra.mxu0 %v526
      %554 = vmatprep.subr.mxu0 0.0
      %555 = vmatpush1.msra.mxu0 %v527
      %556 = vmatprep.subr.mxu0 0.0
      %557 = vmatpush1.msra.mxu0 %v528
      %558 = vmatprep.subr.mxu0 0.0
      %559 = vmatpush1.msra.mxu0 %v529
      %560 = vmatprep.subr.mxu0 0.0
      %561 = vmatpush1.msra.mxu0 %v530
      %562 = vmatprep.subr.mxu0 0.0
      %563 = vmatpush1.msra.mxu0 %v531
      %564 = vmatprep.subr.mxu0 0.0
      %565 = vmatpush1.msra.mxu0 %v532
      %566 = vmatprep.subr.mxu0 0.0
      %567 = vmatpush1.msra.mxu0 %v533
      %568 = vmatprep.subr.mxu0 0.0
      %569 = vmatpush1.msra.mxu0 %v534
      %570 = vmatprep.subr.mxu0 0.0
      %571 = vmatpush1.msra.mxu0 %v535
      %572 = vmatprep.subr.mxu0 0.0
      %573 = vmatpush1.msra.mxu0 %v536
      %574 = vmatprep.subr.mxu0 0.0
      %575 = vmatpush1.msra.mxu0 0.0
      %576 = vmatprep.subr.mxu0 0.0
      %577 = vmatpush1.msra.mxu0 0.0
      %578 = vmatprep.subr.mxu0 0.0
      %579 = vmatpush1.msra.mxu0 0.0
      %580 = vmatprep.subr.mxu0 0.0
      %581 = vmatpush1.msra.mxu0 0.0
      %582 = vmatprep.subr.mxu0 0.0
      %583 = vmatpush1.msra.mxu0 0.0
      %584 = vmatprep.subr.mxu0 0.0
      %585 = vmatpush1.msra.mxu0 0.0
      %586 = vmatprep.subr.mxu0 0.0
      %587 = vmatpush1.msra.mxu0 0.0
      %588 = vmatprep.subr.mxu0 0.0
      %589 = vmatpush1.msra.mxu0 0.0
      %590 = vmatprep.subr.mxu0 0.0
      %591 = vmatpush1.msra.mxu0 0.0
      %592 = vmatprep.subr.mxu0 0.0
      %593 = vmatpush1.msra.mxu0 0.0
      %594 = vmatprep.subr.mxu0 0.0
      %595 = vmatpush1.msra.mxu0 0.0
      %596 = vmatprep.subr.mxu0 0.0
      %597 = vmatpush1.msra.mxu0 0.0
      %598 = vmatprep.subr.mxu0 0.0
      %599 = vmatpush1.msra.mxu0 0.0
      %600 = vmatprep.subr.mxu0 0.0
      %601 = vmatpush1.msra.mxu0 0.0
      %602 = vmatprep.subr.mxu0 0.0
      %603 = vmatpush1.msra.mxu0 0.0
      %604 = vmatprep.subr.mxu0 0.0
      %605 = vmatpush1.msra.mxu0 0.0
      %606 = vmatprep.mubr.f32.mxu0 0.0
      %607 = vmatmul.mubr.f32.gmra.mrb[0].mxu0 %v318
      %v608 = vpop.f32.mrb[0].mxu0
      %v609 = vadd.f32 %v541, %v608
      %v610 = vpop.f32.mrb[0].mxu0
      %611 = vmatprep.mubr.f32.mxu0 0.0
      %612 = vmatmul.mubr.f32.gmra.mrb[0].mxu0 %v323
      %v613 = vpop.f32.mrb[0].mxu0
      %v614 = vadd.f32 %v541, %v613
      %v615 = vpop.f32.mrb[0].mxu0
      %616 = vdwg.mxu0
      %v617 = vmul.f32 %v415, 0.17677669
      %v618 = vmul.f32 %v420, 0.17677669
      %619 = vmatprep.subr.mxu0 0.0
      %620 = vmatpush1.xpose.msra.mxu0 %v512
      %621 = vmatprep.subr.mxu0 0.0
      %622 = vmatpush1.xpose.msra.mxu0 %v517
      %623 = vmatprep.subr.mxu0 0.0
      %624 = vmatpush1.xpose.msra.mxu0 0.0
      %625 = vmatprep.subr.mxu0 0.0
      %626 = vmatpush1.xpose.msra.mxu0 0.0
      %627 = vmatprep.subr.mxu0 0.0
      %628 = vmatpush1.xpose.msra.mxu0 0.0
      %629 = vmatprep.subr.mxu0 0.0
      %630 = vmatpush1.xpose.msra.mxu0 0.0
      %631 = vmatprep.subr.mxu0 0.0
      %632 = vmatpush1.xpose.msra.mxu0 0.0
      %633 = vmatprep.subr.mxu0 0.0
      %634 = vmatpush1.xpose.msra.mxu0 0.0
      %635 = vmatprep.subr.mxu0 0.0
      %636 = vmatpush1.xpose.msra.mxu0 0.0
      %637 = vmatprep.subr.mxu0 0.0
      %638 = vmatpush1.xpose.msra.mxu0 0.0
      %639 = vmatprep.subr.mxu0 0.0
      %640 = vmatpush1.xpose.msra.mxu0 0.0
      %641 = vmatprep.subr.mxu0 0.0
      %642 = vmatpush1.xpose.msra.mxu0 0.0
      %643 = vmatprep.subr.mxu0 0.0
      %644 = vmatpush1.xpose.msra.mxu0 0.0
      %645 = vmatprep.subr.mxu0 0.0
      %646 = vmatpush1.xpose.msra.mxu0 0.0
      %647 = vmatprep.subr.mxu0 0.0
      %648 = vmatpush1.xpose.msra.mxu0 0.0
      %649 = vmatprep.subr.mxu0 0.0
      %650 = vmatpush1.xpose.msra.mxu0 0.0
      %651 = vmatprep.subr.mxu0 0.0
      %652 = vmatpush1.xpose.msra.mxu0 0.0
      %653 = vmatprep.subr.mxu0 0.0
      %654 = vmatpush1.xpose.msra.mxu0 0.0
      %655 = vmatprep.subr.mxu0 0.0
      %656 = vmatpush1.xpose.msra.mxu0 0.0
      %657 = vmatprep.subr.mxu0 0.0
      %658 = vmatpush1.xpose.msra.mxu0 0.0
      %659 = vmatprep.subr.mxu0 0.0
      %660 = vmatpush1.xpose.msra.mxu0 0.0
      %661 = vmatprep.subr.mxu0 0.0
      %662 = vmatpush1.xpose.msra.mxu0 0.0
      %663 = vmatprep.subr.mxu0 0.0
      %664 = vmatpush1.xpose.msra.mxu0 0.0
      %665 = vmatprep.subr.mxu0 0.0
      %666 = vmatpush1.xpose.msra.mxu0 0.0
      %667 = vmatprep.subr.mxu0 0.0
      %668 = vmatpush1.xpose.msra.mxu0 0.0
      %669 = vmatprep.subr.mxu0 0.0
      %670 = vmatpush1.xpose.msra.mxu0 0.0
      %671 = vmatprep.subr.mxu0 0.0
      %672 = vmatpush1.xpose.msra.mxu0 0.0
      %673 = vmatprep.subr.mxu0 0.0
      %674 = vmatpush1.xpose.msra.mxu0 0.0
      %675 = vmatprep.subr.mxu0 0.0
      %676 = vmatpush1.xpose.msra.mxu0 0.0
      %677 = vmatprep.subr.mxu0 0.0
      %678 = vmatpush1.xpose.msra.mxu0 0.0
      %679 = vmatprep.subr.mxu0 0.0
      %680 = vmatpush1.xpose.msra.mxu0 0.0
      %681 = vmatprep.subr.mxu0 0.0
      %682 = vmatpush1.xpose.msra.mxu0 0.0
      %683 = vmatprep.mubr.f32.mxu0 0.0
      %684 = vmatmul.mubr.f32.gmra.mrb[0].mxu0 %v617
      %v685 = vpop.f32.mrb[0].mxu0
      %v686 = vadd.f32 0.0, %v685
      %v687 = vpop.f32.mrb[0].mxu0
      %688 = vmatprep.mubr.f32.mxu0 0.0
      %689 = vmatmul.mubr.f32.gmra.mrb[0].mxu0 %v618
      %v690 = vpop.f32.mrb[0].mxu0
      %v691 = vadd.f32 0.0, %v690
      %v692 = vpop.f32.mrb[0].mxu0
      %693 = vdwg.mxu0
      %vm694 = vcmask 80896
      %v695 = vsel %vm694, %v686, -inf
      %696 = vmax.xlane.f32.xlu0 %v695
      %v697 = vpop.xlane.xlu0 %696
      %vm698 = vcmask 74752
      %v699 = vsel %vm698, %v691, -inf
      %700 = vmax.xlane.f32.xlu0 %v699
      %v701 = vpop.xlane.xlu0 %700
      %v702 = vsub.f32 %v686, %v697
      %v703 = vsub.f32 %v691, %v701
      %v704 = vmul.f32 %v702, 1.442695
      %v705 = vpow.pop %v704
      %v706 = vmul.f32 %v703, 1.442695
      %v707 = vpow.pop %v706
      %v708 = vsel %vm694, %v705, 0.0
      %709 = vadd.xlane.f32.xlu0 %v708
      %v710 = vpop.xlane.xlu0 %709
      %v711 = vsel %vm698, %v707, 0.0
      %712 = vadd.xlane.f32.xlu0 %v711
      %v713 = vpop.xlane.xlu0 %712
      %v714 = vrcp.pop %v710
      %v715 = vrcp.pop %v713
      %v716 = vmul.f32 %v705, %v714
      %v717 = vmul.f32 %v707, %v715
      %v719 = vsel %vm694, %v716, 0
      %v722 = vsel %vm694, %v717, 0
      %vm724 = vcmask 1041408
      %v726 = vsel %vm724, %v614, 0
      %728 = vmatprep.subr.mxu0 0.0
      %729 = vmatpush1.msra.mxu0 %v609
      %730 = vmatprep.subr.mxu0 0.0
      %731 = vmatpush1.msra.mxu0 %v726
      %732 = vmatprep.subr.mxu0 0.0
      %733 = vmatpush1.msra.mxu0 0.0
      %734 = vmatprep.subr.mxu0 0.0
      %735 = vmatpush1.msra.mxu0 0.0
      %736 = vmatprep.subr.mxu0 0.0
      %737 = vmatpush1.msra.mxu0 0.0
      %738 = vmatprep.subr.mxu0 0.0
      %739 = vmatpush1.msra.mxu0 0.0
      %740 = vmatprep.subr.mxu0 0.0
      %741 = vmatpush1.msra.mxu0 0.0
      %742 = vmatprep.subr.mxu0 0.0
      %743 = vmatpush1.msra.mxu0 0.0
      %744 = vmatprep.subr.mxu0 0.0
      %745 = vmatpush1.msra.mxu0 0.0
      %746 = vmatprep.subr.mxu0 0.0
      %747 = vmatpush1.msra.mxu0 0.0
      %748 = vmatprep.subr.mxu0 0.0
      %749 = vmatpush1.msra.mxu0 0.0
      %750 = vmatprep.subr.mxu0 0.0
      %751 = vmatpush1.msra.mxu0 0.0
      %752 = vmatprep.subr.mxu0 0.0
      %753 = vmatpush1.msra.mxu0 0.0
      %754 = vmatprep.subr.mxu0 0.0
      %755 = vmatpush1.msra.mxu0 0.0
      %756 = vmatprep.subr.mxu0 0.0
      %757 = vmatpush1.msra.mxu0 0.0
      %758 = vmatprep.subr.mxu0 0.0
      %759 = vmatpush1.msra.mxu0 0.0
      %760 = vmatprep.subr.mxu0 0.0
      %761 = vmatpush1.msra.mxu0 0.0
      %762 = vmatprep.subr.mxu0 0.0
      %763 = vmatpush1.msra.mxu0 0.0
      %764 = vmatprep.subr.mxu0 0.0
      %765 = vmatpush1.msra.mxu0 0.0
      %766 = vmatprep.subr.mxu0 0.0
      %767 = vmatpush1.msra.mxu0 0.0
      %768 = vmatprep.subr.mxu0 0.0
      %769 = vmatpush1.msra.mxu0 0.0
      %770 = vmatprep.subr.mxu0 0.0
      %771 = vmatpush1.msra.mxu0 0.0
      %772 = vmatprep.subr.mxu0 0.0
      %773 = vmatpush1.msra.mxu0 0.0
      %774 = vmatprep.subr.mxu0 0.0
      %775 = vmatpush1.msra.mxu0 0.0
      %776 = vmatprep.subr.mxu0 0.0
      %777 = vmatpush1.msra.mxu0 0.0
      %778 = vmatprep.subr.mxu0 0.0
      %779 = vmatpush1.msra.mxu0 0.0
      %780 = vmatprep.subr.mxu0 0.0
      %781 = vmatpush1.msra.mxu0 0.0
      %782 = vmatprep.subr.mxu0 0.0
      %783 = vmatpush1.msra.mxu0 0.0
      %784 = vmatprep.subr.mxu0 0.0
      %785 = vmatpush1.msra.mxu0 0.0
      %786 = vmatprep.subr.mxu0 0.0
      %787 = vmatpush1.msra.mxu0 0.0
      %788 = vmatprep.subr.mxu0 0.0
      %789 = vmatpush1.msra.mxu0 0.0
      %790 = vmatprep.subr.mxu0 0.0
      %791 = vmatpush1.msra.mxu0 0.0
      %792 = vmatprep.mubr.f32.mxu0 0.0
      %793 = vmatmul.mubr.f32.gmra.mrb[0].mxu0 %v719
      %v794 = vpop.f32.mrb[0].mxu0
      %v795 = vadd.f32 0.0, %v794
      %v796 = vpop.f32.mrb[0].mxu0
      %797 = vmatprep.mubr.f32.mxu0 0.0
      %798 = vmatmul.mubr.f32.gmra.mrb[0].mxu0 %v722
      %v799 = vpop.f32.mrb[0].mxu0
      %v800 = vadd.f32 0.0, %v799
      %v801 = vpop.f32.mrb[0].mxu0
      %802 = vdwg.mxu0
      %s803 = scalar_lea.vmem %s2, 768
      %v804 = vld [vmem:[%s803] sm:$0xff]
      %v805 = vld [vmem:[%s803 + $0x8] sm:$0xff]
      %v806 = vld [vmem:[%s803 + $0x10] sm:$0xff]
      %v807 = vld [vmem:[%s803 + $0x18] sm:$0xff]
      %v808 = vld [vmem:[%s803 + $0x20] sm:$0xff]
      %v809 = vld [vmem:[%s803 + $0x28] sm:$0xff]
      %v810 = vld [vmem:[%s803 + $0x30] sm:$0xff]
      %v811 = vld [vmem:[%s803 + $0x38] sm:$0xff]
      %v812 = vld [vmem:[%s803 + $0x40] sm:$0xff]
      %v813 = vld [vmem:[%s803 + $0x48] sm:$0xff]
      %v814 = vld [vmem:[%s803 + $0x50] sm:$0xff]
      %v815 = vld [vmem:[%s803 + $0x58] sm:$0xff]
      %v816 = vld [vmem:[%s803 + $0x60] sm:$0xff]
      %v817 = vld [vmem:[%s803 + $0x68] sm:$0xff]
      %v818 = vld [vmem:[%s803 + $0x70] sm:$0xff]
      %v819 = vld [vmem:[%s803 + $0x78] sm:$0xff]
      %v820 = vld [vmem:[%s3 + $0x3] sm:$0x1]
      %v821 = vlaneseq
      %v822 = vshrl.u32 %v821, 7
      %v823 = vsub.s32 0, %v822
      %v824 = vrot.slane %v820, %v823
      %825 = vmatprep.subr.mxu0 0.0
      %826 = vmatpush1.msra.mxu0 %v804
      %827 = vmatprep.subr.mxu0 0.0
      %828 = vmatpush1.msra.mxu0 %v805
      %829 = vmatprep.subr.mxu0 0.0
      %830 = vmatpush1.msra.mxu0 %v806
      %831 = vmatprep.subr.mxu0 0.0
      %832 = vmatpush1.msra.mxu0 %v807
      %833 = vmatprep.subr.mxu0 0.0
      %834 = vmatpush1.msra.mxu0 %v808
      %835 = vmatprep.subr.mxu0 0.0
      %836 = vmatpush1.msra.mxu0 %v809
      %837 = vmatprep.subr.mxu0 0.0
      %838 = vmatpush1.msra.mxu0 %v810
      %839 = vmatprep.subr.mxu0 0.0
      %840 = vmatpush1.msra.mxu0 %v811
      %841 = vmatprep.subr.mxu0 0.0
      %842 = vmatpush1.msra.mxu0 %v812
      %843 = vmatprep.subr.mxu0 0.0
      %844 = vmatpush1.msra.mxu0 %v813
      %845 = vmatprep.subr.mxu0 0.0
      %846 = vmatpush1.msra.mxu0 %v814
      %847 = vmatprep.subr.mxu0 0.0
      %848 = vmatpush1.msra.mxu0 %v815
      %849 = vmatprep.subr.mxu0 0.0
      %850 = vmatpush1.msra.mxu0 %v816
      %851 = vmatprep.subr.mxu0 0.0
      %852 = vmatpush1.msra.mxu0 %v817
      %853 = vmatprep.subr.mxu0 0.0
      %854 = vmatpush1.msra.mxu0 %v818
      %855 = vmatprep.subr.mxu0 0.0
      %856 = vmatpush1.msra.mxu0 %v819
      %857 = vmatprep.subr.mxu0 0.0
      %858 = vmatpush1.msra.mxu0 0.0
      %859 = vmatprep.subr.mxu0 0.0
      %860 = vmatpush1.msra.mxu0 0.0
      %861 = vmatprep.subr.mxu0 0.0
      %862 = vmatpush1.msra.mxu0 0.0
      %863 = vmatprep.subr.mxu0 0.0
      %864 = vmatpush1.msra.mxu0 0.0
      %865 = vmatprep.subr.mxu0 0.0
      %866 = vmatpush1.msra.mxu0 0.0
      %867 = vmatprep.subr.mxu0 0.0
      %868 = vmatpush1.msra.mxu0 0.0
      %869 = vmatprep.subr.mxu0 0.0
      %870 = vmatpush1.msra.mxu0 0.0
      %871 = vmatprep.subr.mxu0 0.0
      %872 = vmatpush1.msra.mxu0 0.0
      %873 = vmatprep.subr.mxu0 0.0
      %874 = vmatpush1.msra.mxu0 0.0
      %875 = vmatprep.subr.mxu0 0.0
      %876 = vmatpush1.msra.mxu0 0.0
      %877 = vmatprep.subr.mxu0 0.0
      %878 = vmatpush1.msra.mxu0 0.0
      %879 = vmatprep.subr.mxu0 0.0
      %880 = vmatpush1.msra.mxu0 0.0
      %881 = vmatprep.subr.mxu0 0.0
      %882 = vmatpush1.msra.mxu0 0.0
      %883 = vmatprep.subr.mxu0 0.0
      %884 = vmatpush1.msra.mxu0 0.0
      %885 = vmatprep.subr.mxu0 0.0
      %886 = vmatpush1.msra.mxu0 0.0
      %887 = vmatprep.subr.mxu0 0.0
      %888 = vmatpush1.msra.mxu0 0.0
      %889 = vmatprep.mubr.f32.mxu0 0.0
      %890 = vmatmul.mubr.f32.gmra.mrb[0].mxu0 %v795
      %v891 = vpop.f32.mrb[0].mxu0
      %v892 = vadd.f32 %v824, %v891
      %v893 = vpop.f32.mrb[0].mxu0
      %894 = vmatprep.mubr.f32.mxu0 0.0
      %895 = vmatmul.mubr.f32.gmra.mrb[0].mxu0 %v800
      %v896 = vpop.f32.mrb[0].mxu0
      %v897 = vadd.f32 %v824, %v896
      %v898 = vpop.f32.mrb[0].mxu0
      %899 = vdwg.mxu0
      %v900 = vadd.f32 %v318, %v892
      %v901 = vadd.f32 %v323, %v897
      %902 = vadd.xlane.f32.xlu0 %v900
      %v903 = vpop.xlane.xlu0 %902
      %v904 = vsel %vm724, %v901, 0.0
      %905 = vadd.xlane.f32.xlu0 %v904
      %v906 = vpop.xlane.xlu0 %905
      %v907 = vmul.f32 %v903, 0.03125
      %v908 = vmul.f32 %v906, 0.03125
      %v909 = vsub.f32 %v900, %v907
      %v910 = vsub.f32 %v901, %v908
      %v911 = vmul.f32 %v909, %v217
      %v912 = vmul.f32 %v910, %v217
      %v913 = vmul.f32 %v911, %v911
      %v914 = vmul.f32 %v912, %v912
      %915 = vadd.xlane.f32.xlu0 %v913
      %v916 = vpop.xlane.xlu0 %915
      %v917 = vsel %vm724, %v914, 0.0
      %918 = vadd.xlane.f32.xlu0 %v917
      %v919 = vpop.xlane.xlu0 %918
      %v920 = vmul.f32 %v916, 0.03125
      %v921 = vmul.f32 %v919, 0.03125
      %v922 = vadd.f32 %v920, 1e-05
      %v923 = vadd.f32 %v921, 1e-05
      %v924 = vrsqrt.pop %v922
      %v925 = vrsqrt.pop %v923
      %v926 = vmul.f32 %v911, %v924
      %v927 = vmul.f32 %v912, %v925
      %v928 = vld [vmem:[%s3 + $0x4] sm:$0x1]
      %v929 = vlaneseq
      %v930 = vshrl.u32 %v929, 7
      %v931 = vsub.s32 0, %v930
      %v932 = vrot.slane %v928, %v931
      %v933 = vmul.f32 %v926, %v932
      %v934 = vmul.f32 %v927, %v932
      %v935 = vld [vmem:[%s3 + $0x5] sm:$0x1]
      %v936 = vlaneseq
      %v937 = vshrl.u32 %v936, 7
      %v938 = vsub.s32 0, %v937
      %v939 = vrot.slane %v935, %v938
      %v940 = vadd.f32 %v933, %v939
      %v941 = vadd.f32 %v934, %v939
      %s942 = scalar_lea.vmem %s2, 896
      %v943 = vld [vmem:[%s942] sm:$0xff]
      %v944 = vld [vmem:[%s942 + $0x8] sm:$0xff]
      %v945 = vld [vmem:[%s942 + $0x10] sm:$0xff]
      %v946 = vld [vmem:[%s942 + $0x18] sm:$0xff]
      %v947 = vld [vmem:[%s942 + $0x20] sm:$0xff]
      %v948 = vld [vmem:[%s942 + $0x28] sm:$0xff]
      %v949 = vld [vmem:[%s942 + $0x30] sm:$0xff]
      %v950 = vld [vmem:[%s942 + $0x38] sm:$0xff]
      %v951 = vld [vmem:[%s942 + $0x40] sm:$0xff]
      %v952 = vld [vmem:[%s942 + $0x48] sm:$0xff]
      %v953 = vld [vmem:[%s942 + $0x50] sm:$0xff]
      %v954 = vld [vmem:[%s942 + $0x58] sm:$0xff]
      %v955 = vld [vmem:[%s942 + $0x60] sm:$0xff]
      %v956 = vld [vmem:[%s942 + $0x68] sm:$0xff]
      %v957 = vld [vmem:[%s942 + $0x70] sm:$0xff]
      %v958 = vld [vmem:[%s942 + $0x78] sm:$0xff]
      %v959 = vld [vmem:[%s3 + $0x6] sm:$0x1]
      %v960 = vlaneseq
      %v961 = vshrl.u32 %v960, 7
      %v962 = vsub.s32 0, %v961
      %v963 = vrot.slane %v959, %v962
      %964 = vmatprep.subr.mxu0 0.0
      %965 = vmatpush1.msra.mxu0 %v943
      %966 = vmatprep.subr.mxu0 0.0
      %967 = vmatpush1.msra.mxu0 %v944
      %968 = vmatprep.subr.mxu0 0.0
      %969 = vmatpush1.msra.mxu0 %v945
      %970 = vmatprep.subr.mxu0 0.0
      %971 = vmatpush1.msra.mxu0 %v946
      %972 = vmatprep.subr.mxu0 0.0
      %973 = vmatpush1.msra.mxu0 %v947
      %974 = vmatprep.subr.mxu0 0.0
      %975 = vmatpush1.msra.mxu0 %v948
      %976 = vmatprep.subr.mxu0 0.0
      %977 = vmatpush1.msra.mxu0 %v949
      %978 = vmatprep.subr.mxu0 0.0
      %979 = vmatpush1.msra.mxu0 %v950
      %980 = vmatprep.subr.mxu0 0.0
      %981 = vmatpush1.msra.mxu0 %v951
      %982 = vmatprep.subr.mxu0 0.0
      %983 = vmatpush1.msra.mxu0 %v952
      %984 = vmatprep.subr.mxu0 0.0
      %985 = vmatpush1.msra.mxu0 %v953
      %986 = vmatprep.subr.mxu0 0.0
      %987 = vmatpush1.msra.mxu0 %v954
      %988 = vmatprep.subr.mxu0 0.0
      %989 = vmatpush1.msra.mxu0 %v955
      %990 = vmatprep.subr.mxu0 0.0
      %991 = vmatpush1.msra.mxu0 %v956
      %992 = vmatprep.subr.mxu0 0.0
      %993 = vmatpush1.msra.mxu0 %v957
      %994 = vmatprep.subr.mxu0 0.0
      %995 = vmatpush1.msra.mxu0 %v958
      %996 = vmatprep.subr.mxu0 0.0
      %997 = vmatpush1.msra.mxu0 0.0
      %998 = vmatprep.subr.mxu0 0.0
      %999 = vmatpush1.msra.mxu0 0.0
      %1000 = vmatprep.subr.mxu0 0.0
      %1001 = vmatpush1.msra.mxu0 0.0
      %1002 = vmatprep.subr.mxu0 0.0
      %1003 = vmatpush1.msra.mxu0 0.0
      %1004 = vmatprep.subr.mxu0 0.0
      %1005 = vmatpush1.msra.mxu0 0.0
      %1006 = vmatprep.subr.mxu0 0.0
      %1007 = vmatpush1.msra.mxu0 0.0
      %1008 = vmatprep.subr.mxu0 0.0
      %1009 = vmatpush1.msra.mxu0 0.0
      %1010 = vmatprep.subr.mxu0 0.0
      %1011 = vmatpush1.msra.mxu0 0.0
      %1012 = vmatprep.subr.mxu0 0.0
      %1013 = vmatpush1.msra.mxu0 0.0
      %1014 = vmatprep.subr.mxu0 0.0
      %1015 = vmatpush1.msra.mxu0 0.0
      %1016 = vmatprep.subr.mxu0 0.0
      %1017 = vmatpush1.msra.mxu0 0.0
      %1018 = vmatprep.subr.mxu0 0.0
      %1019 = vmatpush1.msra.mxu0 0.0
      %1020 = vmatprep.subr.mxu0 0.0
      %1021 = vmatpush1.msra.mxu0 0.0
      %1022 = vmatprep.subr.mxu0 0.0
      %1023 = vmatpush1.msra.mxu0 0.0
      %1024 = vmatprep.subr.mxu0 0.0
      %1025 = vmatpush1.msra.mxu0 0.0
      %1026 = vmatprep.subr.mxu0 0.0
      %1027 = vmatpush1.msra.mxu0 0.0
      %1028 = vmatprep.mubr.f32.mxu0 0.0
      %1029 = vmatmul.mubr.f32.gmra.mrb[0].mxu0 %v940
      %v1030 = vpop.f32.mrb[0].mxu0
      %v1031 = vadd.f32 %v963, %v1030
      %v1032 = vpop.f32.mrb[0].mxu0
      %1033 = vmatprep.mubr.f32.mxu0 0.0
      %1034 = vmatmul.mubr.f32.gmra.mrb[0].mxu0 %v941
      %v1035 = vpop.f32.mrb[0].mxu0
      %v1036 = vadd.f32 %v963, %v1035
      %v1037 = vpop.f32.mrb[0].mxu0
      %1038 = vdwg.mxu0
      %v1039 = vmax.f32 %v1031, 0.0
      %v1040 = vmax.f32 %v1036, 0.0
      %s1041 = scalar_lea.vmem %s2, 1024
      %v1042 = vld [vmem:[%s1041] sm:$0xff]
      %v1043 = vld [vmem:[%s1041 + $0x8] sm:$0xff]
      %v1044 = vld [vmem:[%s1041 + $0x10] sm:$0xff]
      %v1045 = vld [vmem:[%s1041 + $0x18] sm:$0xff]
      %v1046 = vld [vmem:[%s1041 + $0x20] sm:$0xff]
      %v1047 = vld [vmem:[%s1041 + $0x28] sm:$0xff]
      %v1048 = vld [vmem:[%s1041 + $0x30] sm:$0xff]
      %v1049 = vld [vmem:[%s1041 + $0x38] sm:$0xff]
      %v1050 = vld [vmem:[%s1041 + $0x40] sm:$0xff]
      %v1051 = vld [vmem:[%s1041 + $0x48] sm:$0xff]
      %v1052 = vld [vmem:[%s1041 + $0x50] sm:$0xff]
      %v1053 = vld [vmem:[%s1041 + $0x58] sm:$0xff]
      %v1054 = vld [vmem:[%s1041 + $0x60] sm:$0xff]
      %v1055 = vld [vmem:[%s1041 + $0x68] sm:$0xff]
      %v1056 = vld [vmem:[%s1041 + $0x70] sm:$0xff]
      %v1057 = vld [vmem:[%s1041 + $0x78] sm:$0xff]
      %v1058 = vld [vmem:[%s3 + $0x7] sm:$0x1]
      %v1059 = vlaneseq
      %v1060 = vshrl.u32 %v1059, 7
      %v1061 = vsub.s32 0, %v1060
      %v1062 = vrot.slane %v1058, %v1061
      %1063 = vmatprep.subr.mxu0 0.0
      %1064 = vmatpush1.msra.mxu0 %v1042
      %1065 = vmatprep.subr.mxu0 0.0
      %1066 = vmatpush1.msra.mxu0 %v1043
      %1067 = vmatprep.subr.mxu0 0.0
      %1068 = vmatpush1.msra.mxu0 %v1044
      %1069 = vmatprep.subr.mxu0 0.0
      %1070 = vmatpush1.msra.mxu0 %v1045
      %1071 = vmatprep.subr.mxu0 0.0
      %1072 = vmatpush1.msra.mxu0 %v1046
      %1073 = vmatprep.subr.mxu0 0.0
      %1074 = vmatpush1.msra.mxu0 %v1047
      %1075 = vmatprep.subr.mxu0 0.0
      %1076 = vmatpush1.msra.mxu0 %v1048
      %1077 = vmatprep.subr.mxu0 0.0
      %1078 = vmatpush1.msra.mxu0 %v1049
      %1079 = vmatprep.subr.mxu0 0.0
      %1080 = vmatpush1.msra.mxu0 %v1050
      %1081 = vmatprep.subr.mxu0 0.0
      %1082 = vmatpush1.msra.mxu0 %v1051
      %1083 = vmatprep.subr.mxu0 0.0
      %1084 = vmatpush1.msra.mxu0 %v1052
      %1085 = vmatprep.subr.mxu0 0.0
      %1086 = vmatpush1.msra.mxu0 %v1053
      %1087 = vmatprep.subr.mxu0 0.0
      %1088 = vmatpush1.msra.mxu0 %v1054
      %1089 = vmatprep.subr.mxu0 0.0
      %1090 = vmatpush1.msra.mxu0 %v1055
      %1091 = vmatprep.subr.mxu0 0.0
      %1092 = vmatpush1.msra.mxu0 %v1056
      %1093 = vmatprep.subr.mxu0 0.0
      %1094 = vmatpush1.msra.mxu0 %v1057
      %1095 = vmatprep.subr.mxu0 0.0
      %1096 = vmatpush1.msra.mxu0 0.0
      %1097 = vmatprep.subr.mxu0 0.0
      %1098 = vmatpush1.msra.mxu0 0.0
      %1099 = vmatprep.subr.mxu0 0.0
      %1100 = vmatpush1.msra.mxu0 0.0
      %1101 = vmatprep.subr.mxu0 0.0
      %1102 = vmatpush1.msra.mxu0 0.0
      %1103 = vmatprep.subr.mxu0 0.0
      %1104 = vmatpush1.msra.mxu0 0.0
      %1105 = vmatprep.subr.mxu0 0.0
      %1106 = vmatpush1.msra.mxu0 0.0
      %1107 = vmatprep.subr.mxu0 0.0
      %1108 = vmatpush1.msra.mxu0 0.0
      %1109 = vmatprep.subr.mxu0 0.0
      %1110 = vmatpush1.msra.mxu0 0.0
      %1111 = vmatprep.subr.mxu0 0.0
      %1112 = vmatpush1.msra.mxu0 0.0
      %1113 = vmatprep.subr.mxu0 0.0
      %1114 = vmatpush1.msra.mxu0 0.0
      %1115 = vmatprep.subr.mxu0 0.0
      %1116 = vmatpush1.msra.mxu0 0.0
      %1117 = vmatprep.subr.mxu0 0.0
      %1118 = vmatpush1.msra.mxu0 0.0
      %1119 = vmatprep.subr.mxu0 0.0
      %1120 = vmatpush1.msra.mxu0 0.0
      %1121 = vmatprep.subr.mxu0 0.0
      %1122 = vmatpush1.msra.mxu0 0.0
      %1123 = vmatprep.subr.mxu0 0.0
      %1124 = vmatpush1.msra.mxu0 0.0
      %1125 = vmatprep.subr.mxu0 0.0
      %1126 = vmatpush1.msra.mxu0 0.0
      %1127 = vmatprep.mubr.f32.mxu0 0.0
      %1128 = vmatmul.mubr.f32.gmra.mrb[0].mxu0 %v1039
      %v1129 = vpop.f32.mrb[0].mxu0
      %v1130 = vadd.f32 %v1062, %v1129
      %v1131 = vpop.f32.mrb[0].mxu0
      %1132 = vmatprep.mubr.f32.mxu0 0.0
      %1133 = vmatmul.mubr.f32.gmra.mrb[0].mxu0 %v1040
      %v1134 = vpop.f32.mrb[0].mxu0
      %v1135 = vadd.f32 %v1062, %v1134
      %v1136 = vpop.f32.mrb[0].mxu0
      %1137 = vdwg.mxu0
      %v1138 = vadd.f32 %v940, %v1130
      %v1139 = vadd.f32 %v941, %v1135
      %1140 = vadd.xlane.f32.xlu0 %v1138
      %v1141 = vpop.xlane.xlu0 %1140
      %v1142 = vsel %vm724, %v1139, 0.0
      %1143 = vadd.xlane.f32.xlu0 %v1142
      %v1144 = vpop.xlane.xlu0 %1143
      %v1145 = vmul.f32 %v1141, 0.03125
      %v1146 = vmul.f32 %v1144, 0.03125
      %v1147 = vsub.f32 %v1138, %v1145
      %v1148 = vsub.f32 %v1139, %v1146
      %v1149 = vmul.f32 %v1147, %v217
      %v1150 = vmul.f32 %v1148, %v217
      %v1151 = vmul.f32 %v1149, %v1149
      %v1152 = vmul.f32 %v1150, %v1150
      %1153 = vadd.xlane.f32.xlu0 %v1151
      %v1154 = vpop.xlane.xlu0 %1153
      %v1155 = vsel %vm724, %v1152, 0.0
      %1156 = vadd.xlane.f32.xlu0 %v1155
      %v1157 = vpop.xlane.xlu0 %1156
      %v1158 = vmul.f32 %v1154, 0.03125
      %v1159 = vmul.f32 %v1157, 0.03125
      %v1160 = vadd.f32 %v1158, 1e-05
      %v1161 = vadd.f32 %v1159, 1e-05
      %v1162 = vrsqrt.pop %v1160
      %v1163 = vrsqrt.pop %v1161
      %v1164 = vmul.f32 %v1149, %v1162
      %v1165 = vmul.f32 %v1150, %v1163
      %v1166 = vld [vmem:[%s3 + $0x8] sm:$0x1]
      %v1167 = vlaneseq
      %v1168 = vshrl.u32 %v1167, 7
      %v1169 = vsub.s32 0, %v1168
      %v1170 = vrot.slane %v1166, %v1169
      %v1171 = vmul.f32 %v1164, %v1170
      %v1172 = vmul.f32 %v1165, %v1170
      %v1173 = vld [vmem:[%s3 + $0x9] sm:$0x1]
      %v1174 = vlaneseq
      %v1175 = vshrl.u32 %v1174, 7
      %v1176 = vsub.s32 0, %v1175
      %v1177 = vrot.slane %v1173, %v1176
      %v1178 = vadd.f32 %v1171, %v1177
      %v1179 = vadd.f32 %v1172, %v1177
      %v1180 = vld [vmem:[%s208] sm:$0xff]
      %1181 = vset.pattern.permute.xlu0 0
      %1182 = vperm.xlu0 %1181, %v1180
      %v1183 = vpop.permute.xlu0 %1182
      %vm1184 = vcmp.eq.s32.totalorder %v1183, %v214
      %v1185 = vsel %vm1184, 1, 0
      %v1186 = vcvt.s32.f32 %v1185
      %s1187 = scalar_lea.vmem %s2, 128
      %v1188 = vld [vmem:[%s1187] sm:$0xff]
      %v1189 = vld [vmem:[%s1187 + $0x8] sm:$0xff]
      %v1190 = vld [vmem:[%s1187 + $0x10] sm:$0xff]
      %v1191 = vld [vmem:[%s1187 + $0x18] sm:$0xff]
      %v1192 = vld [vmem:[%s1187 + $0x20] sm:$0xff]
      %v1193 = vld [vmem:[%s1187 + $0x28] sm:$0xff]
      %v1194 = vld [vmem:[%s1187 + $0x30] sm:$0xff]
      %v1195 = vld [vmem:[%s1187 + $0x38] sm:$0xff]
      %v1196 = vld [vmem:[%s1187 + $0x40] sm:$0xff]
      %v1197 = vld [vmem:[%s1187 + $0x48] sm:$0xff]
      %v1198 = vld [vmem:[%s1187 + $0x50] sm:$0xff]
      %v1199 = vld [vmem:[%s1187 + $0x58] sm:$0xff]
      %v1200 = vld [vmem:[%s1187 + $0x60] sm:$0xff]
      %v1201 = vld [vmem:[%s1187 + $0x68] sm:$0xff]
      %v1202 = vld [vmem:[%s1187 + $0x70] sm:$0xff]
      %v1203 = vld [vmem:[%s1187 + $0x78] sm:$0xff]
      %1204 = vmatprep.subr.mxu0 0.0
      %1205 = vmatpush1.msra.mxu0 %v1188
      %1206 = vmatprep.subr.mxu0 0.0
      %1207 = vmatpush1.msra.mxu0 %v1189
      %1208 = vmatprep.subr.mxu0 0.0
      %1209 = vmatpush1.msra.mxu0 %v1190
      %1210 = vmatprep.subr.mxu0 0.0
      %1211 = vmatpush1.msra.mxu0 %v1191
      %1212 = vmatprep.subr.mxu0 0.0
      %1213 = vmatpush1.msra.mxu0 %v1192
      %1214 = vmatprep.subr.mxu0 0.0
      %1215 = vmatpush1.msra.mxu0 %v1193
      %1216 = vmatprep.subr.mxu0 0.0
      %1217 = vmatpush1.msra.mxu0 %v1194
      %1218 = vmatprep.subr.mxu0 0.0
      %1219 = vmatpush1.msra.mxu0 %v1195
      %1220 = vmatprep.subr.mxu0 0.0
      %1221 = vmatpush1.msra.mxu0 %v1196
      %1222 = vmatprep.subr.mxu0 0.0
      %1223 = vmatpush1.msra.mxu0 %v1197
      %1224 = vmatprep.subr.mxu0 0.0
      %1225 = vmatpush1.msra.mxu0 %v1198
      %1226 = vmatprep.subr.mxu0 0.0
      %1227 = vmatpush1.msra.mxu0 %v1199
      %1228 = vmatprep.subr.mxu0 0.0
      %1229 = vmatpush1.msra.mxu0 %v1200
      %1230 = vmatprep.subr.mxu0 0.0
      %1231 = vmatpush1.msra.mxu0 %v1201
      %1232 = vmatprep.subr.mxu0 0.0
      %1233 = vmatpush1.msra.mxu0 %v1202
      %1234 = vmatprep.subr.mxu0 0.0
      %1235 = vmatpush1.msra.mxu0 %v1203
      %1236 = vmatprep.subr.mxu0 0.0
      %1237 = vmatpush1.msra.mxu0 0.0
      %1238 = vmatprep.subr.mxu0 0.0
      %1239 = vmatpush1.msra.mxu0 0.0
      %1240 = vmatprep.subr.mxu0 0.0
      %1241 = vmatpush1.msra.mxu0 0.0
      %1242 = vmatprep.subr.mxu0 0.0
      %1243 = vmatpush1.msra.mxu0 0.0
      %1244 = vmatprep.subr.mxu0 0.0
      %1245 = vmatpush1.msra.mxu0 0.0
      %1246 = vmatprep.subr.mxu0 0.0
      %1247 = vmatpush1.msra.mxu0 0.0
      %1248 = vmatprep.subr.mxu0 0.0
      %1249 = vmatpush1.msra.mxu0 0.0
      %1250 = vmatprep.subr.mxu0 0.0
      %1251 = vmatpush1.msra.mxu0 0.0
      %1252 = vmatprep.subr.mxu0 0.0
      %1253 = vmatpush1.msra.mxu0 0.0
      %1254 = vmatprep.subr.mxu0 0.0
      %1255 = vmatpush1.msra.mxu0 0.0
      %1256 = vmatprep.subr.mxu0 0.0
      %1257 = vmatpush1.msra.mxu0 0.0
      %1258 = vmatprep.subr.mxu0 0.0
      %1259 = vmatpush1.msra.mxu0 0.0
      %1260 = vmatprep.subr.mxu0 0.0
      %1261 = vmatpush1.msra.mxu0 0.0
      %1262 = vmatprep.subr.mxu0 0.0
      %1263 = vmatpush1.msra.mxu0 0.0
      %1264 = vmatprep.subr.mxu0 0.0
      %1265 = vmatpush1.msra.mxu0 0.0
      %1266 = vmatprep.subr.mxu0 0.0
      %1267 = vmatpush1.msra.mxu0 0.0
      %1268 = vmatprep.mubr.f32.mxu0 0.0
      %1269 = vmatmul.mubr.f32.gmra.mrb[0].mxu0 %v1186
      %v1270 = vpop.f32.mrb[0].mxu0
      %v1271 = vadd.f32 %v249, %v1270
      %v1272 = vpop.f32.mrb[0].mxu0
      %1273 = vdwg.mxu0
      %v1274 = vlaneseq
      %v1275 = vshrl.u32 %v1274, 7
      %vm1276 = vcmp.le.s32.totalorder %v214, %v1275
      %s1277 = scalar_lea.vmem %s2, 1152
      %v1278 = vld [vmem:[%s1277] sm:$0xff]
      %v1279 = vld [vmem:[%s1277 + $0x8] sm:$0xff]
      %v1280 = vld [vmem:[%s1277 + $0x10] sm:$0xff]
      %v1281 = vld [vmem:[%s1277 + $0x18] sm:$0xff]
      %v1282 = vld [vmem:[%s1277 + $0x20] sm:$0xff]
      %v1283 = vld [vmem:[%s1277 + $0x28] sm:$0xff]
      %v1284 = vld [vmem:[%s1277 + $0x30] sm:$0xff]
      %v1285 = vld [vmem:[%s1277 + $0x38] sm:$0xff]
      %v1286 = vld [vmem:[%s1277 + $0x40] sm:$0xff]
      %v1287 = vld [vmem:[%s1277 + $0x48] sm:$0xff]
      %v1288 = vld [vmem:[%s1277 + $0x50] sm:$0xff]
      %v1289 = vld [vmem:[%s1277 + $0x58] sm:$0xff]
      %v1290 = vld [vmem:[%s1277 + $0x60] sm:$0xff]
      %v1291 = vld [vmem:[%s1277 + $0x68] sm:$0xff]
      %v1292 = vld [vmem:[%s1277 + $0x70] sm:$0xff]
      %v1293 = vld [vmem:[%s1277 + $0x78] sm:$0xff]
      %v1294 = vld [vmem:[%s3 + $0xa] sm:$0x1]
      %v1295 = vlaneseq
      %v1296 = vshrl.u32 %v1295, 7
      %v1297 = vsub.s32 0, %v1296
      %v1298 = vrot.slane %v1294, %v1297
      %1299 = vmatprep.subr.mxu0 0.0
      %1300 = vmatpush1.msra.mxu0 %v1278
      %1301 = vmatprep.subr.mxu0 0.0
      %1302 = vmatpush1.msra.mxu0 %v1279
      %1303 = vmatprep.subr.mxu0 0.0
      %1304 = vmatpush1.msra.mxu0 %v1280
      %1305 = vmatprep.subr.mxu0 0.0
      %1306 = vmatpush1.msra.mxu0 %v1281
      %1307 = vmatprep.subr.mxu0 0.0
      %1308 = vmatpush1.msra.mxu0 %v1282
      %1309 = vmatprep.subr.mxu0 0.0
      %1310 = vmatpush1.msra.mxu0 %v1283
      %1311 = vmatprep.subr.mxu0 0.0
      %1312 = vmatpush1.msra.mxu0 %v1284
      %1313 = vmatprep.subr.mxu0 0.0
      %1314 = vmatpush1.msra.mxu0 %v1285
      %1315 = vmatprep.subr.mxu0 0.0
      %1316 = vmatpush1.msra.mxu0 %v1286
      %1317 = vmatprep.subr.mxu0 0.0
      %1318 = vmatpush1.msra.mxu0 %v1287
      %1319 = vmatprep.subr.mxu0 0.0
      %1320 = vmatpush1.msra.mxu0 %v1288
      %1321 = vmatprep.subr.mxu0 0.0
      %1322 = vmatpush1.msra.mxu0 %v1289
      %1323 = vmatprep.subr.mxu0 0.0
      %1324 = vmatpush1.msra.mxu0 %v1290
      %1325 = vmatprep.subr.mxu0 0.0
      %1326 = vmatpush1.msra.mxu0 %v1291
      %1327 = vmatprep.subr.mxu0 0.0
      %1328 = vmatpush1.msra.mxu0 %v1292
      %1329 = vmatprep.subr.mxu0 0.0
      %1330 = vmatpush1.msra.mxu0 %v1293
      %1331 = vmatprep.subr.mxu0 0.0
      %1332 = vmatpush1.msra.mxu0 0.0
      %1333 = vmatprep.subr.mxu0 0.0
      %1334 = vmatpush1.msra.mxu0 0.0
      %1335 = vmatprep.subr.mxu0 0.0
      %1336 = vmatpush1.msra.mxu0 0.0
      %1337 = vmatprep.subr.mxu0 0.0
      %1338 = vmatpush1.msra.mxu0 0.0
      %1339 = vmatprep.subr.mxu0 0.0
      %1340 = vmatpush1.msra.mxu0 0.0
      %1341 = vmatprep.subr.mxu0 0.0
      %1342 = vmatpush1.msra.mxu0 0.0
      %1343 = vmatprep.subr.mxu0 0.0
      %1344 = vmatpush1.msra.mxu0 0.0
      %1345 = vmatprep.subr.mxu0 0.0
      %1346 = vmatpush1.msra.mxu0 0.0
      %1347 = vmatprep.subr.mxu0 0.0
      %1348 = vmatpush1.msra.mxu0 0.0
      %1349 = vmatprep.subr.mxu0 0.0
      %1350 = vmatpush1.msra.mxu0 0.0
      %1351 = vmatprep.subr.mxu0 0.0
      %1352 = vmatpush1.msra.mxu0 0.0
      %1353 = vmatprep.subr.mxu0 0.0
      %1354 = vmatpush1.msra.mxu0 0.0
      %1355 = vmatprep.subr.mxu0 0.0
      %1356 = vmatpush1.msra.mxu0 0.0
      %1357 = vmatprep.subr.mxu0 0.0
      %1358 = vmatpush1.msra.mxu0 0.0
      %1359 = vmatprep.subr.mxu0 0.0
      %1360 = vmatpush1.msra.mxu0 0.0
      %1361 = vmatprep.subr.mxu0 0.0
      %1362 = vmatpush1.msra.mxu0 0.0
      %1363 = vmatprep.mubr.f32.mxu0 0.0
      %1364 = vmatmul.mubr.f32.gmra.mrb[0].mxu0 %v1271
      %v1365 = vpop.f32.mrb[0].mxu0
      %v1366 = vadd.f32 %v1298, %v1365
      %v1367 = vpop.f32.mrb[0].mxu0
      %1368 = vdwg.mxu0
      %s1369 = scalar_lea.vmem %s2, 1280
      %v1370 = vld [vmem:[%s1369] sm:$0xff]
      %v1371 = vld [vmem:[%s1369 + $0x8] sm:$0xff]
      %v1372 = vld [vmem:[%s1369 + $0x10] sm:$0xff]
      %v1373 = vld [vmem:[%s1369 + $0x18] sm:$0xff]
      %v1374 = vld [vmem:[%s1369 + $0x20] sm:$0xff]
      %v1375 = vld [vmem:[%s1369 + $0x28] sm:$0xff]
      %v1376 = vld [vmem:[%s1369 + $0x30] sm:$0xff]
      %v1377 = vld [vmem:[%s1369 + $0x38] sm:$0xff]
      %v1378 = vld [vmem:[%s1369 + $0x40] sm:$0xff]
      %v1379 = vld [vmem:[%s1369 + $0x48] sm:$0xff]
      %v1380 = vld [vmem:[%s1369 + $0x50] sm:$0xff]
      %v1381 = vld [vmem:[%s1369 + $0x58] sm:$0xff]
      %v1382 = vld [vmem:[%s1369 + $0x60] sm:$0xff]
      %v1383 = vld [vmem:[%s1369 + $0x68] sm:$0xff]
      %v1384 = vld [vmem:[%s1369 + $0x70] sm:$0xff]
      %v1385 = vld [vmem:[%s1369 + $0x78] sm:$0xff]
      %v1386 = vld [vmem:[%s3 + $0xb] sm:$0x1]
      %v1387 = vlaneseq
      %v1388 = vshrl.u32 %v1387, 7
      %v1389 = vsub.s32 0, %v1388
      %v1390 = vrot.slane %v1386, %v1389
      %1391 = vmatprep.subr.mxu0 0.0
      %1392 = vmatpush1.msra.mxu0 %v1370
      %1393 = vmatprep.subr.mxu0 0.0
      %1394 = vmatpush1.msra.mxu0 %v1371
      %1395 = vmatprep.subr.mxu0 0.0
      %1396 = vmatpush1.msra.mxu0 %v1372
      %1397 = vmatprep.subr.mxu0 0.0
      %1398 = vmatpush1.msra.mxu0 %v1373
      %1399 = vmatprep.subr.mxu0 0.0
      %1400 = vmatpush1.msra.mxu0 %v1374
      %1401 = vmatprep.subr.mxu0 0.0
      %1402 = vmatpush1.msra.mxu0 %v1375
      %1403 = vmatprep.subr.mxu0 0.0
      %1404 = vmatpush1.msra.mxu0 %v1376
      %1405 = vmatprep.subr.mxu0 0.0
      %1406 = vmatpush1.msra.mxu0 %v1377
      %1407 = vmatprep.subr.mxu0 0.0
      %1408 = vmatpush1.msra.mxu0 %v1378
      %1409 = vmatprep.subr.mxu0 0.0
      %1410 = vmatpush1.msra.mxu0 %v1379
      %1411 = vmatprep.subr.mxu0 0.0
      %1412 = vmatpush1.msra.mxu0 %v1380
      %1413 = vmatprep.subr.mxu0 0.0
      %1414 = vmatpush1.msra.mxu0 %v1381
      %1415 = vmatprep.subr.mxu0 0.0
      %1416 = vmatpush1.msra.mxu0 %v1382
      %1417 = vmatprep.subr.mxu0 0.0
      %1418 = vmatpush1.msra.mxu0 %v1383
      %1419 = vmatprep.subr.mxu0 0.0
      %1420 = vmatpush1.msra.mxu0 %v1384
      %1421 = vmatprep.subr.mxu0 0.0
      %1422 = vmatpush1.msra.mxu0 %v1385
      %1423 = vmatprep.subr.mxu0 0.0
      %1424 = vmatpush1.msra.mxu0 0.0
      %1425 = vmatprep.subr.mxu0 0.0
      %1426 = vmatpush1.msra.mxu0 0.0
      %1427 = vmatprep.subr.mxu0 0.0
      %1428 = vmatpush1.msra.mxu0 0.0
      %1429 = vmatprep.subr.mxu0 0.0
      %1430 = vmatpush1.msra.mxu0 0.0
      %1431 = vmatprep.subr.mxu0 0.0
      %1432 = vmatpush1.msra.mxu0 0.0
      %1433 = vmatprep.subr.mxu0 0.0
      %1434 = vmatpush1.msra.mxu0 0.0
      %1435 = vmatprep.subr.mxu0 0.0
      %1436 = vmatpush1.msra.mxu0 0.0
      %1437 = vmatprep.subr.mxu0 0.0
      %1438 = vmatpush1.msra.mxu0 0.0
      %1439 = vmatprep.subr.mxu0 0.0
      %1440 = vmatpush1.msra.mxu0 0.0
      %1441 = vmatprep.subr.mxu0 0.0
      %1442 = vmatpush1.msra.mxu0 0.0
      %1443 = vmatprep.subr.mxu0 0.0
      %1444 = vmatpush1.msra.mxu0 0.0
      %1445 = vmatprep.subr.mxu0 0.0
      %1446 = vmatpush1.msra.mxu0 0.0
      %1447 = vmatprep.subr.mxu0 0.0
      %1448 = vmatpush1.msra.mxu0 0.0
      %1449 = vmatprep.subr.mxu0 0.0
      %1450 = vmatpush1.msra.mxu0 0.0
      %1451 = vmatprep.subr.mxu0 0.0
      %1452 = vmatpush1.msra.mxu0 0.0
      %1453 = vmatprep.subr.mxu0 0.0
      %1454 = vmatpush1.msra.mxu0 0.0
      %1455 = vmatprep.mubr.f32.mxu0 0.0
      %1456 = vmatmul.mubr.f32.gmra.mrb[0].mxu0 %v1271
      %v1457 = vpop.f32.mrb[0].mxu0
      %v1458 = vadd.f32 %v1390, %v1457
      %v1459 = vpop.f32.mrb[0].mxu0
      %1460 = vdwg.mxu0
      %s1461 = scalar_lea.vmem %s2, 1408
      %v1462 = vld [vmem:[%s1461] sm:$0xff]
      %v1463 = vld [vmem:[%s1461 + $0x8] sm:$0xff]
      %v1464 = vld [vmem:[%s1461 + $0x10] sm:$0xff]
      %v1465 = vld [vmem:[%s1461 + $0x18] sm:$0xff]
      %v1466 = vld [vmem:[%s1461 + $0x20] sm:$0xff]
      %v1467 = vld [vmem:[%s1461 + $0x28] sm:$0xff]
      %v1468 = vld [vmem:[%s1461 + $0x30] sm:$0xff]
      %v1469 = vld [vmem:[%s1461 + $0x38] sm:$0xff]
      %v1470 = vld [vmem:[%s1461 + $0x40] sm:$0xff]
      %v1471 = vld [vmem:[%s1461 + $0x48] sm:$0xff]
      %v1472 = vld [vmem:[%s1461 + $0x50] sm:$0xff]
      %v1473 = vld [vmem:[%s1461 + $0x58] sm:$0xff]
      %v1474 = vld [vmem:[%s1461 + $0x60] sm:$0xff]
      %v1475 = vld [vmem:[%s1461 + $0x68] sm:$0xff]
      %v1476 = vld [vmem:[%s1461 + $0x70] sm:$0xff]
      %v1477 = vld [vmem:[%s1461 + $0x78] sm:$0xff]
      %v1478 = vld [vmem:[%s3 + $0xc] sm:$0x1]
      %v1479 = vlaneseq
      %v1480 = vshrl.u32 %v1479, 7
      %v1481 = vsub.s32 0, %v1480
      %v1482 = vrot.slane %v1478, %v1481
      %1483 = vmatprep.subr.mxu0 0.0
      %1484 = vmatpush1.msra.mxu0 %v1462
      %1485 = vmatprep.subr.mxu0 0.0
      %1486 = vmatpush1.msra.mxu0 %v1463
      %1487 = vmatprep.subr.mxu0 0.0
      %1488 = vmatpush1.msra.mxu0 %v1464
      %1489 = vmatprep.subr.mxu0 0.0
      %1490 = vmatpush1.msra.mxu0 %v1465
      %1491 = vmatprep.subr.mxu0 0.0
      %1492 = vmatpush1.msra.mxu0 %v1466
      %1493 = vmatprep.subr.mxu0 0.0
      %1494 = vmatpush1.msra.mxu0 %v1467
      %1495 = vmatprep.subr.mxu0 0.0
      %1496 = vmatpush1.msra.mxu0 %v1468
      %1497 = vmatprep.subr.mxu0 0.0
      %1498 = vmatpush1.msra.mxu0 %v1469
      %1499 = vmatprep.subr.mxu0 0.0
      %1500 = vmatpush1.msra.mxu0 %v1470
      %1501 = vmatprep.subr.mxu0 0.0
      %1502 = vmatpush1.msra.mxu0 %v1471
      %1503 = vmatprep.subr.mxu0 0.0
      %1504 = vmatpush1.msra.mxu0 %v1472
      %1505 = vmatprep.subr.mxu0 0.0
      %1506 = vmatpush1.msra.mxu0 %v1473
      %1507 = vmatprep.subr.mxu0 0.0
      %1508 = vmatpush1.msra.mxu0 %v1474
      %1509 = vmatprep.subr.mxu0 0.0
      %1510 = vmatpush1.msra.mxu0 %v1475
      %1511 = vmatprep.subr.mxu0 0.0
      %1512 = vmatpush1.msra.mxu0 %v1476
      %1513 = vmatprep.subr.mxu0 0.0
      %1514 = vmatpush1.msra.mxu0 %v1477
      %1515 = vmatprep.subr.mxu0 0.0
      %1516 = vmatpush1.msra.mxu0 0.0
      %1517 = vmatprep.subr.mxu0 0.0
      %1518 = vmatpush1.msra.mxu0 0.0
      %1519 = vmatprep.subr.mxu0 0.0
      %1520 = vmatpush1.msra.mxu0 0.0
      %1521 = vmatprep.subr.mxu0 0.0
      %1522 = vmatpush1.msra.mxu0 0.0
      %1523 = vmatprep.subr.mxu0 0.0
      %1524 = vmatpush1.msra.mxu0 0.0
      %1525 = vmatprep.subr.mxu0 0.0
      %1526 = vmatpush1.msra.mxu0 0.0
      %1527 = vmatprep.subr.mxu0 0.0
      %1528 = vmatpush1.msra.mxu0 0.0
      %1529 = vmatprep.subr.mxu0 0.0
      %1530 = vmatpush1.msra.mxu0 0.0
      %1531 = vmatprep.subr.mxu0 0.0
      %1532 = vmatpush1.msra.mxu0 0.0
      %1533 = vmatprep.subr.mxu0 0.0
      %1534 = vmatpush1.msra.mxu0 0.0
      %1535 = vmatprep.subr.mxu0 0.0
      %1536 = vmatpush1.msra.mxu0 0.0
      %1537 = vmatprep.subr.mxu0 0.0
      %1538 = vmatpush1.msra.mxu0 0.0
      %1539 = vmatprep.subr.mxu0 0.0
      %1540 = vmatpush1.msra.mxu0 0.0
      %1541 = vmatprep.subr.mxu0 0.0
      %1542 = vmatpush1.msra.mxu0 0.0
      %1543 = vmatprep.subr.mxu0 0.0
      %1544 = vmatpush1.msra.mxu0 0.0
      %1545 = vmatprep.subr.mxu0 0.0
      %1546 = vmatpush1.msra.mxu0 0.0
      %1547 = vmatprep.mubr.f32.mxu0 0.0
      %1548 = vmatmul.mubr.f32.gmra.mrb[0].mxu0 %v1271
      %v1549 = vpop.f32.mrb[0].mxu0
      %v1550 = vadd.f32 %v1482, %v1549
      %v1551 = vpop.f32.mrb[0].mxu0
      %1552 = vdwg.mxu0
      %v1553 = vmul.f32 %v1366, 0.17677669
      %1554 = vmatprep.subr.mxu0 0.0
      %1555 = vmatpush1.xpose.msra.mxu0 %v1458
      %1556 = vmatprep.subr.mxu0 0.0
      %1557 = vmatpush1.xpose.msra.mxu0 0.0
      %1558 = vmatprep.subr.mxu0 0.0
      %1559 = vmatpush1.xpose.msra.mxu0 0.0
      %1560 = vmatprep.subr.mxu0 0.0
      %1561 = vmatpush1.xpose.msra.mxu0 0.0
      %1562 = vmatprep.subr.mxu0 0.0
      %1563 = vmatpush1.xpose.msra.mxu0 0.0
      %1564 = vmatprep.subr.mxu0 0.0
      %1565 = vmatpush1.xpose.msra.mxu0 0.0
      %1566 = vmatprep.subr.mxu0 0.0
      %1567 = vmatpush1.xpose.msra.mxu0 0.0
      %1568 = vmatprep.subr.mxu0 0.0
      %1569 = vmatpush1.xpose.msra.mxu0 0.0
      %1570 = vmatprep.subr.mxu0 0.0
      %1571 = vmatpush1.xpose.msra.mxu0 0.0
      %1572 = vmatprep.subr.mxu0 0.0
      %1573 = vmatpush1.xpose.msra.mxu0 0.0
      %1574 = vmatprep.subr.mxu0 0.0
      %1575 = vmatpush1.xpose.msra.mxu0 0.0
      %1576 = vmatprep.subr.mxu0 0.0
      %1577 = vmatpush1.xpose.msra.mxu0 0.0
      %1578 = vmatprep.subr.mxu0 0.0
      %1579 = vmatpush1.xpose.msra.mxu0 0.0
      %1580 = vmatprep.subr.mxu0 0.0
      %1581 = vmatpush1.xpose.msra.mxu0 0.0
      %1582 = vmatprep.subr.mxu0 0.0
      %1583 = vmatpush1.xpose.msra.mxu0 0.0
      %1584 = vmatprep.subr.mxu0 0.0
      %1585 = vmatpush1.xpose.msra.mxu0 0.0
      %1586 = vmatprep.subr.mxu0 0.0
      %1587 = vmatpush1.xpose.msra.mxu0 0.0
      %1588 = vmatprep.subr.mxu0 0.0
      %1589 = vmatpush1.xpose.msra.mxu0 0.0
      %1590 = vmatprep.subr.mxu0 0.0
      %1591 = vmatpush1.xpose.msra.mxu0 0.0
      %1592 = vmatprep.subr.mxu0 0.0
      %1593 = vmatpush1.xpose.msra.mxu0 0.0
      %1594 = vmatprep.subr.mxu0 0.0
      %1595 = vmatpush1.xpose.msra.mxu0 0.0
      %1596 = vmatprep.subr.mxu0 0.0
      %1597 = vmatpush1.xpose.msra.mxu0 0.0
      %1598 = vmatprep.subr.mxu0 0.0
      %1599 = vmatpush1.xpose.msra.mxu0 0.0
      %1600 = vmatprep.subr.mxu0 0.0
      %1601 = vmatpush1.xpose.msra.mxu0 0.0
      %1602 = vmatprep.subr.mxu0 0.0
      %1603 = vmatpush1.xpose.msra.mxu0 0.0
      %1604 = vmatprep.subr.mxu0 0.0
      %1605 = vmatpush1.xpose.msra.mxu0 0.0
      %1606 = vmatprep.subr.mxu0 0.0
      %1607 = vmatpush1.xpose.msra.mxu0 0.0
      %1608 = vmatprep.subr.mxu0 0.0
      %1609 = vmatpush1.xpose.msra.mxu0 0.0
      %1610 = vmatprep.subr.mxu0 0.0
      %1611 = vmatpush1.xpose.msra.mxu0 0.0
      %1612 = vmatprep.subr.mxu0 0.0
      %1613 = vmatpush1.xpose.msra.mxu0 0.0
      %1614 = vmatprep.subr.mxu0 0.0
      %1615 = vmatpush1.xpose.msra.mxu0 0.0
      %1616 = vmatprep.subr.mxu0 0.0
      %1617 = vmatpush1.xpose.msra.mxu0 0.0
      %1618 = vmatprep.mubr.f32.mxu0 0.0
      %1619 = vmatmul.mubr.f32.gmra.mrb[0].mxu0 %v1553
      %v1620 = vpop.f32.mrb[0].mxu0
      %v1621 = vadd.f32 0.0, %v1620
      %v1622 = vpop.f32.mrb[0].mxu0
      %1623 = vdwg.mxu0
      %v1624 = vsel %vm1276, %v1621, -1e+30
      %vm1625 = vcmask 64512
      %v1626 = vsel %vm1625, %v1624, -inf
      %1627 = vmax.xlane.f32.xlu0 %v1626
      %v1628 = vpop.xlane.xlu0 %1627
      %v1629 = vsub.f32 %v1624, %v1628
      %v1630 = vmul.f32 %v1629, 1.442695
      %v1631 = vpow.pop %v1630
      %v1632 = vsel %vm1625, %v1631, 0.0
      %1633 = vadd.xlane.f32.xlu0 %v1632
      %v1634 = vpop.xlane.xlu0 %1633
      %v1635 = vrcp.pop %v1634
      %v1636 = vmul.f32 %v1631, %v1635
      %v1638 = vsel %vm1625, %v1636, 0
      %1640 = vmatprep.subr.mxu0 0.0
      %1641 = vmatpush1.msra.mxu0 %v1550
      %1642 = vmatprep.subr.mxu0 0.0
      %1643 = vmatpush1.msra.mxu0 0.0
      %1644 = vmatprep.subr.mxu0 0.0
      %1645 = vmatpush1.msra.mxu0 0.0
      %1646 = vmatprep.subr.mxu0 0.0
      %1647 = vmatpush1.msra.mxu0 0.0
      %1648 = vmatprep.subr.mxu0 0.0
      %1649 = vmatpush1.msra.mxu0 0.0
      %1650 = vmatprep.subr.mxu0 0.0
      %1651 = vmatpush1.msra.mxu0 0.0
      %1652 = vmatprep.subr.mxu0 0.0
      %1653 = vmatpush1.msra.mxu0 0.0
      %1654 = vmatprep.subr.mxu0 0.0
      %1655 = vmatpush1.msra.mxu0 0.0
      %1656 = vmatprep.subr.mxu0 0.0
      %1657 = vmatpush1.msra.mxu0 0.0
      %1658 = vmatprep.subr.mxu0 0.0
      %1659 = vmatpush1.msra.mxu0 0.0
      %1660 = vmatprep.subr.mxu0 0.0
      %1661 = vmatpush1.msra.mxu0 0.0
      %1662 = vmatprep.subr.mxu0 0.0
      %1663 = vmatpush1.msra.mxu0 0.0
      %1664 = vmatprep.subr.mxu0 0.0
      %1665 = vmatpush1.msra.mxu0 0.0
      %1666 = vmatprep.subr.mxu0 0.0
      %1667 = vmatpush1.msra.mxu0 0.0
      %1668 = vmatprep.subr.mxu0 0.0
      %1669 = vmatpush1.msra.mxu0 0.0
      %1670 = vmatprep.subr.mxu0 0.0
      %1671 = vmatpush1.msra.mxu0 0.0
      %1672 = vmatprep.subr.mxu0 0.0
      %1673 = vmatpush1.msra.mxu0 0.0
      %1674 = vmatprep.subr.mxu0 0.0
      %1675 = vmatpush1.msra.mxu0 0.0
      %1676 = vmatprep.subr.mxu0 0.0
      %1677 = vmatpush1.msra.mxu0 0.0
      %1678 = vmatprep.subr.mxu0 0.0
      %1679 = vmatpush1.msra.mxu0 0.0
      %1680 = vmatprep.subr.mxu0 0.0
      %1681 = vmatpush1.msra.mxu0 0.0
      %1682 = vmatprep.subr.mxu0 0.0
      %1683 = vmatpush1.msra.mxu0 0.0
      %1684 = vmatprep.subr.mxu0 0.0
      %1685 = vmatpush1.msra.mxu0 0.0
      %1686 = vmatprep.subr.mxu0 0.0
      %1687 = vmatpush1.msra.mxu0 0.0
      %1688 = vmatprep.subr.mxu0 0.0
      %1689 = vmatpush1.msra.mxu0 0.0
      %1690 = vmatprep.subr.mxu0 0.0
      %1691 = vmatpush1.msra.mxu0 0.0
      %1692 = vmatprep.subr.mxu0 0.0
      %1693 = vmatpush1.msra.mxu0 0.0
      %1694 = vmatprep.subr.mxu0 0.0
      %1695 = vmatpush1.msra.mxu0 0.0
      %1696 = vmatprep.subr.mxu0 0.0
      %1697 = vmatpush1.msra.mxu0 0.0
      %1698 = vmatprep.subr.mxu0 0.0
      %1699 = vmatpush1.msra.mxu0 0.0
      %1700 = vmatprep.subr.mxu0 0.0
      %1701 = vmatpush1.msra.mxu0 0.0
      %1702 = vmatprep.subr.mxu0 0.0
      %1703 = vmatpush1.msra.mxu0 0.0
      %1704 = vmatprep.mubr.f32.mxu0 0.0
      %1705 = vmatmul.mubr.f32.gmra.mrb[0].mxu0 %v1638
      %v1706 = vpop.f32.mrb[0].mxu0
      %v1707 = vadd.f32 0.0, %v1706
      %v1708 = vpop.f32.mrb[0].mxu0
      %1709 = vdwg.mxu0
      %s1710 = scalar_lea.vmem %s2, 1536
      %v1711 = vld [vmem:[%s1710] sm:$0xff]
      %v1712 = vld [vmem:[%s1710 + $0x8] sm:$0xff]
      %v1713 = vld [vmem:[%s1710 + $0x10] sm:$0xff]
      %v1714 = vld [vmem:[%s1710 + $0x18] sm:$0xff]
      %v1715 = vld [vmem:[%s1710 + $0x20] sm:$0xff]
      %v1716 = vld [vmem:[%s1710 + $0x28] sm:$0xff]
      %v1717 = vld [vmem:[%s1710 + $0x30] sm:$0xff]
      %v1718 = vld [vmem:[%s1710 + $0x38] sm:$0xff]
      %v1719 = vld [vmem:[%s1710 + $0x40] sm:$0xff]
      %v1720 = vld [vmem:[%s1710 + $0x48] sm:$0xff]
      %v1721 = vld [vmem:[%s1710 + $0x50] sm:$0xff]
      %v1722 = vld [vmem:[%s1710 + $0x58] sm:$0xff]
      %v1723 = vld [vmem:[%s1710 + $0x60] sm:$0xff]
      %v1724 = vld [vmem:[%s1710 + $0x68] sm:$0xff]
      %v1725 = vld [vmem:[%s1710 + $0x70] sm:$0xff]
      %v1726 = vld [vmem:[%s1710 + $0x78] sm:$0xff]
      %v1727 = vld [vmem:[%s3 + $0xd] sm:$0x1]
      %v1728 = vlaneseq
      %v1729 = vshrl.u32 %v1728, 7
      %v1730 = vsub.s32 0, %v1729
      %v1731 = vrot.slane %v1727, %v1730
      %1732 = vmatprep.subr.mxu0 0.0
      %1733 = vmatpush1.msra.mxu0 %v1711
      %1734 = vmatprep.subr.mxu0 0.0
      %1735 = vmatpush1.msra.mxu0 %v1712
      %1736 = vmatprep.subr.mxu0 0.0
      %1737 = vmatpush1.msra.mxu0 %v1713
      %1738 = vmatprep.subr.mxu0 0.0
      %1739 = vmatpush1.msra.mxu0 %v1714
      %1740 = vmatprep.subr.mxu0 0.0
      %1741 = vmatpush1.msra.mxu0 %v1715
      %1742 = vmatprep.subr.mxu0 0.0
      %1743 = vmatpush1.msra.mxu0 %v1716
      %1744 = vmatprep.subr.mxu0 0.0
      %1745 = vmatpush1.msra.mxu0 %v1717
      %1746 = vmatprep.subr.mxu0 0.0
      %1747 = vmatpush1.msra.mxu0 %v1718
      %1748 = vmatprep.subr.mxu0 0.0
      %1749 = vmatpush1.msra.mxu0 %v1719
      %1750 = vmatprep.subr.mxu0 0.0
      %1751 = vmatpush1.msra.mxu0 %v1720
      %1752 = vmatprep.subr.mxu0 0.0
      %1753 = vmatpush1.msra.mxu0 %v1721
      %1754 = vmatprep.subr.mxu0 0.0
      %1755 = vmatpush1.msra.mxu0 %v1722
      %1756 = vmatprep.subr.mxu0 0.0
      %1757 = vmatpush1.msra.mxu0 %v1723
      %1758 = vmatprep.subr.mxu0 0.0
      %1759 = vmatpush1.msra.mxu0 %v1724
      %1760 = vmatprep.subr.mxu0 0.0
      %1761 = vmatpush1.msra.mxu0 %v1725
      %1762 = vmatprep.subr.mxu0 0.0
      %1763 = vmatpush1.msra.mxu0 %v1726
      %1764 = vmatprep.subr.mxu0 0.0
      %1765 = vmatpush1.msra.mxu0 0.0
      %1766 = vmatprep.subr.mxu0 0.0
      %1767 = vmatpush1.msra.mxu0 0.0
      %1768 = vmatprep.subr.mxu0 0.0
      %1769 = vmatpush1.msra.mxu0 0.0
      %1770 = vmatprep.subr.mxu0 0.0
      %1771 = vmatpush1.msra.mxu0 0.0
      %1772 = vmatprep.subr.mxu0 0.0
      %1773 = vmatpush1.msra.mxu0 0.0
      %1774 = vmatprep.subr.mxu0 0.0
      %1775 = vmatpush1.msra.mxu0 0.0
      %1776 = vmatprep.subr.mxu0 0.0
      %1777 = vmatpush1.msra.mxu0 0.0
      %1778 = vmatprep.subr.mxu0 0.0
      %1779 = vmatpush1.msra.mxu0 0.0
      %1780 = vmatprep.subr.mxu0 0.0
      %1781 = vmatpush1.msra.mxu0 0.0
      %1782 = vmatprep.subr.mxu0 0.0
      %1783 = vmatpush1.msra.mxu0 0.0
      %1784 = vmatprep.subr.mxu0 0.0
      %1785 = vmatpush1.msra.mxu0 0.0
      %1786 = vmatprep.subr.mxu0 0.0
      %1787 = vmatpush1.msra.mxu0 0.0
      %1788 = vmatprep.subr.mxu0 0.0
      %1789 = vmatpush1.msra.mxu0 0.0
      %1790 = vmatprep.subr.mxu0 0.0
      %1791 = vmatpush1.msra.mxu0 0.0
      %1792 = vmatprep.subr.mxu0 0.0
      %1793 = vmatpush1.msra.mxu0 0.0
      %1794 = vmatprep.subr.mxu0 0.0
      %1795 = vmatpush1.msra.mxu0 0.0
      %1796 = vmatprep.mubr.f32.mxu0 0.0
      %1797 = vmatmul.mubr.f32.gmra.mrb[0].mxu0 %v1707
      %v1798 = vpop.f32.mrb[0].mxu0
      %v1799 = vadd.f32 %v1731, %v1798
      %v1800 = vpop.f32.mrb[0].mxu0
      %1801 = vdwg.mxu0
      %v1802 = vadd.f32 %v1271, %v1799
      %1803 = vadd.xlane.f32.xlu0 %v1802
      %v1804 = vpop.xlane.xlu0 %1803
      %v1805 = vmul.f32 %v1804, 0.03125
      %v1806 = vsub.f32 %v1802, %v1805
      %v1807 = vmul.f32 %v1806, %v217
      %v1808 = vmul.f32 %v1807, %v1807
      %1809 = vadd.xlane.f32.xlu0 %v1808
      %v1810 = vpop.xlane.xlu0 %1809
      %v1811 = vmul.f32 %v1810, 0.03125
      %v1812 = vadd.f32 %v1811, 1e-05
      %v1813 = vrsqrt.pop %v1812
      %v1814 = vmul.f32 %v1807, %v1813
      %v1815 = vld [vmem:[%s3 + $0xe] sm:$0x1]
      %v1816 = vlaneseq
      %v1817 = vshrl.u32 %v1816, 7
      %v1818 = vsub.s32 0, %v1817
      %v1819 = vrot.slane %v1815, %v1818
      %v1820 = vmul.f32 %v1814, %v1819
      %v1821 = vld [vmem:[%s3 + $0xf] sm:$0x1]
      %v1822 = vlaneseq
      %v1823 = vshrl.u32 %v1822, 7
      %v1824 = vsub.s32 0, %v1823
      %v1825 = vrot.slane %v1821, %v1824
      %v1826 = vadd.f32 %v1820, %v1825
      %s1827 = scalar_lea.vmem %s2, 1664
      %v1828 = vld [vmem:[%s1827] sm:$0xff]
      %v1829 = vld [vmem:[%s1827 + $0x8] sm:$0xff]
      %v1830 = vld [vmem:[%s1827 + $0x10] sm:$0xff]
      %v1831 = vld [vmem:[%s1827 + $0x18] sm:$0xff]
      %v1832 = vld [vmem:[%s1827 + $0x20] sm:$0xff]
      %v1833 = vld [vmem:[%s1827 + $0x28] sm:$0xff]
      %v1834 = vld [vmem:[%s1827 + $0x30] sm:$0xff]
      %v1835 = vld [vmem:[%s1827 + $0x38] sm:$0xff]
      %v1836 = vld [vmem:[%s1827 + $0x40] sm:$0xff]
      %v1837 = vld [vmem:[%s1827 + $0x48] sm:$0xff]
      %v1838 = vld [vmem:[%s1827 + $0x50] sm:$0xff]
      %v1839 = vld [vmem:[%s1827 + $0x58] sm:$0xff]
      %v1840 = vld [vmem:[%s1827 + $0x60] sm:$0xff]
      %v1841 = vld [vmem:[%s1827 + $0x68] sm:$0xff]
      %v1842 = vld [vmem:[%s1827 + $0x70] sm:$0xff]
      %v1843 = vld [vmem:[%s1827 + $0x78] sm:$0xff]
      %v1844 = vld [vmem:[%s3 + $0x10] sm:$0x1]
      %v1845 = vlaneseq
      %v1846 = vshrl.u32 %v1845, 7
      %v1847 = vsub.s32 0, %v1846
      %v1848 = vrot.slane %v1844, %v1847
      %1849 = vmatprep.subr.mxu0 0.0
      %1850 = vmatpush1.msra.mxu0 %v1828
      %1851 = vmatprep.subr.mxu0 0.0
      %1852 = vmatpush1.msra.mxu0 %v1829
      %1853 = vmatprep.subr.mxu0 0.0
      %1854 = vmatpush1.msra.mxu0 %v1830
      %1855 = vmatprep.subr.mxu0 0.0
      %1856 = vmatpush1.msra.mxu0 %v1831
      %1857 = vmatprep.subr.mxu0 0.0
      %1858 = vmatpush1.msra.mxu0 %v1832
      %1859 = vmatprep.subr.mxu0 0.0
      %1860 = vmatpush1.msra.mxu0 %v1833
      %1861 = vmatprep.subr.mxu0 0.0
      %1862 = vmatpush1.msra.mxu0 %v1834
      %1863 = vmatprep.subr.mxu0 0.0
      %1864 = vmatpush1.msra.mxu0 %v1835
      %1865 = vmatprep.subr.mxu0 0.0
      %1866 = vmatpush1.msra.mxu0 %v1836
      %1867 = vmatprep.subr.mxu0 0.0
      %1868 = vmatpush1.msra.mxu0 %v1837
      %1869 = vmatprep.subr.mxu0 0.0
      %1870 = vmatpush1.msra.mxu0 %v1838
      %1871 = vmatprep.subr.mxu0 0.0
      %1872 = vmatpush1.msra.mxu0 %v1839
      %1873 = vmatprep.subr.mxu0 0.0
      %1874 = vmatpush1.msra.mxu0 %v1840
      %1875 = vmatprep.subr.mxu0 0.0
      %1876 = vmatpush1.msra.mxu0 %v1841
      %1877 = vmatprep.subr.mxu0 0.0
      %1878 = vmatpush1.msra.mxu0 %v1842
      %1879 = vmatprep.subr.mxu0 0.0
      %1880 = vmatpush1.msra.mxu0 %v1843
      %1881 = vmatprep.subr.mxu0 0.0
      %1882 = vmatpush1.msra.mxu0 0.0
      %1883 = vmatprep.subr.mxu0 0.0
      %1884 = vmatpush1.msra.mxu0 0.0
      %1885 = vmatprep.subr.mxu0 0.0
      %1886 = vmatpush1.msra.mxu0 0.0
      %1887 = vmatprep.subr.mxu0 0.0
      %1888 = vmatpush1.msra.mxu0 0.0
      %1889 = vmatprep.subr.mxu0 0.0
      %1890 = vmatpush1.msra.mxu0 0.0
      %1891 = vmatprep.subr.mxu0 0.0
      %1892 = vmatpush1.msra.mxu0 0.0
      %1893 = vmatprep.subr.mxu0 0.0
      %1894 = vmatpush1.msra.mxu0 0.0
      %1895 = vmatprep.subr.mxu0 0.0
      %1896 = vmatpush1.msra.mxu0 0.0
      %1897 = vmatprep.subr.mxu0 0.0
      %1898 = vmatpush1.msra.mxu0 0.0
      %1899 = vmatprep.subr.mxu0 0.0
      %1900 = vmatpush1.msra.mxu0 0.0
      %1901 = vmatprep.subr.mxu0 0.0
      %1902 = vmatpush1.msra.mxu0 0.0
      %1903 = vmatprep.subr.mxu0 0.0
      %1904 = vmatpush1.msra.mxu0 0.0
      %1905 = vmatprep.subr.mxu0 0.0
      %1906 = vmatpush1.msra.mxu0 0.0
      %1907 = vmatprep.subr.mxu0 0.0
      %1908 = vmatpush1.msra.mxu0 0.0
      %1909 = vmatprep.subr.mxu0 0.0
      %1910 = vmatpush1.msra.mxu0 0.0
      %1911 = vmatprep.subr.mxu0 0.0
      %1912 = vmatpush1.msra.mxu0 0.0
      %1913 = vmatprep.mubr.f32.mxu0 0.0
      %1914 = vmatmul.mubr.f32.gmra.mrb[0].mxu0 %v1826
      %v1915 = vpop.f32.mrb[0].mxu0
      %v1916 = vadd.f32 %v1848, %v1915
      %v1917 = vpop.f32.mrb[0].mxu0
      %1918 = vdwg.mxu0
      %s1919 = scalar_lea.vmem %s2, 1792
      %v1920 = vld [vmem:[%s1919] sm:$0xff]
      %v1921 = vld [vmem:[%s1919 + $0x8] sm:$0xff]
      %v1922 = vld [vmem:[%s1919 + $0x10] sm:$0xff]
      %v1923 = vld [vmem:[%s1919 + $0x18] sm:$0xff]
      %v1924 = vld [vmem:[%s1919 + $0x20] sm:$0xff]
      %v1925 = vld [vmem:[%s1919 + $0x28] sm:$0xff]
      %v1926 = vld [vmem:[%s1919 + $0x30] sm:$0xff]
      %v1927 = vld [vmem:[%s1919 + $0x38] sm:$0xff]
      %v1928 = vld [vmem:[%s1919 + $0x40] sm:$0xff]
      %v1929 = vld [vmem:[%s1919 + $0x48] sm:$0xff]
      %v1930 = vld [vmem:[%s1919 + $0x50] sm:$0xff]
      %v1931 = vld [vmem:[%s1919 + $0x58] sm:$0xff]
      %v1932 = vld [vmem:[%s1919 + $0x60] sm:$0xff]
      %v1933 = vld [vmem:[%s1919 + $0x68] sm:$0xff]
      %v1934 = vld [vmem:[%s1919 + $0x70] sm:$0xff]
      %v1935 = vld [vmem:[%s1919 + $0x78] sm:$0xff]
      %v1936 = vld [vmem:[%s3 + $0x11] sm:$0x1]
      %v1937 = vlaneseq
      %v1938 = vshrl.u32 %v1937, 7
      %v1939 = vsub.s32 0, %v1938
      %v1940 = vrot.slane %v1936, %v1939
      %1941 = vmatprep.subr.mxu0 0.0
      %1942 = vmatpush1.msra.mxu0 %v1920
      %1943 = vmatprep.subr.mxu0 0.0
      %1944 = vmatpush1.msra.mxu0 %v1921
      %1945 = vmatprep.subr.mxu0 0.0
      %1946 = vmatpush1.msra.mxu0 %v1922
      %1947 = vmatprep.subr.mxu0 0.0
      %1948 = vmatpush1.msra.mxu0 %v1923
      %1949 = vmatprep.subr.mxu0 0.0
      %1950 = vmatpush1.msra.mxu0 %v1924
      %1951 = vmatprep.subr.mxu0 0.0
      %1952 = vmatpush1.msra.mxu0 %v1925
      %1953 = vmatprep.subr.mxu0 0.0
      %1954 = vmatpush1.msra.mxu0 %v1926
      %1955 = vmatprep.subr.mxu0 0.0
      %1956 = vmatpush1.msra.mxu0 %v1927
      %1957 = vmatprep.subr.mxu0 0.0
      %1958 = vmatpush1.msra.mxu0 %v1928
      %1959 = vmatprep.subr.mxu0 0.0
      %1960 = vmatpush1.msra.mxu0 %v1929
      %1961 = vmatprep.subr.mxu0 0.0
      %1962 = vmatpush1.msra.mxu0 %v1930
      %1963 = vmatprep.subr.mxu0 0.0
      %1964 = vmatpush1.msra.mxu0 %v1931
      %1965 = vmatprep.subr.mxu0 0.0
      %1966 = vmatpush1.msra.mxu0 %v1932
      %1967 = vmatprep.subr.mxu0 0.0
      %1968 = vmatpush1.msra.mxu0 %v1933
      %1969 = vmatprep.subr.mxu0 0.0
      %1970 = vmatpush1.msra.mxu0 %v1934
      %1971 = vmatprep.subr.mxu0 0.0
      %1972 = vmatpush1.msra.mxu0 %v1935
      %1973 = vmatprep.subr.mxu0 0.0
      %1974 = vmatpush1.msra.mxu0 0.0
      %1975 = vmatprep.subr.mxu0 0.0
      %1976 = vmatpush1.msra.mxu0 0.0
      %1977 = vmatprep.subr.mxu0 0.0
      %1978 = vmatpush1.msra.mxu0 0.0
      %1979 = vmatprep.subr.mxu0 0.0
      %1980 = vmatpush1.msra.mxu0 0.0
      %1981 = vmatprep.subr.mxu0 0.0
      %1982 = vmatpush1.msra.mxu0 0.0
      %1983 = vmatprep.subr.mxu0 0.0
      %1984 = vmatpush1.msra.mxu0 0.0
      %1985 = vmatprep.subr.mxu0 0.0
      %1986 = vmatpush1.msra.mxu0 0.0
      %1987 = vmatprep.subr.mxu0 0.0
      %1988 = vmatpush1.msra.mxu0 0.0
      %1989 = vmatprep.subr.mxu0 0.0
      %1990 = vmatpush1.msra.mxu0 0.0
      %1991 = vmatprep.subr.mxu0 0.0
      %1992 = vmatpush1.msra.mxu0 0.0
      %1993 = vmatprep.subr.mxu0 0.0
      %1994 = vmatpush1.msra.mxu0 0.0
      %1995 = vmatprep.subr.mxu0 0.0
      %1996 = vmatpush1.msra.mxu0 0.0
      %1997 = vmatprep.subr.mxu0 0.0
      %1998 = vmatpush1.msra.mxu0 0.0
      %1999 = vmatprep.subr.mxu0 0.0
      %2000 = vmatpush1.msra.mxu0 0.0
      %2001 = vmatprep.subr.mxu0 0.0
      %2002 = vmatpush1.msra.mxu0 0.0
      %2003 = vmatprep.subr.mxu0 0.0
      %2004 = vmatpush1.msra.mxu0 0.0
      %2005 = vmatprep.mubr.f32.mxu0 0.0
      %2006 = vmatmul.mubr.f32.gmra.mrb[0].mxu0 %v1178
      %v2007 = vpop.f32.mrb[0].mxu0
      %v2008 = vadd.f32 %v1940, %v2007
      %v2009 = vpop.f32.mrb[0].mxu0
      %2010 = vmatprep.mubr.f32.mxu0 0.0
      %2011 = vmatmul.mubr.f32.gmra.mrb[0].mxu0 %v1179
      %v2012 = vpop.f32.mrb[0].mxu0
      %v2013 = vadd.f32 %v1940, %v2012
      %v2014 = vpop.f32.mrb[0].mxu0
      %2015 = vdwg.mxu0
      %s2016 = scalar_lea.vmem %s2, 1920
      %v2017 = vld [vmem:[%s2016] sm:$0xff]
      %v2018 = vld [vmem:[%s2016 + $0x8] sm:$0xff]
      %v2019 = vld [vmem:[%s2016 + $0x10] sm:$0xff]
      %v2020 = vld [vmem:[%s2016 + $0x18] sm:$0xff]
      %v2021 = vld [vmem:[%s2016 + $0x20] sm:$0xff]
      %v2022 = vld [vmem:[%s2016 + $0x28] sm:$0xff]
      %v2023 = vld [vmem:[%s2016 + $0x30] sm:$0xff]
      %v2024 = vld [vmem:[%s2016 + $0x38] sm:$0xff]
      %v2025 = vld [vmem:[%s2016 + $0x40] sm:$0xff]
      %v2026 = vld [vmem:[%s2016 + $0x48] sm:$0xff]
      %v2027 = vld [vmem:[%s2016 + $0x50] sm:$0xff]
      %v2028 = vld [vmem:[%s2016 + $0x58] sm:$0xff]
      %v2029 = vld [vmem:[%s2016 + $0x60] sm:$0xff]
      %v2030 = vld [vmem:[%s2016 + $0x68] sm:$0xff]
      %v2031 = vld [vmem:[%s2016 + $0x70] sm:$0xff]
      %v2032 = vld [vmem:[%s2016 + $0x78] sm:$0xff]
      %v2033 = vld [vmem:[%s3 + $0x12] sm:$0x1]
      %v2034 = vlaneseq
      %v2035 = vshrl.u32 %v2034, 7
      %v2036 = vsub.s32 0, %v2035
      %v2037 = vrot.slane %v2033, %v2036
      %2038 = vmatprep.subr.mxu0 0.0
      %2039 = vmatpush1.msra.mxu0 %v2017
      %2040 = vmatprep.subr.mxu0 0.0
      %2041 = vmatpush1.msra.mxu0 %v2018
      %2042 = vmatprep.subr.mxu0 0.0
      %2043 = vmatpush1.msra.mxu0 %v2019
      %2044 = vmatprep.subr.mxu0 0.0
      %2045 = vmatpush1.msra.mxu0 %v2020
      %2046 = vmatprep.subr.mxu0 0.0
      %2047 = vmatpush1.msra.mxu0 %v2021
      %2048 = vmatprep.subr.mxu0 0.0
      %2049 = vmatpush1.msra.mxu0 %v2022
      %2050 = vmatprep.subr.mxu0 0.0
      %2051 = vmatpush1.msra.mxu0 %v2023
      %2052 = vmatprep.subr.mxu0 0.0
      %2053 = vmatpush1.msra.mxu0 %v2024
      %2054 = vmatprep.subr.mxu0 0.0
      %2055 = vmatpush1.msra.mxu0 %v2025
      %2056 = vmatprep.subr.mxu0 0.0
      %2057 = vmatpush1.msra.mxu0 %v2026
      %2058 = vmatprep.subr.mxu0 0.0
      %2059 = vmatpush1.msra.mxu0 %v2027
      %2060 = vmatprep.subr.mxu0 0.0
      %2061 = vmatpush1.msra.mxu0 %v2028
      %2062 = vmatprep.subr.mxu0 0.0
      %2063 = vmatpush1.msra.mxu0 %v2029
      %2064 = vmatprep.subr.mxu0 0.0
      %2065 = vmatpush1.msra.mxu0 %v2030
      %2066 = vmatprep.subr.mxu0 0.0
      %2067 = vmatpush1.msra.mxu0 %v2031
      %2068 = vmatprep.subr.mxu0 0.0
      %2069 = vmatpush1.msra.mxu0 %v2032
      %2070 = vmatprep.subr.mxu0 0.0
      %2071 = vmatpush1.msra.mxu0 0.0
      %2072 = vmatprep.subr.mxu0 0.0
      %2073 = vmatpush1.msra.mxu0 0.0
      %2074 = vmatprep.subr.mxu0 0.0
      %2075 = vmatpush1.msra.mxu0 0.0
      %2076 = vmatprep.subr.mxu0 0.0
      %2077 = vmatpush1.msra.mxu0 0.0
      %2078 = vmatprep.subr.mxu0 0.0
      %2079 = vmatpush1.msra.mxu0 0.0
      %2080 = vmatprep.subr.mxu0 0.0
      %2081 = vmatpush1.msra.mxu0 0.0
      %2082 = vmatprep.subr.mxu0 0.0
      %2083 = vmatpush1.msra.mxu0 0.0
      %2084 = vmatprep.subr.mxu0 0.0
      %2085 = vmatpush1.msra.mxu0 0.0
      %2086 = vmatprep.subr.mxu0 0.0
      %2087 = vmatpush1.msra.mxu0 0.0
      %2088 = vmatprep.subr.mxu0 0.0
      %2089 = vmatpush1.msra.mxu0 0.0
      %2090 = vmatprep.subr.mxu0 0.0
      %2091 = vmatpush1.msra.mxu0 0.0
      %2092 = vmatprep.subr.mxu0 0.0
      %2093 = vmatpush1.msra.mxu0 0.0
      %2094 = vmatprep.subr.mxu0 0.0
      %2095 = vmatpush1.msra.mxu0 0.0
      %2096 = vmatprep.subr.mxu0 0.0
      %2097 = vmatpush1.msra.mxu0 0.0
      %2098 = vmatprep.subr.mxu0 0.0
      %2099 = vmatpush1.msra.mxu0 0.0
      %2100 = vmatprep.subr.mxu0 0.0
      %2101 = vmatpush1.msra.mxu0 0.0
      %2102 = vmatprep.mubr.f32.mxu0 0.0
      %2103 = vmatmul.mubr.f32.gmra.mrb[0].mxu0 %v1178
      %v2104 = vpop.f32.mrb[0].mxu0
      %v2105 = vadd.f32 %v2037, %v2104
      %v2106 = vpop.f32.mrb[0].mxu0
      %2107 = vmatprep.mubr.f32.mxu0 0.0
      %2108 = vmatmul.mubr.f32.gmra.mrb[0].mxu0 %v1179
      %v2109 = vpop.f32.mrb[0].mxu0
      %v2110 = vadd.f32 %v2037, %v2109
      %v2111 = vpop.f32.mrb[0].mxu0
      %2112 = vdwg.mxu0
      %v2113 = vmul.f32 %v1916, 0.17677669
      %2114 = vmatprep.subr.mxu0 0.0
      %2115 = vmatpush1.xpose.msra.mxu0 %v2008
      %2116 = vmatprep.subr.mxu0 0.0
      %2117 = vmatpush1.xpose.msra.mxu0 %v2013
      %2118 = vmatprep.subr.mxu0 0.0
      %2119 = vmatpush1.xpose.msra.mxu0 0.0
      %2120 = vmatprep.subr.mxu0 0.0
      %2121 = vmatpush1.xpose.msra.mxu0 0.0
      %2122 = vmatprep.subr.mxu0 0.0
      %2123 = vmatpush1.xpose.msra.mxu0 0.0
      %2124 = vmatprep.subr.mxu0 0.0
      %2125 = vmatpush1.xpose.msra.mxu0 0.0
      %2126 = vmatprep.subr.mxu0 0.0
      %2127 = vmatpush1.xpose.msra.mxu0 0.0
      %2128 = vmatprep.subr.mxu0 0.0
      %2129 = vmatpush1.xpose.msra.mxu0 0.0
      %2130 = vmatprep.subr.mxu0 0.0
      %2131 = vmatpush1.xpose.msra.mxu0 0.0
      %2132 = vmatprep.subr.mxu0 0.0
      %2133 = vmatpush1.xpose.msra.mxu0 0.0
      %2134 = vmatprep.subr.mxu0 0.0
      %2135 = vmatpush1.xpose.msra.mxu0 0.0
      %2136 = vmatprep.subr.mxu0 0.0
      %2137 = vmatpush1.xpose.msra.mxu0 0.0
      %2138 = vmatprep.subr.mxu0 0.0
      %2139 = vmatpush1.xpose.msra.mxu0 0.0
      %2140 = vmatprep.subr.mxu0 0.0
      %2141 = vmatpush1.xpose.msra.mxu0 0.0
      %2142 = vmatprep.subr.mxu0 0.0
      %2143 = vmatpush1.xpose.msra.mxu0 0.0
      %2144 = vmatprep.subr.mxu0 0.0
      %2145 = vmatpush1.xpose.msra.mxu0 0.0
      %2146 = vmatprep.subr.mxu0 0.0
      %2147 = vmatpush1.xpose.msra.mxu0 0.0
      %2148 = vmatprep.subr.mxu0 0.0
      %2149 = vmatpush1.xpose.msra.mxu0 0.0
      %2150 = vmatprep.subr.mxu0 0.0
      %2151 = vmatpush1.xpose.msra.mxu0 0.0
      %2152 = vmatprep.subr.mxu0 0.0
      %2153 = vmatpush1.xpose.msra.mxu0 0.0
      %2154 = vmatprep.subr.mxu0 0.0
      %2155 = vmatpush1.xpose.msra.mxu0 0.0
      %2156 = vmatprep.subr.mxu0 0.0
      %2157 = vmatpush1.xpose.msra.mxu0 0.0
      %2158 = vmatprep.subr.mxu0 0.0
      %2159 = vmatpush1.xpose.msra.mxu0 0.0
      %2160 = vmatprep.subr.mxu0 0.0
      %2161 = vmatpush1.xpose.msra.mxu0 0.0
      %2162 = vmatprep.subr.mxu0 0.0
      %2163 = vmatpush1.xpose.msra.mxu0 0.0
      %2164 = vmatprep.subr.mxu0 0.0
      %2165 = vmatpush1.xpose.msra.mxu0 0.0
      %2166 = vmatprep.subr.mxu0 0.0
      %2167 = vmatpush1.xpose.msra.mxu0 0.0
      %2168 = vmatprep.subr.mxu0 0.0
      %2169 = vmatpush1.xpose.msra.mxu0 0.0
      %2170 = vmatprep.subr.mxu0 0.0
      %2171 = vmatpush1.xpose.msra.mxu0 0.0
      %2172 = vmatprep.subr.mxu0 0.0
      %2173 = vmatpush1.xpose.msra.mxu0 0.0
      %2174 = vmatprep.subr.mxu0 0.0
      %2175 = vmatpush1.xpose.msra.mxu0 0.0
      %2176 = vmatprep.subr.mxu0 0.0
      %2177 = vmatpush1.xpose.msra.mxu0 0.0
      %2178 = vmatprep.mubr.f32.mxu0 0.0
      %2179 = vmatmul.mubr.f32.gmra.mrb[0].mxu0 %v2113
      %v2180 = vpop.f32.mrb[0].mxu0
      %v2181 = vadd.f32 0.0, %v2180
      %v2182 = vpop.f32.mrb[0].mxu0
      %2183 = vdwg.mxu0
      %v2184 = vsel %vm694, %v2181, -inf
      %2185 = vmax.xlane.f32.xlu0 %v2184
      %v2186 = vpop.xlane.xlu0 %2185
      %v2187 = vsub.f32 %v2181, %v2186
      %v2188 = vmul.f32 %v2187, 1.442695
      %v2189 = vpow.pop %v2188
      %v2190 = vsel %vm694, %v2189, 0.0
      %2191 = vadd.xlane.f32.xlu0 %v2190
      %v2192 = vpop.xlane.xlu0 %2191
      %v2193 = vrcp.pop %v2192
      %v2194 = vmul.f32 %v2189, %v2193
      %v2196 = vsel %vm694, %v2194, 0
      %v2199 = vsel %vm724, %v2110, 0
      %2201 = vmatprep.subr.mxu0 0.0
      %2202 = vmatpush1.msra.mxu0 %v2105
      %2203 = vmatprep.subr.mxu0 0.0
      %2204 = vmatpush1.msra.mxu0 %v2199
      %2205 = vmatprep.subr.mxu0 0.0
      %2206 = vmatpush1.msra.mxu0 0.0
      %2207 = vmatprep.subr.mxu0 0.0
      %2208 = vmatpush1.msra.mxu0 0.0
      %2209 = vmatprep.subr.mxu0 0.0
      %2210 = vmatpush1.msra.mxu0 0.0
      %2211 = vmatprep.subr.mxu0 0.0
      %2212 = vmatpush1.msra.mxu0 0.0
      %2213 = vmatprep.subr.mxu0 0.0
      %2214 = vmatpush1.msra.mxu0 0.0
      %2215 = vmatprep.subr.mxu0 0.0
      %2216 = vmatpush1.msra.mxu0 0.0
      %2217 = vmatprep.subr.mxu0 0.0
      %2218 = vmatpush1.msra.mxu0 0.0
      %2219 = vmatprep.subr.mxu0 0.0
      %2220 = vmatpush1.msra.mxu0 0.0
      %2221 = vmatprep.subr.mxu0 0.0
      %2222 = vmatpush1.msra.mxu0 0.0
      %2223 = vmatprep.subr.mxu0 0.0
      %2224 = vmatpush1.msra.mxu0 0.0
      %2225 = vmatprep.subr.mxu0 0.0
      %2226 = vmatpush1.msra.mxu0 0.0
      %2227 = vmatprep.subr.mxu0 0.0
      %2228 = vmatpush1.msra.mxu0 0.0
      %2229 = vmatprep.subr.mxu0 0.0
      %2230 = vmatpush1.msra.mxu0 0.0
      %2231 = vmatprep.subr.mxu0 0.0
      %2232 = vmatpush1.msra.mxu0 0.0
      %2233 = vmatprep.subr.mxu0 0.0
      %2234 = vmatpush1.msra.mxu0 0.0
      %2235 = vmatprep.subr.mxu0 0.0
      %2236 = vmatpush1.msra.mxu0 0.0
      %2237 = vmatprep.subr.mxu0 0.0
      %2238 = vmatpush1.msra.mxu0 0.0
      %2239 = vmatprep.subr.mxu0 0.0
      %2240 = vmatpush1.msra.mxu0 0.0
      %2241 = vmatprep.subr.mxu0 0.0
      %2242 = vmatpush1.msra.mxu0 0.0
      %2243 = vmatprep.subr.mxu0 0.0
      %2244 = vmatpush1.msra.mxu0 0.0
      %2245 = vmatprep.subr.mxu0 0.0
      %2246 = vmatpush1.msra.mxu0 0.0
      %2247 = vmatprep.subr.mxu0 0.0
      %2248 = vmatpush1.msra.mxu0 0.0
      %2249 = vmatprep.subr.mxu0 0.0
      %2250 = vmatpush1.msra.mxu0 0.0
      %2251 = vmatprep.subr.mxu0 0.0
      %2252 = vmatpush1.msra.mxu0 0.0
      %2253 = vmatprep.subr.mxu0 0.0
      %2254 = vmatpush1.msra.mxu0 0.0
      %2255 = vmatprep.subr.mxu0 0.0
      %2256 = vmatpush1.msra.mxu0 0.0
      %2257 = vmatprep.subr.mxu0 0.0
      %2258 = vmatpush1.msra.mxu0 0.0
      %2259 = vmatprep.subr.mxu0 0.0
      %2260 = vmatpush1.msra.mxu0 0.0
      %2261 = vmatprep.subr.mxu0 0.0
      %2262 = vmatpush1.msra.mxu0 0.0
      %2263 = vmatprep.subr.mxu0 0.0
      %2264 = vmatpush1.msra.mxu0 0.0
      %2265 = vmatprep.mubr.f32.mxu0 0.0
      %2266 = vmatmul.mubr.f32.gmra.mrb[0].mxu0 %v2196
      %v2267 = vpop.f32.mrb[0].mxu0
      %v2268 = vadd.f32 0.0, %v2267
      %v2269 = vpop.f32.mrb[0].mxu0
      %2270 = vdwg.mxu0
      %s2271 = scalar_lea.vmem %s2, 2048
      %v2272 = vld [vmem:[%s2271] sm:$0xff]
      %v2273 = vld [vmem:[%s2271 + $0x8] sm:$0xff]
      %v2274 = vld [vmem:[%s2271 + $0x10] sm:$0xff]
      %v2275 = vld [vmem:[%s2271 + $0x18] sm:$0xff]
      %v2276 = vld [vmem:[%s2271 + $0x20] sm:$0xff]
      %v2277 = vld [vmem:[%s2271 + $0x28] sm:$0xff]
      %v2278 = vld [vmem:[%s2271 + $0x30] sm:$0xff]
      %v2279 = vld [vmem:[%s2271 + $0x38] sm:$0xff]
      %v2280 = vld [vmem:[%s2271 + $0x40] sm:$0xff]
      %v2281 = vld [vmem:[%s2271 + $0x48] sm:$0xff]
      %v2282 = vld [vmem:[%s2271 + $0x50] sm:$0xff]
      %v2283 = vld [vmem:[%s2271 + $0x58] sm:$0xff]
      %v2284 = vld [vmem:[%s2271 + $0x60] sm:$0xff]
      %v2285 = vld [vmem:[%s2271 + $0x68] sm:$0xff]
      %v2286 = vld [vmem:[%s2271 + $0x70] sm:$0xff]
      %v2287 = vld [vmem:[%s2271 + $0x78] sm:$0xff]
      %v2288 = vld [vmem:[%s3 + $0x13] sm:$0x1]
      %v2289 = vlaneseq
      %v2290 = vshrl.u32 %v2289, 7
      %v2291 = vsub.s32 0, %v2290
      %v2292 = vrot.slane %v2288, %v2291
      %2293 = vmatprep.subr.mxu0 0.0
      %2294 = vmatpush1.msra.mxu0 %v2272
      %2295 = vmatprep.subr.mxu0 0.0
      %2296 = vmatpush1.msra.mxu0 %v2273
      %2297 = vmatprep.subr.mxu0 0.0
      %2298 = vmatpush1.msra.mxu0 %v2274
      %2299 = vmatprep.subr.mxu0 0.0
      %2300 = vmatpush1.msra.mxu0 %v2275
      %2301 = vmatprep.subr.mxu0 0.0
      %2302 = vmatpush1.msra.mxu0 %v2276
      %2303 = vmatprep.subr.mxu0 0.0
      %2304 = vmatpush1.msra.mxu0 %v2277
      %2305 = vmatprep.subr.mxu0 0.0
      %2306 = vmatpush1.msra.mxu0 %v2278
      %2307 = vmatprep.subr.mxu0 0.0
      %2308 = vmatpush1.msra.mxu0 %v2279
      %2309 = vmatprep.subr.mxu0 0.0
      %2310 = vmatpush1.msra.mxu0 %v2280
      %2311 = vmatprep.subr.mxu0 0.0
      %2312 = vmatpush1.msra.mxu0 %v2281
      %2313 = vmatprep.subr.mxu0 0.0
      %2314 = vmatpush1.msra.mxu0 %v2282
      %2315 = vmatprep.subr.mxu0 0.0
      %2316 = vmatpush1.msra.mxu0 %v2283
      %2317 = vmatprep.subr.mxu0 0.0
      %2318 = vmatpush1.msra.mxu0 %v2284
      %2319 = vmatprep.subr.mxu0 0.0
      %2320 = vmatpush1.msra.mxu0 %v2285
      %2321 = vmatprep.subr.mxu0 0.0
      %2322 = vmatpush1.msra.mxu0 %v2286
      %2323 = vmatprep.subr.mxu0 0.0
      %2324 = vmatpush1.msra.mxu0 %v2287
      %2325 = vmatprep.subr.mxu0 0.0
      %2326 = vmatpush1.msra.mxu0 0.0
      %2327 = vmatprep.subr.mxu0 0.0
      %2328 = vmatpush1.msra.mxu0 0.0
      %2329 = vmatprep.subr.mxu0 0.0
      %2330 = vmatpush1.msra.mxu0 0.0
      %2331 = vmatprep.subr.mxu0 0.0
      %2332 = vmatpush1.msra.mxu0 0.0
      %2333 = vmatprep.subr.mxu0 0.0
      %2334 = vmatpush1.msra.mxu0 0.0
      %2335 = vmatprep.subr.mxu0 0.0
      %2336 = vmatpush1.msra.mxu0 0.0
      %2337 = vmatprep.subr.mxu0 0.0
      %2338 = vmatpush1.msra.mxu0 0.0
      %2339 = vmatprep.subr.mxu0 0.0
      %2340 = vmatpush1.msra.mxu0 0.0
      %2341 = vmatprep.subr.mxu0 0.0
      %2342 = vmatpush1.msra.mxu0 0.0
      %2343 = vmatprep.subr.mxu0 0.0
      %2344 = vmatpush1.msra.mxu0 0.0
      %2345 = vmatprep.subr.mxu0 0.0
      %2346 = vmatpush1.msra.mxu0 0.0
      %2347 = vmatprep.subr.mxu0 0.0
      %2348 = vmatpush1.msra.mxu0 0.0
      %2349 = vmatprep.subr.mxu0 0.0
      %2350 = vmatpush1.msra.mxu0 0.0
      %2351 = vmatprep.subr.mxu0 0.0
      %2352 = vmatpush1.msra.mxu0 0.0
      %2353 = vmatprep.subr.mxu0 0.0
      %2354 = vmatpush1.msra.mxu0 0.0
      %2355 = vmatprep.subr.mxu0 0.0
      %2356 = vmatpush1.msra.mxu0 0.0
      %2357 = vmatprep.mubr.f32.mxu0 0.0
      %2358 = vmatmul.mubr.f32.gmra.mrb[0].mxu0 %v2268
      %v2359 = vpop.f32.mrb[0].mxu0
      %v2360 = vadd.f32 %v2292, %v2359
      %v2361 = vpop.f32.mrb[0].mxu0
      %2362 = vdwg.mxu0
      %v2363 = vadd.f32 %v1826, %v2360
      %2364 = vadd.xlane.f32.xlu0 %v2363
      %v2365 = vpop.xlane.xlu0 %2364
      %v2366 = vmul.f32 %v2365, 0.03125
      %v2367 = vsub.f32 %v2363, %v2366
      %v2368 = vmul.f32 %v2367, %v217
      %v2369 = vmul.f32 %v2368, %v2368
      %2370 = vadd.xlane.f32.xlu0 %v2369
      %v2371 = vpop.xlane.xlu0 %2370
      %v2372 = vmul.f32 %v2371, 0.03125
      %v2373 = vadd.f32 %v2372, 1e-05
      %v2374 = vrsqrt.pop %v2373
      %v2375 = vmul.f32 %v2368, %v2374
      %v2376 = vld [vmem:[%s3 + $0x14] sm:$0x1]
      %v2377 = vlaneseq
      %v2378 = vshrl.u32 %v2377, 7
      %v2379 = vsub.s32 0, %v2378
      %v2380 = vrot.slane %v2376, %v2379
      %v2381 = vmul.f32 %v2375, %v2380
      %v2382 = vld [vmem:[%s3 + $0x15] sm:$0x1]
      %v2383 = vlaneseq
      %v2384 = vshrl.u32 %v2383, 7
      %v2385 = vsub.s32 0, %v2384
      %v2386 = vrot.slane %v2382, %v2385
      %v2387 = vadd.f32 %v2381, %v2386
      %s2388 = scalar_lea.vmem %s2, 2176
      %v2389 = vld [vmem:[%s2388] sm:$0xff]
      %v2390 = vld [vmem:[%s2388 + $0x8] sm:$0xff]
      %v2391 = vld [vmem:[%s2388 + $0x10] sm:$0xff]
      %v2392 = vld [vmem:[%s2388 + $0x18] sm:$0xff]
      %v2393 = vld [vmem:[%s2388 + $0x20] sm:$0xff]
      %v2394 = vld [vmem:[%s2388 + $0x28] sm:$0xff]
      %v2395 = vld [vmem:[%s2388 + $0x30] sm:$0xff]
      %v2396 = vld [vmem:[%s2388 + $0x38] sm:$0xff]
      %v2397 = vld [vmem:[%s2388 + $0x40] sm:$0xff]
      %v2398 = vld [vmem:[%s2388 + $0x48] sm:$0xff]
      %v2399 = vld [vmem:[%s2388 + $0x50] sm:$0xff]
      %v2400 = vld [vmem:[%s2388 + $0x58] sm:$0xff]
      %v2401 = vld [vmem:[%s2388 + $0x60] sm:$0xff]
      %v2402 = vld [vmem:[%s2388 + $0x68] sm:$0xff]
      %v2403 = vld [vmem:[%s2388 + $0x70] sm:$0xff]
      %v2404 = vld [vmem:[%s2388 + $0x78] sm:$0xff]
      %v2405 = vld [vmem:[%s3 + $0x16] sm:$0x1]
      %v2406 = vlaneseq
      %v2407 = vshrl.u32 %v2406, 7
      %v2408 = vsub.s32 0, %v2407
      %v2409 = vrot.slane %v2405, %v2408
      %2410 = vmatprep.subr.mxu0 0.0
      %2411 = vmatpush1.msra.mxu0 %v2389
      %2412 = vmatprep.subr.mxu0 0.0
      %2413 = vmatpush1.msra.mxu0 %v2390
      %2414 = vmatprep.subr.mxu0 0.0
      %2415 = vmatpush1.msra.mxu0 %v2391
      %2416 = vmatprep.subr.mxu0 0.0
      %2417 = vmatpush1.msra.mxu0 %v2392
      %2418 = vmatprep.subr.mxu0 0.0
      %2419 = vmatpush1.msra.mxu0 %v2393
      %2420 = vmatprep.subr.mxu0 0.0
      %2421 = vmatpush1.msra.mxu0 %v2394
      %2422 = vmatprep.subr.mxu0 0.0
      %2423 = vmatpush1.msra.mxu0 %v2395
      %2424 = vmatprep.subr.mxu0 0.0
      %2425 = vmatpush1.msra.mxu0 %v2396
      %2426 = vmatprep.subr.mxu0 0.0
      %2427 = vmatpush1.msra.mxu0 %v2397
      %2428 = vmatprep.subr.mxu0 0.0
      %2429 = vmatpush1.msra.mxu0 %v2398
      %2430 = vmatprep.subr.mxu0 0.0
      %2431 = vmatpush1.msra.mxu0 %v2399
      %2432 = vmatprep.subr.mxu0 0.0
      %2433 = vmatpush1.msra.mxu0 %v2400
      %2434 = vmatprep.subr.mxu0 0.0
      %2435 = vmatpush1.msra.mxu0 %v2401
      %2436 = vmatprep.subr.mxu0 0.0
      %2437 = vmatpush1.msra.mxu0 %v2402
      %2438 = vmatprep.subr.mxu0 0.0
      %2439 = vmatpush1.msra.mxu0 %v2403
      %2440 = vmatprep.subr.mxu0 0.0
      %2441 = vmatpush1.msra.mxu0 %v2404
      %2442 = vmatprep.subr.mxu0 0.0
      %2443 = vmatpush1.msra.mxu0 0.0
      %2444 = vmatprep.subr.mxu0 0.0
      %2445 = vmatpush1.msra.mxu0 0.0
      %2446 = vmatprep.subr.mxu0 0.0
      %2447 = vmatpush1.msra.mxu0 0.0
      %2448 = vmatprep.subr.mxu0 0.0
      %2449 = vmatpush1.msra.mxu0 0.0
      %2450 = vmatprep.subr.mxu0 0.0
      %2451 = vmatpush1.msra.mxu0 0.0
      %2452 = vmatprep.subr.mxu0 0.0
      %2453 = vmatpush1.msra.mxu0 0.0
      %2454 = vmatprep.subr.mxu0 0.0
      %2455 = vmatpush1.msra.mxu0 0.0
      %2456 = vmatprep.subr.mxu0 0.0
      %2457 = vmatpush1.msra.mxu0 0.0
      %2458 = vmatprep.subr.mxu0 0.0
      %2459 = vmatpush1.msra.mxu0 0.0
      %2460 = vmatprep.subr.mxu0 0.0
      %2461 = vmatpush1.msra.mxu0 0.0
      %2462 = vmatprep.subr.mxu0 0.0
      %2463 = vmatpush1.msra.mxu0 0.0
      %2464 = vmatprep.subr.mxu0 0.0
      %2465 = vmatpush1.msra.mxu0 0.0
      %2466 = vmatprep.subr.mxu0 0.0
      %2467 = vmatpush1.msra.mxu0 0.0
      %2468 = vmatprep.subr.mxu0 0.0
      %2469 = vmatpush1.msra.mxu0 0.0
      %2470 = vmatprep.subr.mxu0 0.0
      %2471 = vmatpush1.msra.mxu0 0.0
      %2472 = vmatprep.subr.mxu0 0.0
      %2473 = vmatpush1.msra.mxu0 0.0
      %2474 = vmatprep.mubr.f32.mxu0 0.0
      %2475 = vmatmul.mubr.f32.gmra.mrb[0].mxu0 %v2387
      %v2476 = vpop.f32.mrb[0].mxu0
      %v2477 = vadd.f32 %v2409, %v2476
      %v2478 = vpop.f32.mrb[0].mxu0
      %2479 = vdwg.mxu0
      %v2480 = vmax.f32 %v2477, 0.0
      %s2481 = scalar_lea.vmem %s2, 2304
      %v2482 = vld [vmem:[%s2481] sm:$0xff]
      %v2483 = vld [vmem:[%s2481 + $0x8] sm:$0xff]
      %v2484 = vld [vmem:[%s2481 + $0x10] sm:$0xff]
      %v2485 = vld [vmem:[%s2481 + $0x18] sm:$0xff]
      %v2486 = vld [vmem:[%s2481 + $0x20] sm:$0xff]
      %v2487 = vld [vmem:[%s2481 + $0x28] sm:$0xff]
      %v2488 = vld [vmem:[%s2481 + $0x30] sm:$0xff]
      %v2489 = vld [vmem:[%s2481 + $0x38] sm:$0xff]
      %v2490 = vld [vmem:[%s2481 + $0x40] sm:$0xff]
      %v2491 = vld [vmem:[%s2481 + $0x48] sm:$0xff]
      %v2492 = vld [vmem:[%s2481 + $0x50] sm:$0xff]
      %v2493 = vld [vmem:[%s2481 + $0x58] sm:$0xff]
      %v2494 = vld [vmem:[%s2481 + $0x60] sm:$0xff]
      %v2495 = vld [vmem:[%s2481 + $0x68] sm:$0xff]
      %v2496 = vld [vmem:[%s2481 + $0x70] sm:$0xff]
      %v2497 = vld [vmem:[%s2481 + $0x78] sm:$0xff]
      %v2498 = vld [vmem:[%s3 + $0x17] sm:$0x1]
      %v2499 = vlaneseq
      %v2500 = vshrl.u32 %v2499, 7
      %v2501 = vsub.s32 0, %v2500
      %v2502 = vrot.slane %v2498, %v2501
      %2503 = vmatprep.subr.mxu0 0.0
      %2504 = vmatpush1.msra.mxu0 %v2482
      %2505 = vmatprep.subr.mxu0 0.0
      %2506 = vmatpush1.msra.mxu0 %v2483
      %2507 = vmatprep.subr.mxu0 0.0
      %2508 = vmatpush1.msra.mxu0 %v2484
      %2509 = vmatprep.subr.mxu0 0.0
      %2510 = vmatpush1.msra.mxu0 %v2485
      %2511 = vmatprep.subr.mxu0 0.0
      %2512 = vmatpush1.msra.mxu0 %v2486
      %2513 = vmatprep.subr.mxu0 0.0
      %2514 = vmatpush1.msra.mxu0 %v2487
      %2515 = vmatprep.subr.mxu0 0.0
      %2516 = vmatpush1.msra.mxu0 %v2488
      %2517 = vmatprep.subr.mxu0 0.0
      %2518 = vmatpush1.msra.mxu0 %v2489
      %2519 = vmatprep.subr.mxu0 0.0
      %2520 = vmatpush1.msra.mxu0 %v2490
      %2521 = vmatprep.subr.mxu0 0.0
      %2522 = vmatpush1.msra.mxu0 %v2491
      %2523 = vmatprep.subr.mxu0 0.0
      %2524 = vmatpush1.msra.mxu0 %v2492
      %2525 = vmatprep.subr.mxu0 0.0
      %2526 = vmatpush1.msra.mxu0 %v2493
      %2527 = vmatprep.subr.mxu0 0.0
      %2528 = vmatpush1.msra.mxu0 %v2494
      %2529 = vmatprep.subr.mxu0 0.0
      %2530 = vmatpush1.msra.mxu0 %v2495
      %2531 = vmatprep.subr.mxu0 0.0
      %2532 = vmatpush1.msra.mxu0 %v2496
      %2533 = vmatprep.subr.mxu0 0.0
      %2534 = vmatpush1.msra.mxu0 %v2497
      %2535 = vmatprep.subr.mxu0 0.0
      %2536 = vmatpush1.msra.mxu0 0.0
      %2537 = vmatprep.subr.mxu0 0.0
      %2538 = vmatpush1.msra.mxu0 0.0
      %2539 = vmatprep.subr.mxu0 0.0
      %2540 = vmatpush1.msra.mxu0 0.0
      %2541 = vmatprep.subr.mxu0 0.0
      %2542 = vmatpush1.msra.mxu0 0.0
      %2543 = vmatprep.subr.mxu0 0.0
      %2544 = vmatpush1.msra.mxu0 0.0
      %2545 = vmatprep.subr.mxu0 0.0
      %2546 = vmatpush1.msra.mxu0 0.0
      %2547 = vmatprep.subr.mxu0 0.0
      %2548 = vmatpush1.msra.mxu0 0.0
      %2549 = vmatprep.subr.mxu0 0.0
      %2550 = vmatpush1.msra.mxu0 0.0
      %2551 = vmatprep.subr.mxu0 0.0
      %2552 = vmatpush1.msra.mxu0 0.0
      %2553 = vmatprep.subr.mxu0 0.0
      %2554 = vmatpush1.msra.mxu0 0.0
      %2555 = vmatprep.subr.mxu0 0.0
      %2556 = vmatpush1.msra.mxu0 0.0
      %2557 = vmatprep.subr.mxu0 0.0
      %2558 = vmatpush1.msra.mxu0 0.0
      %2559 = vmatprep.subr.mxu0 0.0
      %2560 = vmatpush1.msra.mxu0 0.0
      %2561 = vmatprep.subr.mxu0 0.0
      %2562 = vmatpush1.msra.mxu0 0.0
      %2563 = vmatprep.subr.mxu0 0.0
      %2564 = vmatpush1.msra.mxu0 0.0
      %2565 = vmatprep.subr.mxu0 0.0
      %2566 = vmatpush1.msra.mxu0 0.0
      %2567 = vmatprep.mubr.f32.mxu0 0.0
      %2568 = vmatmul.mubr.f32.gmra.mrb[0].mxu0 %v2480
      %v2569 = vpop.f32.mrb[0].mxu0
      %v2570 = vadd.f32 %v2502, %v2569
      %v2571 = vpop.f32.mrb[0].mxu0
      %2572 = vdwg.mxu0
      %v2573 = vadd.f32 %v2387, %v2570
      %2574 = vadd.xlane.f32.xlu0 %v2573
      %v2575 = vpop.xlane.xlu0 %2574
      %v2576 = vmul.f32 %v2575, 0.03125
      %v2577 = vsub.f32 %v2573, %v2576
      %v2578 = vmul.f32 %v2577, %v217
      %v2579 = vmul.f32 %v2578, %v2578
      %2580 = vadd.xlane.f32.xlu0 %v2579
      %v2581 = vpop.xlane.xlu0 %2580
      %v2582 = vmul.f32 %v2581, 0.03125
      %v2583 = vadd.f32 %v2582, 1e-05
      %v2584 = vrsqrt.pop %v2583
      %v2585 = vmul.f32 %v2578, %v2584
      %v2586 = vld [vmem:[%s3 + $0x18] sm:$0x1]
      %v2587 = vlaneseq
      %v2588 = vshrl.u32 %v2587, 7
      %v2589 = vsub.s32 0, %v2588
      %v2590 = vrot.slane %v2586, %v2589
      %v2591 = vmul.f32 %v2585, %v2590
      %v2592 = vld [vmem:[%s3 + $0x19] sm:$0x1]
      %v2593 = vlaneseq
      %v2594 = vshrl.u32 %v2593, 7
      %v2595 = vsub.s32 0, %v2594
      %v2596 = vrot.slane %v2592, %v2595
      %v2597 = vadd.f32 %v2591, %v2596
      %s2598 = scalar_lea.vmem %s2, 2432
      %v2599 = vld [vmem:[%s2598] sm:$0xff]
      %v2600 = vld [vmem:[%s2598 + $0x8] sm:$0xff]
      %v2601 = vld [vmem:[%s2598 + $0x10] sm:$0xff]
      %v2602 = vld [vmem:[%s2598 + $0x18] sm:$0xff]
      %v2603 = vld [vmem:[%s2598 + $0x20] sm:$0xff]
      %v2604 = vld [vmem:[%s2598 + $0x28] sm:$0xff]
      %v2605 = vld [vmem:[%s2598 + $0x30] sm:$0xff]
      %v2606 = vld [vmem:[%s2598 + $0x38] sm:$0xff]
      %v2607 = vld [vmem:[%s2598 + $0x40] sm:$0xff]
      %v2608 = vld [vmem:[%s2598 + $0x48] sm:$0xff]
      %v2609 = vld [vmem:[%s2598 + $0x50] sm:$0xff]
      %v2610 = vld [vmem:[%s2598 + $0x58] sm:$0xff]
      %v2611 = vld [vmem:[%s2598 + $0x60] sm:$0xff]
      %v2612 = vld [vmem:[%s2598 + $0x68] sm:$0xff]
      %v2613 = vld [vmem:[%s2598 + $0x70] sm:$0xff]
      %v2614 = vld [vmem:[%s2598 + $0x78] sm:$0xff]
      %v2615 = vld [vmem:[%s3 + $0x1a] sm:$0x1]
      %v2616 = vlaneseq
      %v2617 = vshrl.u32 %v2616, 7
      %v2618 = vsub.s32 0, %v2617
      %v2619 = vrot.slane %v2615, %v2618
      %2620 = vmatprep.subr.mxu0 0.0
      %2621 = vmatpush1.msra.mxu0 %v2599
      %2622 = vmatprep.subr.mxu0 0.0
      %2623 = vmatpush1.msra.mxu0 %v2600
      %2624 = vmatprep.subr.mxu0 0.0
      %2625 = vmatpush1.msra.mxu0 %v2601
      %2626 = vmatprep.subr.mxu0 0.0
      %2627 = vmatpush1.msra.mxu0 %v2602
      %2628 = vmatprep.subr.mxu0 0.0
      %2629 = vmatpush1.msra.mxu0 %v2603
      %2630 = vmatprep.subr.mxu0 0.0
      %2631 = vmatpush1.msra.mxu0 %v2604
      %2632 = vmatprep.subr.mxu0 0.0
      %2633 = vmatpush1.msra.mxu0 %v2605
      %2634 = vmatprep.subr.mxu0 0.0
      %2635 = vmatpush1.msra.mxu0 %v2606
      %2636 = vmatprep.subr.mxu0 0.0
      %2637 = vmatpush1.msra.mxu0 %v2607
      %2638 = vmatprep.subr.mxu0 0.0
      %2639 = vmatpush1.msra.mxu0 %v2608
      %2640 = vmatprep.subr.mxu0 0.0
      %2641 = vmatpush1.msra.mxu0 %v2609
      %2642 = vmatprep.subr.mxu0 0.0
      %2643 = vmatpush1.msra.mxu0 %v2610
      %2644 = vmatprep.subr.mxu0 0.0
      %2645 = vmatpush1.msra.mxu0 %v2611
      %2646 = vmatprep.subr.mxu0 0.0
      %2647 = vmatpush1.msra.mxu0 %v2612
      %2648 = vmatprep.subr.mxu0 0.0
      %2649 = vmatpush1.msra.mxu0 %v2613
      %2650 = vmatprep.subr.mxu0 0.0
      %2651 = vmatpush1.msra.mxu0 %v2614
      %2652 = vmatprep.subr.mxu0 0.0
      %2653 = vmatpush1.msra.mxu0 0.0
      %2654 = vmatprep.subr.mxu0 0.0
      %2655 = vmatpush1.msra.mxu0 0.0
      %2656 = vmatprep.subr.mxu0 0.0
      %2657 = vmatpush1.msra.mxu0 0.0
      %2658 = vmatprep.subr.mxu0 0.0
      %2659 = vmatpush1.msra.mxu0 0.0
      %2660 = vmatprep.subr.mxu0 0.0
      %2661 = vmatpush1.msra.mxu0 0.0
      %2662 = vmatprep.subr.mxu0 0.0
      %2663 = vmatpush1.msra.mxu0 0.0
      %2664 = vmatprep.subr.mxu0 0.0
      %2665 = vmatpush1.msra.mxu0 0.0
      %2666 = vmatprep.subr.mxu0 0.0
      %2667 = vmatpush1.msra.mxu0 0.0
      %2668 = vmatprep.subr.mxu0 0.0
      %2669 = vmatpush1.msra.mxu0 0.0
      %2670 = vmatprep.subr.mxu0 0.0
      %2671 = vmatpush1.msra.mxu0 0.0
      %2672 = vmatprep.subr.mxu0 0.0
      %2673 = vmatpush1.msra.mxu0 0.0
      %2674 = vmatprep.subr.mxu0 0.0
      %2675 = vmatpush1.msra.mxu0 0.0
      %2676 = vmatprep.subr.mxu0 0.0
      %2677 = vmatpush1.msra.mxu0 0.0
      %2678 = vmatprep.subr.mxu0 0.0
      %2679 = vmatpush1.msra.mxu0 0.0
      %2680 = vmatprep.subr.mxu0 0.0
      %2681 = vmatpush1.msra.mxu0 0.0
      %2682 = vmatprep.subr.mxu0 0.0
      %2683 = vmatpush1.msra.mxu0 0.0
      %2684 = vmatprep.mubr.f32.mxu0 0.0
      %2685 = vmatmul.mubr.f32.gmra.mrb[0].mxu0 %v2597
      %v2686 = vpop.f32.mrb[0].mxu0
      %v2687 = vadd.f32 %v2619, %v2686
      %v2688 = vpop.f32.mrb[0].mxu0
      %2689 = vdwg.mxu0
      %2690 = vst [vmem:[%s212] sm:$0xff] %v2687
      %p2691 = scmp.lt.s32.totalorder %s15, 1
      %s2692 = scalar_select %p2691, %s15, 1
      %s2693 = smul.addr %s2692, 8
      %s2694 = scalar_lea.vmem %s4, %s2693
      // Predicated region
      $region37: #{transformer_forward.1} parent=35 // pred_check
        %p2695 = pneg %p127
      $region38: #{transformer_forward.1} parent=35 // pred_check_branch
        %2697 = sbr.rel (%p2695) target = $region40
      $region39: #{transformer_forward.1} parent=35 // pred_region
        _
      $region40: #{transformer_forward.1} parent=35 // pred_fallthru
        _
    $region36: #{transformer_forward.1} parent=5 // pred_fallthru
      _
    %p2698 = scmp.le.s32.totalorder 2, %s10
    // Predicated region
    $region41: #{transformer_forward.1} parent=5 // pred_check
      %p2699 = pneg %p2698
    $region42: #{transformer_forward.1} parent=5 // pred_check_branch
      %2701 = sbr.rel (%p2699) target = $region44
    $region43: #{transformer_forward.1} parent=5 // pred_region
      %s2702 = ssub.s32 %s10, 2
      // Predicated region
      $region45: #{transformer_forward.1} parent=43 // pred_check
        %p2703 = pneg %p133
      $region46: #{transformer_forward.1} parent=43 // pred_check_branch
        %2705 = sbr.rel (%p2703) target = $region48
      $region47: #{transformer_forward.1} parent=43 // pred_region
        %p2706 = scmp.lt.s32.totalorder %s16, 1
        %s2707 = scalar_select %p2706, %s16, 1
        %s2708 = smul.addr %s2707, 8
        %s2709 = scalar_lea.vmem %s4, %s2708
      $region48: #{transformer_forward.1} parent=43 // pred_fallthru
        _
    $region44: #{transformer_forward.1} parent=5 // pred_fallthru
      _
  $region6: #{transformer_forward.1} parent=0 // loop_footer
    %s14 = sadd.s32 1, %s10
  $region7: #{transformer_forward.1} parent=0 // loop_footer_branch
    %9 = sbr.rel target = $region3
  $region8: #{transformer_forward.1} parent=0 // loop_exit
    _

</llo_original>
